<compile_context>
chip_gen: v7x
topology: tpu7x:2x2x1
jax: 0.10.0
libtpu: 0.0.40
codegen_flags: <defaults>
</compile_context>

<pallas_src>
import functools
import math

import jax
import jax.numpy as jnp
from jax.experimental import pallas as pl
from jax.experimental.pallas import tpu as pltpu


# ----------------------------- device heuristics ------------------------------
def _device_kind():
    try:
        return str(jax.devices()[0].device_kind).lower()
    except Exception:
        return ""


def _num_tensorcores():
    """TensorCores that a ("parallel",) grid axis can shard across."""
    k = _device_kind()
    if ("v7" in k) or ("7x" in k) or ("v5p" in k) or ("v4" in k):
        return 2
    return 1


def _has_bf16_vector_path():
    """v6e / v7x have bf16 VPU+EUP; v5e does not."""
    k = _device_kind()
    return ("v6" in k) or ("v7" in k) or ("7x" in k) or ("trillium" in k)


def _default_batch_tile(B):
    if _num_tensorcores() >= 2:
        # Even number of tiles so the "parallel" axis load-balances across both TCs.
        for tile in (2048, 1024, 512, 256, 128):
            if B % tile == 0 and (B // tile) % 2 == 0:
                return tile
    # Single TensorCore (or no clean split): one grid step, no padding, any B.
    return B


# ----------------------------- kernel ----------------------------------------
def _diffusion_mlp_kernel(nblocks, nfeatures, mxu_dtype, silu_dtype,
                          x_ref,       # (TB, nfeat)                f32
                          t_ref,       # (TB, 1)                    f32
                          w_in_x_ref,  # (nfeat, nunits)  f32       (= W_in[:, :nf].T)
                          w_in_t_ref,  # (1, nunits)      f32       (= W_in[:, nf:].T)
                          b_in_ref,    # (1, nunits)      f32
                          w_mid_ref,   # (nblocks, nunits, nunits)  mxu_dtype, [i] = W_i.T
                          b_mid_ref,   # (nblocks, 1, nunits)       f32
                          w_out_ref,   # (nunits, nfeat)            mxu_dtype (= W_out.T)
                          b_out_ref,   # (1, nfeat)                 f32
                          o_ref):      # (TB, nfeat)
    f32 = jnp.float32

    # ---- inblock: Linear(nfeat+1 -> nunits), no activation -------------------
    # hstack([x, t]) @ W_in^T == x @ W_in[:, :nf].T + t * W_in[:, nf:].T + b_in
    # The t column is a rank-1 VPU outer product; no HBM concat, no transpose.
    val = t_ref[...] * w_in_t_ref[...] + b_in_ref[...]            # (TB, nunits) f32
    if nfeatures <= 16:
        # Tiny contracting dim: rank-1 broadcast-accumulate on the VPU instead of a
        # nearly empty K=4 MXU pass.
        x = x_ref[...]
        w_x = w_in_x_ref[...]
        for j in range(nfeatures):
            val = val + x[:, j:j + 1] * w_x[j:j + 1, :]
    else:
        val = val + jnp.dot(x_ref[...].astype(mxu_dtype),
                            w_in_x_ref[...].astype(mxu_dtype),
                            preferred_element_type=f32)

    # ---- midblocks: Linear + SiLU, statically unrolled ------------------------
    for i in range(nblocks):
        h = jnp.dot(val.astype(mxu_dtype), w_mid_ref[i],
                    preferred_element_type=f32) + b_mid_ref[i]
        # SiLU in bf16 on v6e/v7x (bf16 VPU/EUP) halves transcendental vreg work;
        # kept in f32 on v5e and for the f32 accuracy path.
        h = h.astype(silu_dtype)
        val = h * jax.nn.sigmoid(h)                                # silu_dtype

    # ---- outblock: Linear(nunits -> nfeat), no activation ---------------------
    out = jnp.dot(val.astype(mxu_dtype), w_out_ref[...],
                  preferred_element_type=f32) + b_out_ref[...]
    # 4-lane masked store (~4 KiB/step) -- cheaper than a standalone XLA transpose.
    o_ref[...] = out.astype(o_ref.dtype)


# ----------------------------- params -----------------------------------------
def init_params(key, nfeatures, nblocks, nunits, dtype=jnp.float32):
    """PyTorch-nn.Linear-style uniform init; weights in PyTorch (out, in) layout."""
    nin = nfeatures + 1
    ks = jax.random.split(key, nblocks + 2)

    def lin(k, fan_in, fan_out):
        kw, kb = jax.random.split(k)
        bound = 1.0 / math.sqrt(fan_in)
        w = jax.random.uniform(kw, (fan_out, fan_in), dtype, -bound, bound)
        b = jax.random.uniform(kb, (fan_out,), dtype, -bound, bound)
        return w, b

    w_in, b_in = lin(ks[0], nin, nunits)
    mids = [lin(ks[1 + i], nunits, nunits) for i in range(nblocks)]
    w_mid = jnp.stack([w for w, _ in mids])                 # (nblocks, nunits, nunits)
    b_mid = jnp.stack([b for _, b in mids])                 # (nblocks, nunits)
    w_out, b_out = lin(ks[1 + nblocks], nunits, nfeatures)
    return (w_in, b_in, w_mid, b_mid, w_out, b_out)


def prepare_params(params, *, mxu_dtype=jnp.bfloat16):
    """One-time kernel-ready prep: transpose weights to (in, out), cast MXU weights.

    Doing this once (outside the per-call path) removes all per-call layout XLA ops
    and all per-grid-step in-kernel weight casts.
    """
    w_in, b_in, w_mid, b_mid, w_out, b_out = params
    nunits, nin = w_in.shape
    nfeatures = w_out.shape[0]
    nblocks = w_mid.shape[0]

    w_in_T = jnp.asarray(w_in, jnp.float32).T                    # (nfeat+1, nunits)
    w_in_x_T = w_in_T[:nfeatures]                                # (nfeat, nunits)  f32 (VPU rank-1)
    w_in_t_T = w_in_T[nfeatures:]                                # (1, nunits)      f32
    b_in_r = jnp.asarray(b_in, jnp.float32).reshape(1, nunits)
    w_mid_T = jnp.asarray(jnp.swapaxes(w_mid, 1, 2), mxu_dtype)  # (nblocks, nunits, nunits)
    b_mid_r = jnp.asarray(b_mid, jnp.float32).reshape(nblocks, 1, nunits)
    w_out_T = jnp.asarray(jnp.swapaxes(w_out, 0, 1), mxu_dtype)  # (nunits, nfeat)
    b_out_r = jnp.asarray(b_out, jnp.float32).reshape(1, nfeatures)
    return (w_in_x_T, w_in_t_T, b_in_r, w_mid_T, b_mid_r, w_out_T, b_out_r)


# ----------------------------- wrapper ----------------------------------------
def diffusion_model_forward(x, t, kparams, *, batch_tile=None, silu_dtype=None):
    """Fused forward pass.

    x: (B, nfeatures) f32, t: (B, 1) f32, kparams from prepare_params()
    -> (B, nfeatures) f32.  No per-call layout ops: x/t/out keep their natural
    HBM layout; weights were transposed/cast once in prepare_params.
    """
    w_in_x_T, w_in_t_T, b_in_r, w_mid_T, b_mid_r, w_out_T, b_out_r = kparams
    B, nfeatures = x.shape
    nblocks, nunits, _ = w_mid_T.shape
    t = t.reshape(B, 1)

    mxu_dtype = w_mid_T.dtype
    if silu_dtype is None:
        silu_dtype = (jnp.bfloat16
                      if (mxu_dtype == jnp.bfloat16 and _has_bf16_vector_path())
                      else jnp.float32)

    if batch_tile is None:
        batch_tile = _default_batch_tile(B)     # grid=1 on 1-TC parts, even grid on 2-TC
    num_tiles = pl.cdiv(B, batch_tile)
    Bp = num_tiles * batch_tile
    if Bp != B:
        # Only reached for a user-chosen tile that does not divide B: keep reads
        # of the tail well-defined with an explicit zero pad.
        x = jnp.pad(x, ((0, Bp - B), (0, 0)))
        t = jnp.pad(t, ((0, Bp - B), (0, 0)))

    kernel = functools.partial(_diffusion_mlp_kernel, nblocks, nfeatures,
                               mxu_dtype, silu_dtype)

    wbytes = jnp.dtype(mxu_dtype).itemsize
    flops = 2 * Bp * (nunits * (nfeatures + 1)
                      + nblocks * nunits * nunits
                      + nunits * nfeatures)
    transcendentals = Bp * nblocks * nunits
    bytes_accessed = (4 * Bp * (2 * nfeatures + 1)
                      + 4 * (nunits * (nfeatures + 2) + nblocks * nunits + nfeatures)
                      + wbytes * (nblocks * nunits * nunits + nunits * nfeatures))

    out = pl.pallas_call(
        kernel,
        out_shape=jax.ShapeDtypeStruct((Bp, nfeatures), x.dtype),
        grid_spec=pltpu.PrefetchScalarGridSpec(
            num_scalar_prefetch=0,
            grid=(num_tiles,),
            in_specs=[
                pl.BlockSpec((batch_tile, nfeatures), lambda i: (i, 0)),       # x
                pl.BlockSpec((batch_tile, 1), lambda i: (i, 0)),               # t
                pl.BlockSpec((nfeatures, nunits), lambda i: (0, 0)),           # W_in_x^T
                pl.BlockSpec((1, nunits), lambda i: (0, 0)),                   # W_in_t^T
                pl.BlockSpec((1, nunits), lambda i: (0, 0)),                   # b_in
                pl.BlockSpec((nblocks, nunits, nunits), lambda i: (0, 0, 0)),  # W_mid^T
                pl.BlockSpec((nblocks, 1, nunits), lambda i: (0, 0, 0)),       # b_mid
                pl.BlockSpec((nunits, nfeatures), lambda i: (0, 0)),           # W_out^T
                pl.BlockSpec((1, nfeatures), lambda i: (0, 0)),                # b_out
            ],
            out_specs=pl.BlockSpec((batch_tile, nfeatures), lambda i: (i, 0)),
        ),
        compiler_params=pltpu.CompilerParams(
            dimension_semantics=("parallel",)),
        cost_estimate=pl.CostEstimate(flops=int(flops),
                                      transcendentals=int(transcendentals),
                                      bytes_accessed=int(bytes_accessed)),
    )(x, t, w_in_x_T, w_in_t_T, b_in_r, w_mid_T, b_mid_r, w_out_T, b_out_r)

    return out[:B] if Bp != B else out


# ----------------------------- reference ---------------------------------------
def reference_forward(x, t, params):
    """Pure-JAX f32 reference mirroring the PyTorch module exactly."""
    w_in, b_in, w_mid, b_mid, w_out, b_out = params
    val = jnp.concatenate([x, t], axis=1)
    val = val @ w_in.T + b_in
    for i in range(w_mid.shape[0]):
        h = val @ w_mid[i].T + b_mid[i]
        val = h * jax.nn.sigmoid(h)
    return val @ w_out.T + b_out


# ----------------------------- main --------------------------------------------
if __name__ == "__main__":
    nfeatures = 4
    diffusion_steps = 100        # stored on the module; unused in forward
    nblocks = 2
    nunits = 64
    batch = 512

    key = jax.random.PRNGKey(0)
    kx, kt, kp = jax.random.split(key, 3)
    x = jax.random.normal(kx, (batch, nfeatures), jnp.float32)
    # normalized timestep t/T in [0, 1)
    t = jax.random.uniform(kt, (batch, 1), jnp.float32, 0.0, 1.0)

    params = init_params(kp, nfeatures, nblocks, nunits)
    ref = reference_forward(x, t, params)

    # f32-MXU path (accuracy sanity): tolerance allows default TPU matmul precision.
    kp_f32 = prepare_params(params, mxu_dtype=jnp.float32)
    out_f32 = jax.block_until_ready(diffusion_model_forward(x, t, kp_f32))
    assert out_f32.shape == (batch, nfeatures)
    assert jnp.allclose(out_f32, ref, atol=2e-2, rtol=2e-2), "f32 path mismatch"

    # bf16-MXU path (default; f32 accumulation, bf16 SiLU on v6e/v7x).
    kp_bf16 = prepare_params(params)                     # bf16 weights, one-time
    out_bf16 = jax.block_until_ready(diffusion_model_forward(x, t, kp_bf16))
    assert out_bf16.shape == (batch, nfeatures)
    assert jnp.allclose(out_bf16, ref, atol=5e-2, rtol=5e-2), "bf16 path mismatch"

    # Explicit multi-tile grid (e.g. the v7x-style even split) also works.
    out_tiled = jax.block_until_ready(
        diffusion_model_forward(x, t, kp_bf16, batch_tile=256))
    assert out_tiled.shape == (batch, nfeatures)
    assert jnp.allclose(out_tiled, ref, atol=5e-2, rtol=5e-2), "tiled path mismatch"

    # Ragged batch: auto tile -> grid=1, block == full array, no padding needed.
    out_rag = jax.block_until_ready(
        diffusion_model_forward(x[:100], t[:100], kp_bf16))
    assert out_rag.shape == (100, nfeatures)
    assert jnp.allclose(out_rag, ref[:100], atol=5e-2, rtol=5e-2), "ragged mismatch"

    print("KERNEL_OK")
</pallas_src>

<mosaic_0001>
module attributes {stable_mosaic.version = 11 : i64} {
  func.func @_diffusion_mlp_kernel(%arg0: i32, %arg1: memref<512x4xf32, #tpu.memory_space<vmem>>, %arg2: memref<512x1xf32, #tpu.memory_space<vmem>>, %arg3: memref<4x64xf32, #tpu.memory_space<vmem>>, %arg4: memref<1x64xf32, #tpu.memory_space<vmem>>, %arg5: memref<1x64xf32, #tpu.memory_space<vmem>>, %arg6: memref<2x64x64xf32, #tpu.memory_space<vmem>>, %arg7: memref<2x1x64xf32, #tpu.memory_space<vmem>>, %arg8: memref<64x4xf32, #tpu.memory_space<vmem>>, %arg9: memref<1x4xf32, #tpu.memory_space<vmem>>, %arg10: memref<512x4xf32, #tpu.memory_space<vmem>>) attributes {dimension_semantics = [#tpu.dimension_semantics<parallel>], iteration_bounds = array<i64: 1>, scalar_prefetch = 0 : i64, scratch_operands = 0 : i64, tpu.core_type = #tpu.core_type<tc>, window_params = [{transform_indices = @transform_0, window_bounds = array<i64: 512, 4>}, {transform_indices = @transform_1, window_bounds = array<i64: 512, 1>}, {pipeline_mode = #tpu.pipeline_mode<synchronous>, transform_indices = @transform_2, window_bounds = array<i64: 4, 64>}, {pipeline_mode = #tpu.pipeline_mode<synchronous>, transform_indices = @transform_3, window_bounds = array<i64: 1, 64>}, {pipeline_mode = #tpu.pipeline_mode<synchronous>, transform_indices = @transform_4, window_bounds = array<i64: 1, 64>}, {pipeline_mode = #tpu.pipeline_mode<synchronous>, transform_indices = @transform_5, window_bounds = array<i64: 2, 64, 64>}, {pipeline_mode = #tpu.pipeline_mode<synchronous>, transform_indices = @transform_6, window_bounds = array<i64: 2, 1, 64>}, {pipeline_mode = #tpu.pipeline_mode<synchronous>, transform_indices = @transform_7, window_bounds = array<i64: 64, 4>}, {pipeline_mode = #tpu.pipeline_mode<synchronous>, transform_indices = @transform_8, window_bounds = array<i64: 1, 4>}, {transform_indices = @transform_9, window_bounds = array<i64: 512, 4>}]} {
    %c0 = arith.constant 0 : index
    %c0_0 = arith.constant 0 : index
    %0 = vector.load %arg2[%c0, %c0_0] : memref<512x1xf32, #tpu.memory_space<vmem>>, vector<512x1xf32>
    %c0_1 = arith.constant 0 : index
    %c0_2 = arith.constant 0 : index
    %1 = vector.load %arg4[%c0_1, %c0_2] : memref<1x64xf32, #tpu.memory_space<vmem>>, vector<1x64xf32>
    %2 = vector.broadcast %0 : vector<512x1xf32> to vector<512x64xf32>
    %3 = vector.broadcast %1 : vector<1x64xf32> to vector<512x64xf32>
    %4 = arith.mulf %2, %3 : vector<512x64xf32>
    %c0_3 = arith.constant 0 : index
    %c0_4 = arith.constant 0 : index
    %5 = vector.load %arg5[%c0_3, %c0_4] : memref<1x64xf32, #tpu.memory_space<vmem>>, vector<1x64xf32>
    %6 = vector.broadcast %5 : vector<1x64xf32> to vector<512x64xf32>
    %7 = arith.addf %4, %6 : vector<512x64xf32>
    %c0_5 = arith.constant 0 : index
    %c0_6 = arith.constant 0 : index
    %8 = vector.load %arg1[%c0_5, %c0_6] : memref<512x4xf32, #tpu.memory_space<vmem>>, vector<512x4xf32>
    %c0_7 = arith.constant 0 : index
    %c0_8 = arith.constant 0 : index
    %9 = vector.load %arg3[%c0_7, %c0_8] : memref<4x64xf32, #tpu.memory_space<vmem>>, vector<4x64xf32>
    %10 = vector.extract_strided_slice %8 {offsets = [0, 0], sizes = [512, 1], strides = [1, 1]} : vector<512x4xf32> to vector<512x1xf32>
    %11 = vector.extract_strided_slice %9 {offsets = [0, 0], sizes = [1, 64], strides = [1, 1]} : vector<4x64xf32> to vector<1x64xf32>
    %12 = vector.broadcast %10 : vector<512x1xf32> to vector<512x64xf32>
    %13 = vector.broadcast %11 : vector<1x64xf32> to vector<512x64xf32>
    %14 = arith.mulf %12, %13 : vector<512x64xf32>
    %15 = arith.addf %7, %14 : vector<512x64xf32>
    %16 = vector.extract_strided_slice %8 {offsets = [0, 1], sizes = [512, 1], strides = [1, 1]} : vector<512x4xf32> to vector<512x1xf32>
    %17 = vector.extract_strided_slice %9 {offsets = [1, 0], sizes = [1, 64], strides = [1, 1]} : vector<4x64xf32> to vector<1x64xf32>
    %18 = vector.broadcast %16 : vector<512x1xf32> to vector<512x64xf32>
    %19 = vector.broadcast %17 : vector<1x64xf32> to vector<512x64xf32>
    %20 = arith.mulf %18, %19 : vector<512x64xf32>
    %21 = arith.addf %15, %20 : vector<512x64xf32>
    %22 = vector.extract_strided_slice %8 {offsets = [0, 2], sizes = [512, 1], strides = [1, 1]} : vector<512x4xf32> to vector<512x1xf32>
    %23 = vector.extract_strided_slice %9 {offsets = [2, 0], sizes = [1, 64], strides = [1, 1]} : vector<4x64xf32> to vector<1x64xf32>
    %24 = vector.broadcast %22 : vector<512x1xf32> to vector<512x64xf32>
    %25 = vector.broadcast %23 : vector<1x64xf32> to vector<512x64xf32>
    %26 = arith.mulf %24, %25 : vector<512x64xf32>
    %27 = arith.addf %21, %26 : vector<512x64xf32>
    %28 = vector.extract_strided_slice %8 {offsets = [0, 3], sizes = [512, 1], strides = [1, 1]} : vector<512x4xf32> to vector<512x1xf32>
    %29 = vector.extract_strided_slice %9 {offsets = [3, 0], sizes = [1, 64], strides = [1, 1]} : vector<4x64xf32> to vector<1x64xf32>
    %30 = vector.broadcast %28 : vector<512x1xf32> to vector<512x64xf32>
    %31 = vector.broadcast %29 : vector<1x64xf32> to vector<512x64xf32>
    %32 = arith.mulf %30, %31 : vector<512x64xf32>
    %33 = arith.addf %27, %32 : vector<512x64xf32>
    %c0_9 = arith.constant 0 : index
    %c0_10 = arith.constant 0 : index
    %c0_11 = arith.constant 0 : index
    %34 = vector.load %arg6[%c0_9, %c0_10, %c0_11] : memref<2x64x64xf32, #tpu.memory_space<vmem>>, vector<1x64x64xf32>
    %35 = vector.shape_cast %34 : vector<1x64x64xf32> to vector<64x64xf32>
    %cst = arith.constant dense<0.000000e+00> : vector<512x64xf32>
    %36 = tpu.matmul %33, %35, %cst {dimension_numbers = #tpu.dot_dimension_numbers<[1], [0], [0], [1], [0, 0, 1, 1], [], []>} : vector<512x64xf32>, vector<64x64xf32>, vector<512x64xf32> -> vector<512x64xf32>
    %c0_12 = arith.constant 0 : index
    %c0_13 = arith.constant 0 : index
    %c0_14 = arith.constant 0 : index
    %37 = vector.load %arg7[%c0_12, %c0_13, %c0_14] : memref<2x1x64xf32, #tpu.memory_space<vmem>>, vector<1x1x64xf32>
    %38 = vector.shape_cast %37 : vector<1x1x64xf32> to vector<1x64xf32>
    %39 = vector.broadcast %38 : vector<1x64xf32> to vector<512x64xf32>
    %40 = arith.addf %36, %39 : vector<512x64xf32>
    %41 = arith.negf %40 : vector<512x64xf32>
    %42 = math.exp %41 : vector<512x64xf32>
    %cst_15 = arith.constant 1.000000e+00 : f32
    %43 = vector.broadcast %cst_15 : f32 to vector<512x64xf32>
    %44 = arith.addf %43, %42 : vector<512x64xf32>
    %45 = arith.divf %43, %44 : vector<512x64xf32>
    %46 = arith.mulf %40, %45 : vector<512x64xf32>
    %c1 = arith.constant 1 : index
    %c0_16 = arith.constant 0 : index
    %c0_17 = arith.constant 0 : index
    %47 = vector.load %arg6[%c1, %c0_16, %c0_17] : memref<2x64x64xf32, #tpu.memory_space<vmem>>, vector<1x64x64xf32>
    %48 = vector.shape_cast %47 : vector<1x64x64xf32> to vector<64x64xf32>
    %cst_18 = arith.constant dense<0.000000e+00> : vector<512x64xf32>
    %49 = tpu.matmul %46, %48, %cst_18 {dimension_numbers = #tpu.dot_dimension_numbers<[1], [0], [0], [1], [0, 0, 1, 1], [], []>} : vector<512x64xf32>, vector<64x64xf32>, vector<512x64xf32> -> vector<512x64xf32>
    %c1_19 = arith.constant 1 : index
    %c0_20 = arith.constant 0 : index
    %c0_21 = arith.constant 0 : index
    %50 = vector.load %arg7[%c1_19, %c0_20, %c0_21] : memref<2x1x64xf32, #tpu.memory_space<vmem>>, vector<1x1x64xf32>
    %51 = vector.shape_cast %50 : vector<1x1x64xf32> to vector<1x64xf32>
    %52 = vector.broadcast %51 : vector<1x64xf32> to vector<512x64xf32>
    %53 = arith.addf %49, %52 : vector<512x64xf32>
    %54 = arith.negf %53 : vector<512x64xf32>
    %55 = math.exp %54 : vector<512x64xf32>
    %cst_22 = arith.constant 1.000000e+00 : f32
    %56 = vector.broadcast %cst_22 : f32 to vector<512x64xf32>
    %57 = arith.addf %56, %55 : vector<512x64xf32>
    %58 = arith.divf %56, %57 : vector<512x64xf32>
    %59 = arith.mulf %53, %58 : vector<512x64xf32>
    %c0_23 = arith.constant 0 : index
    %c0_24 = arith.constant 0 : index
    %60 = vector.load %arg8[%c0_23, %c0_24] : memref<64x4xf32, #tpu.memory_space<vmem>>, vector<64x4xf32>
    %cst_25 = arith.constant dense<0.000000e+00> : vector<512x4xf32>
    %61 = tpu.matmul %59, %60, %cst_25 {dimension_numbers = #tpu.dot_dimension_numbers<[1], [0], [0], [1], [0, 0, 1, 1], [], []>} : vector<512x64xf32>, vector<64x4xf32>, vector<512x4xf32> -> vector<512x4xf32>
    %c0_26 = arith.constant 0 : index
    %c0_27 = arith.constant 0 : index
    %62 = vector.load %arg9[%c0_26, %c0_27] : memref<1x4xf32, #tpu.memory_space<vmem>>, vector<1x4xf32>
    %63 = vector.broadcast %62 : vector<1x4xf32> to vector<512x4xf32>
    %64 = arith.addf %61, %63 : vector<512x4xf32>
    %c0_28 = arith.constant 0 : index
    %c0_29 = arith.constant 0 : index
    %65 = vector.load %arg10[%c0_28, %c0_29] : memref<512x4xf32, #tpu.memory_space<vmem>>, vector<512x4xf32>
    tpu.vector_store %arg10[%c0_28, %c0_29], %64 {strides = array<i32>} : memref<512x4xf32, #tpu.memory_space<vmem>>, vector<512x4xf32>,
    return
  }
  func.func @transform_0(%arg0: i32) -> (i32, i32) {
    %c0_i32 = arith.constant 0 : i32
    %c0_i32_0 = arith.constant 0 : i32
    return %arg0, %c0_i32 : i32, i32
  }
  func.func @transform_1(%arg0: i32) -> (i32, i32) {
    %c0_i32 = arith.constant 0 : i32
    %c0_i32_0 = arith.constant 0 : i32
    return %arg0, %c0_i32 : i32, i32
  }
  func.func @transform_2(%arg0: i32) -> (i32, i32) {
    %c0_i32 = arith.constant 0 : i32
    %c0_i32_0 = arith.constant 0 : i32
    %c0_i32_1 = arith.constant 0 : i32
    return %c0_i32, %c0_i32_0 : i32, i32
  }
  func.func @transform_3(%arg0: i32) -> (i32, i32) {
    %c0_i32 = arith.constant 0 : i32
    %c0_i32_0 = arith.constant 0 : i32
    %c0_i32_1 = arith.constant 0 : i32
    return %c0_i32, %c0_i32_0 : i32, i32
  }
  func.func @transform_4(%arg0: i32) -> (i32, i32) {
    %c0_i32 = arith.constant 0 : i32
    %c0_i32_0 = arith.constant 0 : i32
    %c0_i32_1 = arith.constant 0 : i32
    return %c0_i32, %c0_i32_0 : i32, i32
  }
  func.func @transform_5(%arg0: i32) -> (i32, i32, i32) {
    %c0_i32 = arith.constant 0 : i32
    %c0_i32_0 = arith.constant 0 : i32
    %c0_i32_1 = arith.constant 0 : i32
    %c0_i32_2 = arith.constant 0 : i32
    return %c0_i32, %c0_i32_0, %c0_i32_1 : i32, i32, i32
  }
  func.func @transform_6(%arg0: i32) -> (i32, i32, i32) {
    %c0_i32 = arith.constant 0 : i32
    %c0_i32_0 = arith.constant 0 : i32
    %c0_i32_1 = arith.constant 0 : i32
    %c0_i32_2 = arith.constant 0 : i32
    return %c0_i32, %c0_i32_0, %c0_i32_1 : i32, i32, i32
  }
  func.func @transform_7(%arg0: i32) -> (i32, i32) {
    %c0_i32 = arith.constant 0 : i32
    %c0_i32_0 = arith.constant 0 : i32
    %c0_i32_1 = arith.constant 0 : i32
    return %c0_i32, %c0_i32_0 : i32, i32
  }
  func.func @transform_8(%arg0: i32) -> (i32, i32) {
    %c0_i32 = arith.constant 0 : i32
    %c0_i32_0 = arith.constant 0 : i32
    %c0_i32_1 = arith.constant 0 : i32
    return %c0_i32, %c0_i32_0 : i32, i32
  }
  func.func @transform_9(%arg0: i32) -> (i32, i32) {
    %c0_i32 = arith.constant 0 : i32
    %c0_i32_0 = arith.constant 0 : i32
    return %arg0, %c0_i32 : i32, i32
  }
}

</mosaic_0001>

<llo_original>
// kernel: tpu_custom_call.1
$region0: #{tpu_custom_call.1}
  #allocation0 [shape = 'u32[]', space=smem, size = 0x4, offset = 0x4, fixed_abs, tag = 'smem constant byte address 0x4 - core index']
  #allocation1 [shape = 'u32[144,128]{1,0:T(1,128)}', space=vmem, size = 0x12000, scoped, tag = 'internal scratch']
  %s0 = inlined_call_operand.vmem [shape: f32[512,4], index: 0, kind: input, shape index: {}]
  %s1 = inlined_call_operand.vmem [shape: f32[512,1], index: 1, kind: input, shape index: {}]
  %s2 = inlined_call_operand.vmem [shape: f32[4,64], index: 2, kind: input, shape index: {}]
  %s3 = inlined_call_operand.vmem [shape: f32[1,64], index: 3, kind: input, shape index: {}]
  %s4 = inlined_call_operand.vmem [shape: f32[1,64], index: 4, kind: input, shape index: {}]
  %s5 = inlined_call_operand.vmem [shape: f32[2,64,64], index: 5, kind: input, shape index: {}]
  %s6 = inlined_call_operand.vmem [shape: f32[2,1,64], index: 6, kind: input, shape index: {}]
  %s7 = inlined_call_operand.vmem [shape: f32[64,4], index: 7, kind: input, shape index: {}]
  %s8 = inlined_call_operand.vmem [shape: f32[1,4], index: 8, kind: input, shape index: {}]
  %s9 = inlined_call_operand.vmem [shape: f32[512,4], index: 9, kind: output, shape index: {}]
  %s10 = sld [smem:[#allocation0]]
  $region46: #{tpu_custom_call.1} parent=0
    _
  %s12 = ssub.s32 1, %s10
  %s13 = scalar_select 0, %s12, %s10
  // Predicated region
  $region2: #{tpu_custom_call.1} parent=0 // pred_check
    _
  $region3: #{tpu_custom_call.1} parent=0 // pred_check_branch
    %15 = sbr.rel (0) target = $region5
  $region4: #{tpu_custom_call.1} parent=0 // pred_region
    _
  $region5: #{tpu_custom_call.1} parent=0 // pred_fallthru
    _
  // Predicated region
  $region6: #{tpu_custom_call.1} parent=0 // pred_check
    _
  $region7: #{tpu_custom_call.1} parent=0 // pred_check_branch
    %17 = sbr.rel (0) target = $region9
  $region8: #{tpu_custom_call.1} parent=0 // pred_region
    _
  $region9: #{tpu_custom_call.1} parent=0 // pred_fallthru
    _
  // Predicated region
  $region10: #{tpu_custom_call.1} parent=0 // pred_check
    _
  $region11: #{tpu_custom_call.1} parent=0 // pred_check_branch
    %19 = sbr.rel (0) target = $region13
  $region12: #{tpu_custom_call.1} parent=0 // pred_region
    _
  $region13: #{tpu_custom_call.1} parent=0 // pred_fallthru
    _
  // Predicated region
  $region14: #{tpu_custom_call.1} parent=0 // pred_check
    _
  $region15: #{tpu_custom_call.1} parent=0 // pred_check_branch
    %21 = sbr.rel (0) target = $region17
  $region16: #{tpu_custom_call.1} parent=0 // pred_region
    _
  $region17: #{tpu_custom_call.1} parent=0 // pred_fallthru
    _
  // Predicated region
  $region18: #{tpu_custom_call.1} parent=0 // pred_check
    _
  $region19: #{tpu_custom_call.1} parent=0 // pred_check_branch
    %23 = sbr.rel (0) target = $region21
  $region20: #{tpu_custom_call.1} parent=0 // pred_region
    _
  $region21: #{tpu_custom_call.1} parent=0 // pred_fallthru
    _
  // Predicated region
  $region22: #{tpu_custom_call.1} parent=0 // pred_check
    _
  $region23: #{tpu_custom_call.1} parent=0 // pred_check_branch
    %25 = sbr.rel (0) target = $region25
  $region24: #{tpu_custom_call.1} parent=0 // pred_region
    _
  $region25: #{tpu_custom_call.1} parent=0 // pred_fallthru
    _
  // Predicated region
  $region26: #{tpu_custom_call.1} parent=0 // pred_check
    _
  $region27: #{tpu_custom_call.1} parent=0 // pred_check_branch
    %27 = sbr.rel (0) target = $region29
  $region28: #{tpu_custom_call.1} parent=0 // pred_region
    _
  $region29: #{tpu_custom_call.1} parent=0 // pred_fallthru
    _
  // Predicated region
  $region30: #{tpu_custom_call.1} parent=0 // pred_check
    _
  $region31: #{tpu_custom_call.1} parent=0 // pred_check_branch
    %29 = sbr.rel (0) target = $region33
  $region32: #{tpu_custom_call.1} parent=0 // pred_region
    _
  $region33: #{tpu_custom_call.1} parent=0 // pred_fallthru
    _
  // Predicated region
  $region34: #{tpu_custom_call.1} parent=0 // pred_check
    _
  $region35: #{tpu_custom_call.1} parent=0 // pred_check_branch
    %31 = sbr.rel (0) target = $region37
  $region36: #{tpu_custom_call.1} parent=0 // pred_region
    _
  $region37: #{tpu_custom_call.1} parent=0 // pred_fallthru
    _
  %v32 = vld [vmem:[%s1] sm:$0xff]
  %v33 = vld [vmem:[%s1 + $0x8] sm:$0xff]
  %v34 = vld [vmem:[%s1 + $0x10] sm:$0xff]
  %v35 = vld [vmem:[%s1 + $0x18] sm:$0xff]
  %v36 = vld [vmem:[%s1 + $0x20] sm:$0xff]
  %v37 = vld [vmem:[%s1 + $0x28] sm:$0xff]
  %v38 = vld [vmem:[%s1 + $0x30] sm:$0xff]
  %v39 = vld [vmem:[%s1 + $0x38] sm:$0xff]
  %v40 = vld [vmem:[%s1 + $0x40] sm:$0xff]
  %v41 = vld [vmem:[%s1 + $0x48] sm:$0xff]
  %v42 = vld [vmem:[%s1 + $0x50] sm:$0xff]
  %v43 = vld [vmem:[%s1 + $0x58] sm:$0xff]
  %v44 = vld [vmem:[%s1 + $0x60] sm:$0xff]
  %v45 = vld [vmem:[%s1 + $0x68] sm:$0xff]
  %v46 = vld [vmem:[%s1 + $0x70] sm:$0xff]
  %v47 = vld [vmem:[%s1 + $0x78] sm:$0xff]
  %v48 = vld [vmem:[%s1 + $0x80] sm:$0xff]
  %v49 = vld [vmem:[%s1 + $0x88] sm:$0xff]
  %v50 = vld [vmem:[%s1 + $0x90] sm:$0xff]
  %v51 = vld [vmem:[%s1 + $0x98] sm:$0xff]
  %v52 = vld [vmem:[%s1 + $0xa0] sm:$0xff]
  %v53 = vld [vmem:[%s1 + $0xa8] sm:$0xff]
  %v54 = vld [vmem:[%s1 + $0xb0] sm:$0xff]
  %v55 = vld [vmem:[%s1 + $0xb8] sm:$0xff]
  %v56 = vld [vmem:[%s1 + $0xc0] sm:$0xff]
  %v57 = vld [vmem:[%s1 + $0xc8] sm:$0xff]
  %v58 = vld [vmem:[%s1 + $0xd0] sm:$0xff]
  %v59 = vld [vmem:[%s1 + $0xd8] sm:$0xff]
  %v60 = vld [vmem:[%s1 + $0xe0] sm:$0xff]
  %v61 = vld [vmem:[%s1 + $0xe8] sm:$0xff]
  %v62 = vld [vmem:[%s1 + $0xf0] sm:$0xff]
  %v63 = vld [vmem:[%s1 + $0xf8] sm:$0xff]
  %v64 = vld [vmem:[%s1 + $0x100] sm:$0xff]
  %v65 = vld [vmem:[%s1 + $0x108] sm:$0xff]
  %v66 = vld [vmem:[%s1 + $0x110] sm:$0xff]
  %v67 = vld [vmem:[%s1 + $0x118] sm:$0xff]
  %v68 = vld [vmem:[%s1 + $0x120] sm:$0xff]
  %v69 = vld [vmem:[%s1 + $0x128] sm:$0xff]
  %v70 = vld [vmem:[%s1 + $0x130] sm:$0xff]
  %v71 = vld [vmem:[%s1 + $0x138] sm:$0xff]
  %v72 = vld [vmem:[%s1 + $0x140] sm:$0xff]
  %v73 = vld [vmem:[%s1 + $0x148] sm:$0xff]
  %v74 = vld [vmem:[%s1 + $0x150] sm:$0xff]
  %v75 = vld [vmem:[%s1 + $0x158] sm:$0xff]
  %v76 = vld [vmem:[%s1 + $0x160] sm:$0xff]
  %v77 = vld [vmem:[%s1 + $0x168] sm:$0xff]
  %v78 = vld [vmem:[%s1 + $0x170] sm:$0xff]
  %v79 = vld [vmem:[%s1 + $0x178] sm:$0xff]
  %v80 = vld [vmem:[%s1 + $0x180] sm:$0xff]
  %v81 = vld [vmem:[%s1 + $0x188] sm:$0xff]
  %v82 = vld [vmem:[%s1 + $0x190] sm:$0xff]
  %v83 = vld [vmem:[%s1 + $0x198] sm:$0xff]
  %v84 = vld [vmem:[%s1 + $0x1a0] sm:$0xff]
  %v85 = vld [vmem:[%s1 + $0x1a8] sm:$0xff]
  %v86 = vld [vmem:[%s1 + $0x1b0] sm:$0xff]
  %v87 = vld [vmem:[%s1 + $0x1b8] sm:$0xff]
  %v88 = vld [vmem:[%s1 + $0x1c0] sm:$0xff]
  %v89 = vld [vmem:[%s1 + $0x1c8] sm:$0xff]
  %v90 = vld [vmem:[%s1 + $0x1d0] sm:$0xff]
  %v91 = vld [vmem:[%s1 + $0x1d8] sm:$0xff]
  %v92 = vld [vmem:[%s1 + $0x1e0] sm:$0xff]
  %v93 = vld [vmem:[%s1 + $0x1e8] sm:$0xff]
  %v94 = vld [vmem:[%s1 + $0x1f0] sm:$0xff]
  %v95 = vld [vmem:[%s1 + $0x1f8] sm:$0xff]
  %v96 = vld [vmem:[%s3] sm:$0x1]
  %98 = vset.pattern.permute.xlu0 0
  %99 = vperm.xlu0 %98, %v32
  %v100 = vpop.permute.xlu0 %99
  %103 = vset.pattern.permute.xlu0 0
  %104 = vperm.xlu0 %103, %v33
  %v105 = vpop.permute.xlu0 %104
  %108 = vset.pattern.permute.xlu0 0
  %109 = vperm.xlu0 %108, %v34
  %v110 = vpop.permute.xlu0 %109
  %113 = vset.pattern.permute.xlu0 0
  %114 = vperm.xlu0 %113, %v35
  %v115 = vpop.permute.xlu0 %114
  %118 = vset.pattern.permute.xlu0 0
  %119 = vperm.xlu0 %118, %v36
  %v120 = vpop.permute.xlu0 %119
  %123 = vset.pattern.permute.xlu0 0
  %124 = vperm.xlu0 %123, %v37
  %v125 = vpop.permute.xlu0 %124
  %128 = vset.pattern.permute.xlu0 0
  %129 = vperm.xlu0 %128, %v38
  %v130 = vpop.permute.xlu0 %129
  %133 = vset.pattern.permute.xlu0 0
  %134 = vperm.xlu0 %133, %v39
  %v135 = vpop.permute.xlu0 %134
  %138 = vset.pattern.permute.xlu0 0
  %139 = vperm.xlu0 %138, %v40
  %v140 = vpop.permute.xlu0 %139
  %143 = vset.pattern.permute.xlu0 0
  %144 = vperm.xlu0 %143, %v41
  %v145 = vpop.permute.xlu0 %144
  %148 = vset.pattern.permute.xlu0 0
  %149 = vperm.xlu0 %148, %v42
  %v150 = vpop.permute.xlu0 %149
  %153 = vset.pattern.permute.xlu0 0
  %154 = vperm.xlu0 %153, %v43
  %v155 = vpop.permute.xlu0 %154
  %158 = vset.pattern.permute.xlu0 0
  %159 = vperm.xlu0 %158, %v44
  %v160 = vpop.permute.xlu0 %159
  %163 = vset.pattern.permute.xlu0 0
  %164 = vperm.xlu0 %163, %v45
  %v165 = vpop.permute.xlu0 %164
  %168 = vset.pattern.permute.xlu0 0
  %169 = vperm.xlu0 %168, %v46
  %v170 = vpop.permute.xlu0 %169
  %173 = vset.pattern.permute.xlu0 0
  %174 = vperm.xlu0 %173, %v47
  %v175 = vpop.permute.xlu0 %174
  %178 = vset.pattern.permute.xlu0 0
  %179 = vperm.xlu0 %178, %v48
  %v180 = vpop.permute.xlu0 %179
  %183 = vset.pattern.permute.xlu0 0
  %184 = vperm.xlu0 %183, %v49
  %v185 = vpop.permute.xlu0 %184
  %188 = vset.pattern.permute.xlu0 0
  %189 = vperm.xlu0 %188, %v50
  %v190 = vpop.permute.xlu0 %189
  %193 = vset.pattern.permute.xlu0 0
  %194 = vperm.xlu0 %193, %v51
  %v195 = vpop.permute.xlu0 %194
  %198 = vset.pattern.permute.xlu0 0
  %199 = vperm.xlu0 %198, %v52
  %v200 = vpop.permute.xlu0 %199
  %203 = vset.pattern.permute.xlu0 0
  %204 = vperm.xlu0 %203, %v53
  %v205 = vpop.permute.xlu0 %204
  %208 = vset.pattern.permute.xlu0 0
  %209 = vperm.xlu0 %208, %v54
  %v210 = vpop.permute.xlu0 %209
  %213 = vset.pattern.permute.xlu0 0
  %214 = vperm.xlu0 %213, %v55
  %v215 = vpop.permute.xlu0 %214
  %218 = vset.pattern.permute.xlu0 0
  %219 = vperm.xlu0 %218, %v56
  %v220 = vpop.permute.xlu0 %219
  %223 = vset.pattern.permute.xlu0 0
  %224 = vperm.xlu0 %223, %v57
  %v225 = vpop.permute.xlu0 %224
  %228 = vset.pattern.permute.xlu0 0
  %229 = vperm.xlu0 %228, %v58
  %v230 = vpop.permute.xlu0 %229
  %233 = vset.pattern.permute.xlu0 0
  %234 = vperm.xlu0 %233, %v59
  %v235 = vpop.permute.xlu0 %234
  %238 = vset.pattern.permute.xlu0 0
  %239 = vperm.xlu0 %238, %v60
  %v240 = vpop.permute.xlu0 %239
  %243 = vset.pattern.permute.xlu0 0
  %244 = vperm.xlu0 %243, %v61
  %v245 = vpop.permute.xlu0 %244
  %248 = vset.pattern.permute.xlu0 0
  %249 = vperm.xlu0 %248, %v62
  %v250 = vpop.permute.xlu0 %249
  %253 = vset.pattern.permute.xlu0 0
  %254 = vperm.xlu0 %253, %v63
  %v255 = vpop.permute.xlu0 %254
  %258 = vset.pattern.permute.xlu0 0
  %259 = vperm.xlu0 %258, %v64
  %v260 = vpop.permute.xlu0 %259
  %263 = vset.pattern.permute.xlu0 0
  %264 = vperm.xlu0 %263, %v65
  %v265 = vpop.permute.xlu0 %264
  %268 = vset.pattern.permute.xlu0 0
  %269 = vperm.xlu0 %268, %v66
  %v270 = vpop.permute.xlu0 %269
  %273 = vset.pattern.permute.xlu0 0
  %274 = vperm.xlu0 %273, %v67
  %v275 = vpop.permute.xlu0 %274
  %278 = vset.pattern.permute.xlu0 0
  %279 = vperm.xlu0 %278, %v68
  %v280 = vpop.permute.xlu0 %279
  %283 = vset.pattern.permute.xlu0 0
  %284 = vperm.xlu0 %283, %v69
  %v285 = vpop.permute.xlu0 %284
  %288 = vset.pattern.permute.xlu0 0
  %289 = vperm.xlu0 %288, %v70
  %v290 = vpop.permute.xlu0 %289
  %293 = vset.pattern.permute.xlu0 0
  %294 = vperm.xlu0 %293, %v71
  %v295 = vpop.permute.xlu0 %294
  %298 = vset.pattern.permute.xlu0 0
  %299 = vperm.xlu0 %298, %v72
  %v300 = vpop.permute.xlu0 %299
  %303 = vset.pattern.permute.xlu0 0
  %304 = vperm.xlu0 %303, %v73
  %v305 = vpop.permute.xlu0 %304
  %308 = vset.pattern.permute.xlu0 0
  %309 = vperm.xlu0 %308, %v74
  %v310 = vpop.permute.xlu0 %309
  %313 = vset.pattern.permute.xlu0 0
  %314 = vperm.xlu0 %313, %v75
  %v315 = vpop.permute.xlu0 %314
  %318 = vset.pattern.permute.xlu0 0
  %319 = vperm.xlu0 %318, %v76
  %v320 = vpop.permute.xlu0 %319
  %323 = vset.pattern.permute.xlu0 0
  %324 = vperm.xlu0 %323, %v77
  %v325 = vpop.permute.xlu0 %324
  %328 = vset.pattern.permute.xlu0 0
  %329 = vperm.xlu0 %328, %v78
  %v330 = vpop.permute.xlu0 %329
  %333 = vset.pattern.permute.xlu0 0
  %334 = vperm.xlu0 %333, %v79
  %v335 = vpop.permute.xlu0 %334
  %338 = vset.pattern.permute.xlu0 0
  %339 = vperm.xlu0 %338, %v80
  %v340 = vpop.permute.xlu0 %339
  %343 = vset.pattern.permute.xlu0 0
  %344 = vperm.xlu0 %343, %v81
  %v345 = vpop.permute.xlu0 %344
  %348 = vset.pattern.permute.xlu0 0
  %349 = vperm.xlu0 %348, %v82
  %v350 = vpop.permute.xlu0 %349
  %353 = vset.pattern.permute.xlu0 0
  %354 = vperm.xlu0 %353, %v83
  %v355 = vpop.permute.xlu0 %354
  %358 = vset.pattern.permute.xlu0 0
  %359 = vperm.xlu0 %358, %v84
  %v360 = vpop.permute.xlu0 %359
  %363 = vset.pattern.permute.xlu0 0
  %364 = vperm.xlu0 %363, %v85
  %v365 = vpop.permute.xlu0 %364
  %368 = vset.pattern.permute.xlu0 0
  %369 = vperm.xlu0 %368, %v86
  %v370 = vpop.permute.xlu0 %369
  %373 = vset.pattern.permute.xlu0 0
  %374 = vperm.xlu0 %373, %v87
  %v375 = vpop.permute.xlu0 %374
  %378 = vset.pattern.permute.xlu0 0
  %379 = vperm.xlu0 %378, %v88
  %v380 = vpop.permute.xlu0 %379
  %383 = vset.pattern.permute.xlu0 0
  %384 = vperm.xlu0 %383, %v89
  %v385 = vpop.permute.xlu0 %384
  %388 = vset.pattern.permute.xlu0 0
  %389 = vperm.xlu0 %388, %v90
  %v390 = vpop.permute.xlu0 %389
  %393 = vset.pattern.permute.xlu0 0
  %394 = vperm.xlu0 %393, %v91
  %v395 = vpop.permute.xlu0 %394
  %398 = vset.pattern.permute.xlu0 0
  %399 = vperm.xlu0 %398, %v92
  %v400 = vpop.permute.xlu0 %399
  %403 = vset.pattern.permute.xlu0 0
  %404 = vperm.xlu0 %403, %v93
  %v405 = vpop.permute.xlu0 %404
  %408 = vset.pattern.permute.xlu0 0
  %409 = vperm.xlu0 %408, %v94
  %v410 = vpop.permute.xlu0 %409
  %413 = vset.pattern.permute.xlu0 0
  %414 = vperm.xlu0 %413, %v95
  %v415 = vpop.permute.xlu0 %414
  %v418 = vlaneseq
  %v419 = vshrl.u32 %v418, 7
  %v420 = vsub.s32 0, %v419
  %v421 = vrot.slane %v96, %v420
  %v423 = vmul.f32 %v100, %v421
  %v424 = vmul.f32 %v105, %v421
  %v425 = vmul.f32 %v110, %v421
  %v426 = vmul.f32 %v115, %v421
  %v427 = vmul.f32 %v120, %v421
  %v428 = vmul.f32 %v125, %v421
  %v429 = vmul.f32 %v130, %v421
  %v430 = vmul.f32 %v135, %v421
  %v431 = vmul.f32 %v140, %v421
  %v432 = vmul.f32 %v145, %v421
  %v433 = vmul.f32 %v150, %v421
  %v434 = vmul.f32 %v155, %v421
  %v435 = vmul.f32 %v160, %v421
  %v436 = vmul.f32 %v165, %v421
  %v437 = vmul.f32 %v170, %v421
  %v438 = vmul.f32 %v175, %v421
  %v439 = vmul.f32 %v180, %v421
  %v440 = vmul.f32 %v185, %v421
  %v441 = vmul.f32 %v190, %v421
  %v442 = vmul.f32 %v195, %v421
  %v443 = vmul.f32 %v200, %v421
  %v444 = vmul.f32 %v205, %v421
  %v445 = vmul.f32 %v210, %v421
  %v446 = vmul.f32 %v215, %v421
  %v447 = vmul.f32 %v220, %v421
  %v448 = vmul.f32 %v225, %v421
  %v449 = vmul.f32 %v230, %v421
  %v450 = vmul.f32 %v235, %v421
  %v451 = vmul.f32 %v240, %v421
  %v452 = vmul.f32 %v245, %v421
  %v453 = vmul.f32 %v250, %v421
  %v454 = vmul.f32 %v255, %v421
  %v455 = vmul.f32 %v260, %v421
  %v456 = vmul.f32 %v265, %v421
  %v457 = vmul.f32 %v270, %v421
  %v458 = vmul.f32 %v275, %v421
  %v459 = vmul.f32 %v280, %v421
  %v460 = vmul.f32 %v285, %v421
  %v461 = vmul.f32 %v290, %v421
  %v462 = vmul.f32 %v295, %v421
  %v463 = vmul.f32 %v300, %v421
  %v464 = vmul.f32 %v305, %v421
  %v465 = vmul.f32 %v310, %v421
  %v466 = vmul.f32 %v315, %v421
  %v467 = vmul.f32 %v320, %v421
  %v468 = vmul.f32 %v325, %v421
  %v469 = vmul.f32 %v330, %v421
  %v470 = vmul.f32 %v335, %v421
  %v471 = vmul.f32 %v340, %v421
  %v472 = vmul.f32 %v345, %v421
  %v473 = vmul.f32 %v350, %v421
  %v474 = vmul.f32 %v355, %v421
  %v475 = vmul.f32 %v360, %v421
  %v476 = vmul.f32 %v365, %v421
  %v477 = vmul.f32 %v370, %v421
  %v478 = vmul.f32 %v375, %v421
  %v479 = vmul.f32 %v380, %v421
  %v480 = vmul.f32 %v385, %v421
  %v481 = vmul.f32 %v390, %v421
  %v482 = vmul.f32 %v395, %v421
  %v483 = vmul.f32 %v400, %v421
  %v484 = vmul.f32 %v405, %v421
  %v485 = vmul.f32 %v410, %v421
  %v486 = vmul.f32 %v415, %v421
  %v487 = vld [vmem:[%s4] sm:$0x1]
  %v489 = vlaneseq
  %v490 = vshrl.u32 %v489, 7
  %v491 = vsub.s32 0, %v490
  %v492 = vrot.slane %v487, %v491
  %v494 = vadd.f32 %v423, %v492
  %v495 = vadd.f32 %v424, %v492
  %v496 = vadd.f32 %v425, %v492
  %v497 = vadd.f32 %v426, %v492
  %v498 = vadd.f32 %v427, %v492
  %v499 = vadd.f32 %v428, %v492
  %v500 = vadd.f32 %v429, %v492
  %v501 = vadd.f32 %v430, %v492
  %v502 = vadd.f32 %v431, %v492
  %v503 = vadd.f32 %v432, %v492
  %v504 = vadd.f32 %v433, %v492
  %v505 = vadd.f32 %v434, %v492
  %v506 = vadd.f32 %v435, %v492
  %v507 = vadd.f32 %v436, %v492
  %v508 = vadd.f32 %v437, %v492
  %v509 = vadd.f32 %v438, %v492
  %v510 = vadd.f32 %v439, %v492
  %v511 = vadd.f32 %v440, %v492
  %v512 = vadd.f32 %v441, %v492
  %v513 = vadd.f32 %v442, %v492
  %v514 = vadd.f32 %v443, %v492
  %v515 = vadd.f32 %v444, %v492
  %v516 = vadd.f32 %v445, %v492
  %v517 = vadd.f32 %v446, %v492
  %v518 = vadd.f32 %v447, %v492
  %v519 = vadd.f32 %v448, %v492
  %v520 = vadd.f32 %v449, %v492
  %v521 = vadd.f32 %v450, %v492
  %v522 = vadd.f32 %v451, %v492
  %v523 = vadd.f32 %v452, %v492
  %v524 = vadd.f32 %v453, %v492
  %v525 = vadd.f32 %v454, %v492
  %v526 = vadd.f32 %v455, %v492
  %v527 = vadd.f32 %v456, %v492
  %v528 = vadd.f32 %v457, %v492
  %v529 = vadd.f32 %v458, %v492
  %v530 = vadd.f32 %v459, %v492
  %v531 = vadd.f32 %v460, %v492
  %v532 = vadd.f32 %v461, %v492
  %v533 = vadd.f32 %v462, %v492
  %v534 = vadd.f32 %v463, %v492
  %v535 = vadd.f32 %v464, %v492
  %v536 = vadd.f32 %v465, %v492
  %v537 = vadd.f32 %v466, %v492
  %v538 = vadd.f32 %v467, %v492
  %v539 = vadd.f32 %v468, %v492
  %v540 = vadd.f32 %v469, %v492
  %v541 = vadd.f32 %v470, %v492
  %v542 = vadd.f32 %v471, %v492
  %v543 = vadd.f32 %v472, %v492
  %v544 = vadd.f32 %v473, %v492
  %v545 = vadd.f32 %v474, %v492
  %v546 = vadd.f32 %v475, %v492
  %v547 = vadd.f32 %v476, %v492
  %v548 = vadd.f32 %v477, %v492
  %v549 = vadd.f32 %v478, %v492
  %v550 = vadd.f32 %v479, %v492
  %v551 = vadd.f32 %v480, %v492
  %v552 = vadd.f32 %v481, %v492
  %v553 = vadd.f32 %v482, %v492
  %v554 = vadd.f32 %v483, %v492
  %v555 = vadd.f32 %v484, %v492
  %v556 = vadd.f32 %v485, %v492
  %v557 = vadd.f32 %v486, %v492
  %v558 = vld [vmem:[%s0] sm:$0xff]
  %v559 = vld [vmem:[%s0 + $0x8] sm:$0xff]
  %v560 = vld [vmem:[%s0 + $0x10] sm:$0xff]
  %v561 = vld [vmem:[%s0 + $0x18] sm:$0xff]
  %v562 = vld [vmem:[%s0 + $0x20] sm:$0xff]
  %v563 = vld [vmem:[%s0 + $0x28] sm:$0xff]
  %v564 = vld [vmem:[%s0 + $0x30] sm:$0xff]
  %v565 = vld [vmem:[%s0 + $0x38] sm:$0xff]
  %v566 = vld [vmem:[%s0 + $0x40] sm:$0xff]
  %v567 = vld [vmem:[%s0 + $0x48] sm:$0xff]
  %v568 = vld [vmem:[%s0 + $0x50] sm:$0xff]
  %v569 = vld [vmem:[%s0 + $0x58] sm:$0xff]
  %v570 = vld [vmem:[%s0 + $0x60] sm:$0xff]
  %v571 = vld [vmem:[%s0 + $0x68] sm:$0xff]
  %v572 = vld [vmem:[%s0 + $0x70] sm:$0xff]
  %v573 = vld [vmem:[%s0 + $0x78] sm:$0xff]
  %v574 = vld [vmem:[%s0 + $0x80] sm:$0xff]
  %v575 = vld [vmem:[%s0 + $0x88] sm:$0xff]
  %v576 = vld [vmem:[%s0 + $0x90] sm:$0xff]
  %v577 = vld [vmem:[%s0 + $0x98] sm:$0xff]
  %v578 = vld [vmem:[%s0 + $0xa0] sm:$0xff]
  %v579 = vld [vmem:[%s0 + $0xa8] sm:$0xff]
  %v580 = vld [vmem:[%s0 + $0xb0] sm:$0xff]
  %v581 = vld [vmem:[%s0 + $0xb8] sm:$0xff]
  %v582 = vld [vmem:[%s0 + $0xc0] sm:$0xff]
  %v583 = vld [vmem:[%s0 + $0xc8] sm:$0xff]
  %v584 = vld [vmem:[%s0 + $0xd0] sm:$0xff]
  %v585 = vld [vmem:[%s0 + $0xd8] sm:$0xff]
  %v586 = vld [vmem:[%s0 + $0xe0] sm:$0xff]
  %v587 = vld [vmem:[%s0 + $0xe8] sm:$0xff]
  %v588 = vld [vmem:[%s0 + $0xf0] sm:$0xff]
  %v589 = vld [vmem:[%s0 + $0xf8] sm:$0xff]
  %v590 = vld [vmem:[%s0 + $0x100] sm:$0xff]
  %v591 = vld [vmem:[%s0 + $0x108] sm:$0xff]
  %v592 = vld [vmem:[%s0 + $0x110] sm:$0xff]
  %v593 = vld [vmem:[%s0 + $0x118] sm:$0xff]
  %v594 = vld [vmem:[%s0 + $0x120] sm:$0xff]
  %v595 = vld [vmem:[%s0 + $0x128] sm:$0xff]
  %v596 = vld [vmem:[%s0 + $0x130] sm:$0xff]
  %v597 = vld [vmem:[%s0 + $0x138] sm:$0xff]
  %v598 = vld [vmem:[%s0 + $0x140] sm:$0xff]
  %v599 = vld [vmem:[%s0 + $0x148] sm:$0xff]
  %v600 = vld [vmem:[%s0 + $0x150] sm:$0xff]
  %v601 = vld [vmem:[%s0 + $0x158] sm:$0xff]
  %v602 = vld [vmem:[%s0 + $0x160] sm:$0xff]
  %v603 = vld [vmem:[%s0 + $0x168] sm:$0xff]
  %v604 = vld [vmem:[%s0 + $0x170] sm:$0xff]
  %v605 = vld [vmem:[%s0 + $0x178] sm:$0xff]
  %v606 = vld [vmem:[%s0 + $0x180] sm:$0xff]
  %v607 = vld [vmem:[%s0 + $0x188] sm:$0xff]
  %v608 = vld [vmem:[%s0 + $0x190] sm:$0xff]
  %v609 = vld [vmem:[%s0 + $0x198] sm:$0xff]
  %v610 = vld [vmem:[%s0 + $0x1a0] sm:$0xff]
  %v611 = vld [vmem:[%s0 + $0x1a8] sm:$0xff]
  %v612 = vld [vmem:[%s0 + $0x1b0] sm:$0xff]
  %v613 = vld [vmem:[%s0 + $0x1b8] sm:$0xff]
  %v614 = vld [vmem:[%s0 + $0x1c0] sm:$0xff]
  %v615 = vld [vmem:[%s0 + $0x1c8] sm:$0xff]
  %v616 = vld [vmem:[%s0 + $0x1d0] sm:$0xff]
  %v617 = vld [vmem:[%s0 + $0x1d8] sm:$0xff]
  %v618 = vld [vmem:[%s0 + $0x1e0] sm:$0xff]
  %v619 = vld [vmem:[%s0 + $0x1e8] sm:$0xff]
  %v620 = vld [vmem:[%s0 + $0x1f0] sm:$0xff]
  %v621 = vld [vmem:[%s0 + $0x1f8] sm:$0xff]
  %v622 = vld [vmem:[%s2] sm:$0xf]
  %624 = vset.pattern.permute.xlu0 0
  %625 = vperm.xlu0 %624, %v558
  %v626 = vpop.permute.xlu0 %625
  %629 = vset.pattern.permute.xlu0 0
  %630 = vperm.xlu0 %629, %v559
  %v631 = vpop.permute.xlu0 %630
  %634 = vset.pattern.permute.xlu0 0
  %635 = vperm.xlu0 %634, %v560
  %v636 = vpop.permute.xlu0 %635
  %639 = vset.pattern.permute.xlu0 0
  %640 = vperm.xlu0 %639, %v561
  %v641 = vpop.permute.xlu0 %640
  %644 = vset.pattern.permute.xlu0 0
  %645 = vperm.xlu0 %644, %v562
  %v646 = vpop.permute.xlu0 %645
  %649 = vset.pattern.permute.xlu0 0
  %650 = vperm.xlu0 %649, %v563
  %v651 = vpop.permute.xlu0 %650
  %654 = vset.pattern.permute.xlu0 0
  %655 = vperm.xlu0 %654, %v564
  %v656 = vpop.permute.xlu0 %655
  %659 = vset.pattern.permute.xlu0 0
  %660 = vperm.xlu0 %659, %v565
  %v661 = vpop.permute.xlu0 %660
  %664 = vset.pattern.permute.xlu0 0
  %665 = vperm.xlu0 %664, %v566
  %v666 = vpop.permute.xlu0 %665
  %669 = vset.pattern.permute.xlu0 0
  %670 = vperm.xlu0 %669, %v567
  %v671 = vpop.permute.xlu0 %670
  %674 = vset.pattern.permute.xlu0 0
  %675 = vperm.xlu0 %674, %v568
  %v676 = vpop.permute.xlu0 %675
  %679 = vset.pattern.permute.xlu0 0
  %680 = vperm.xlu0 %679, %v569
  %v681 = vpop.permute.xlu0 %680
  %684 = vset.pattern.permute.xlu0 0
  %685 = vperm.xlu0 %684, %v570
  %v686 = vpop.permute.xlu0 %685
  %689 = vset.pattern.permute.xlu0 0
  %690 = vperm.xlu0 %689, %v571
  %v691 = vpop.permute.xlu0 %690
  %694 = vset.pattern.permute.xlu0 0
  %695 = vperm.xlu0 %694, %v572
  %v696 = vpop.permute.xlu0 %695
  %699 = vset.pattern.permute.xlu0 0
  %700 = vperm.xlu0 %699, %v573
  %v701 = vpop.permute.xlu0 %700
  %704 = vset.pattern.permute.xlu0 0
  %705 = vperm.xlu0 %704, %v574
  %v706 = vpop.permute.xlu0 %705
  %709 = vset.pattern.permute.xlu0 0
  %710 = vperm.xlu0 %709, %v575
  %v711 = vpop.permute.xlu0 %710
  %714 = vset.pattern.permute.xlu0 0
  %715 = vperm.xlu0 %714, %v576
  %v716 = vpop.permute.xlu0 %715
  %719 = vset.pattern.permute.xlu0 0
  %720 = vperm.xlu0 %719, %v577
  %v721 = vpop.permute.xlu0 %720
  %724 = vset.pattern.permute.xlu0 0
  %725 = vperm.xlu0 %724, %v578
  %v726 = vpop.permute.xlu0 %725
  %729 = vset.pattern.permute.xlu0 0
  %730 = vperm.xlu0 %729, %v579
  %v731 = vpop.permute.xlu0 %730
  %734 = vset.pattern.permute.xlu0 0
  %735 = vperm.xlu0 %734, %v580
  %v736 = vpop.permute.xlu0 %735
  %739 = vset.pattern.permute.xlu0 0
  %740 = vperm.xlu0 %739, %v581
  %v741 = vpop.permute.xlu0 %740
  %744 = vset.pattern.permute.xlu0 0
  %745 = vperm.xlu0 %744, %v582
  %v746 = vpop.permute.xlu0 %745
  %749 = vset.pattern.permute.xlu0 0
  %750 = vperm.xlu0 %749, %v583
  %v751 = vpop.permute.xlu0 %750
  %754 = vset.pattern.permute.xlu0 0
  %755 = vperm.xlu0 %754, %v584
  %v756 = vpop.permute.xlu0 %755
  %759 = vset.pattern.permute.xlu0 0
  %760 = vperm.xlu0 %759, %v585
  %v761 = vpop.permute.xlu0 %760
  %764 = vset.pattern.permute.xlu0 0
  %765 = vperm.xlu0 %764, %v586
  %v766 = vpop.permute.xlu0 %765
  %769 = vset.pattern.permute.xlu0 0
  %770 = vperm.xlu0 %769, %v587
  %v771 = vpop.permute.xlu0 %770
  %774 = vset.pattern.permute.xlu0 0
  %775 = vperm.xlu0 %774, %v588
  %v776 = vpop.permute.xlu0 %775
  %779 = vset.pattern.permute.xlu0 0
  %780 = vperm.xlu0 %779, %v589
  %v781 = vpop.permute.xlu0 %780
  %784 = vset.pattern.permute.xlu0 0
  %785 = vperm.xlu0 %784, %v590
  %v786 = vpop.permute.xlu0 %785
  %789 = vset.pattern.permute.xlu0 0
  %790 = vperm.xlu0 %789, %v591
  %v791 = vpop.permute.xlu0 %790
  %794 = vset.pattern.permute.xlu0 0
  %795 = vperm.xlu0 %794, %v592
  %v796 = vpop.permute.xlu0 %795
  %799 = vset.pattern.permute.xlu0 0
  %800 = vperm.xlu0 %799, %v593
  %v801 = vpop.permute.xlu0 %800
  %804 = vset.pattern.permute.xlu0 0
  %805 = vperm.xlu0 %804, %v594
  %v806 = vpop.permute.xlu0 %805
  %809 = vset.pattern.permute.xlu0 0
  %810 = vperm.xlu0 %809, %v595
  %v811 = vpop.permute.xlu0 %810
  %814 = vset.pattern.permute.xlu0 0
  %815 = vperm.xlu0 %814, %v596
  %v816 = vpop.permute.xlu0 %815
  %819 = vset.pattern.permute.xlu0 0
  %820 = vperm.xlu0 %819, %v597
  %v821 = vpop.permute.xlu0 %820
  %824 = vset.pattern.permute.xlu0 0
  %825 = vperm.xlu0 %824, %v598
  %v826 = vpop.permute.xlu0 %825
  %829 = vset.pattern.permute.xlu0 0
  %830 = vperm.xlu0 %829, %v599
  %v831 = vpop.permute.xlu0 %830
  %834 = vset.pattern.permute.xlu0 0
  %835 = vperm.xlu0 %834, %v600
  %v836 = vpop.permute.xlu0 %835
  %839 = vset.pattern.permute.xlu0 0
  %840 = vperm.xlu0 %839, %v601
  %v841 = vpop.permute.xlu0 %840
  %844 = vset.pattern.permute.xlu0 0
  %845 = vperm.xlu0 %844, %v602
  %v846 = vpop.permute.xlu0 %845
  %849 = vset.pattern.permute.xlu0 0
  %850 = vperm.xlu0 %849, %v603
  %v851 = vpop.permute.xlu0 %850
  %854 = vset.pattern.permute.xlu0 0
  %855 = vperm.xlu0 %854, %v604
  %v856 = vpop.permute.xlu0 %855
  %859 = vset.pattern.permute.xlu0 0
  %860 = vperm.xlu0 %859, %v605
  %v861 = vpop.permute.xlu0 %860
  %864 = vset.pattern.permute.xlu0 0
  %865 = vperm.xlu0 %864, %v606
  %v866 = vpop.permute.xlu0 %865
  %869 = vset.pattern.permute.xlu0 0
  %870 = vperm.xlu0 %869, %v607
  %v871 = vpop.permute.xlu0 %870
  %874 = vset.pattern.permute.xlu0 0
  %875 = vperm.xlu0 %874, %v608
  %v876 = vpop.permute.xlu0 %875
  %879 = vset.pattern.permute.xlu0 0
  %880 = vperm.xlu0 %879, %v609
  %v881 = vpop.permute.xlu0 %880
  %884 = vset.pattern.permute.xlu0 0
  %885 = vperm.xlu0 %884, %v610
  %v886 = vpop.permute.xlu0 %885
  %889 = vset.pattern.permute.xlu0 0
  %890 = vperm.xlu0 %889, %v611
  %v891 = vpop.permute.xlu0 %890
  %894 = vset.pattern.permute.xlu0 0
  %895 = vperm.xlu0 %894, %v612
  %v896 = vpop.permute.xlu0 %895
  %899 = vset.pattern.permute.xlu0 0
  %900 = vperm.xlu0 %899, %v613
  %v901 = vpop.permute.xlu0 %900
  %904 = vset.pattern.permute.xlu0 0
  %905 = vperm.xlu0 %904, %v614
  %v906 = vpop.permute.xlu0 %905
  %909 = vset.pattern.permute.xlu0 0
  %910 = vperm.xlu0 %909, %v615
  %v911 = vpop.permute.xlu0 %910
  %914 = vset.pattern.permute.xlu0 0
  %915 = vperm.xlu0 %914, %v616
  %v916 = vpop.permute.xlu0 %915
  %919 = vset.pattern.permute.xlu0 0
  %920 = vperm.xlu0 %919, %v617
  %v921 = vpop.permute.xlu0 %920
  %924 = vset.pattern.permute.xlu0 0
  %925 = vperm.xlu0 %924, %v618
  %v926 = vpop.permute.xlu0 %925
  %929 = vset.pattern.permute.xlu0 0
  %930 = vperm.xlu0 %929, %v619
  %v931 = vpop.permute.xlu0 %930
  %934 = vset.pattern.permute.xlu0 0
  %935 = vperm.xlu0 %934, %v620
  %v936 = vpop.permute.xlu0 %935
  %939 = vset.pattern.permute.xlu0 0
  %940 = vperm.xlu0 %939, %v621
  %v941 = vpop.permute.xlu0 %940
  %v943 = vlaneseq
  %v944 = vshrl.u32 %v943, 7
  %v945 = vsub.s32 0, %v944
  %v946 = vrot.slane %v622, %v945
  %v947 = vmul.f32 %v626, %v946
  %v948 = vmul.f32 %v631, %v946
  %v949 = vmul.f32 %v636, %v946
  %v950 = vmul.f32 %v641, %v946
  %v951 = vmul.f32 %v646, %v946
  %v952 = vmul.f32 %v651, %v946
  %v953 = vmul.f32 %v656, %v946
  %v954 = vmul.f32 %v661, %v946
  %v955 = vmul.f32 %v666, %v946
  %v956 = vmul.f32 %v671, %v946
  %v957 = vmul.f32 %v676, %v946
  %v958 = vmul.f32 %v681, %v946
  %v959 = vmul.f32 %v686, %v946
  %v960 = vmul.f32 %v691, %v946
  %v961 = vmul.f32 %v696, %v946
  %v962 = vmul.f32 %v701, %v946
  %v963 = vmul.f32 %v706, %v946
  %v964 = vmul.f32 %v711, %v946
  %v965 = vmul.f32 %v716, %v946
  %v966 = vmul.f32 %v721, %v946
  %v967 = vmul.f32 %v726, %v946
  %v968 = vmul.f32 %v731, %v946
  %v969 = vmul.f32 %v736, %v946
  %v970 = vmul.f32 %v741, %v946
  %v971 = vmul.f32 %v746, %v946
  %v972 = vmul.f32 %v751, %v946
  %v973 = vmul.f32 %v756, %v946
  %v974 = vmul.f32 %v761, %v946
  %v975 = vmul.f32 %v766, %v946
  %v976 = vmul.f32 %v771, %v946
  %v977 = vmul.f32 %v776, %v946
  %v978 = vmul.f32 %v781, %v946
  %v979 = vmul.f32 %v786, %v946
  %v980 = vmul.f32 %v791, %v946
  %v981 = vmul.f32 %v796, %v946
  %v982 = vmul.f32 %v801, %v946
  %v983 = vmul.f32 %v806, %v946
  %v984 = vmul.f32 %v811, %v946
  %v985 = vmul.f32 %v816, %v946
  %v986 = vmul.f32 %v821, %v946
  %v987 = vmul.f32 %v826, %v946
  %v988 = vmul.f32 %v831, %v946
  %v989 = vmul.f32 %v836, %v946
  %v990 = vmul.f32 %v841, %v946
  %v991 = vmul.f32 %v846, %v946
  %v992 = vmul.f32 %v851, %v946
  %v993 = vmul.f32 %v856, %v946
  %v994 = vmul.f32 %v861, %v946
  %v995 = vmul.f32 %v866, %v946
  %v996 = vmul.f32 %v871, %v946
  %v997 = vmul.f32 %v876, %v946
  %v998 = vmul.f32 %v881, %v946
  %v999 = vmul.f32 %v886, %v946
  %v1000 = vmul.f32 %v891, %v946
  %v1001 = vmul.f32 %v896, %v946
  %v1002 = vmul.f32 %v901, %v946
  %v1003 = vmul.f32 %v906, %v946
  %v1004 = vmul.f32 %v911, %v946
  %v1005 = vmul.f32 %v916, %v946
  %v1006 = vmul.f32 %v921, %v946
  %v1007 = vmul.f32 %v926, %v946
  %v1008 = vmul.f32 %v931, %v946
  %v1009 = vmul.f32 %v936, %v946
  %v1010 = vmul.f32 %v941, %v946
  %v1011 = vadd.f32 %v494, %v947
  %v1012 = vadd.f32 %v495, %v948
  %v1013 = vadd.f32 %v496, %v949
  %v1014 = vadd.f32 %v497, %v950
  %v1015 = vadd.f32 %v498, %v951
  %v1016 = vadd.f32 %v499, %v952
  %v1017 = vadd.f32 %v500, %v953
  %v1018 = vadd.f32 %v501, %v954
  %v1019 = vadd.f32 %v502, %v955
  %v1020 = vadd.f32 %v503, %v956
  %v1021 = vadd.f32 %v504, %v957
  %v1022 = vadd.f32 %v505, %v958
  %v1023 = vadd.f32 %v506, %v959
  %v1024 = vadd.f32 %v507, %v960
  %v1025 = vadd.f32 %v508, %v961
  %v1026 = vadd.f32 %v509, %v962
  %v1027 = vadd.f32 %v510, %v963
  %v1028 = vadd.f32 %v511, %v964
  %v1029 = vadd.f32 %v512, %v965
  %v1030 = vadd.f32 %v513, %v966
  %v1031 = vadd.f32 %v514, %v967
  %v1032 = vadd.f32 %v515, %v968
  %v1033 = vadd.f32 %v516, %v969
  %v1034 = vadd.f32 %v517, %v970
  %v1035 = vadd.f32 %v518, %v971
  %v1036 = vadd.f32 %v519, %v972
  %v1037 = vadd.f32 %v520, %v973
  %v1038 = vadd.f32 %v521, %v974
  %v1039 = vadd.f32 %v522, %v975
  %v1040 = vadd.f32 %v523, %v976
  %v1041 = vadd.f32 %v524, %v977
  %v1042 = vadd.f32 %v525, %v978
  %v1043 = vadd.f32 %v526, %v979
  %v1044 = vadd.f32 %v527, %v980
  %v1045 = vadd.f32 %v528, %v981
  %v1046 = vadd.f32 %v529, %v982
  %v1047 = vadd.f32 %v530, %v983
  %v1048 = vadd.f32 %v531, %v984
  %v1049 = vadd.f32 %v532, %v985
  %v1050 = vadd.f32 %v533, %v986
  %v1051 = vadd.f32 %v534, %v987
  %v1052 = vadd.f32 %v535, %v988
  %v1053 = vadd.f32 %v536, %v989
  %v1054 = vadd.f32 %v537, %v990
  %v1055 = vadd.f32 %v538, %v991
  %v1056 = vadd.f32 %v539, %v992
  %v1057 = vadd.f32 %v540, %v993
  %v1058 = vadd.f32 %v541, %v994
  %v1059 = vadd.f32 %v542, %v995
  %v1060 = vadd.f32 %v543, %v996
  %v1061 = vadd.f32 %v544, %v997
  %v1062 = vadd.f32 %v545, %v998
  %v1063 = vadd.f32 %v546, %v999
  %v1064 = vadd.f32 %v547, %v1000
  %v1065 = vadd.f32 %v548, %v1001
  %v1066 = vadd.f32 %v549, %v1002
  %v1067 = vadd.f32 %v550, %v1003
  %v1068 = vadd.f32 %v551, %v1004
  %v1069 = vadd.f32 %v552, %v1005
  %v1070 = vadd.f32 %v553, %v1006
  %v1071 = vadd.f32 %v554, %v1007
  %v1072 = vadd.f32 %v555, %v1008
  %v1073 = vadd.f32 %v556, %v1009
  %v1074 = vadd.f32 %v557, %v1010
  %1075 = vset.pattern.permute.xlu0 1
  %1076 = vperm.xlu0 %1075, %v558
  %v1077 = vpop.permute.xlu0 %1076
  %1079 = vset.pattern.permute.xlu0 1
  %1080 = vperm.xlu0 %1079, %v559
  %v1081 = vpop.permute.xlu0 %1080
  %1083 = vset.pattern.permute.xlu0 1
  %1084 = vperm.xlu0 %1083, %v560
  %v1085 = vpop.permute.xlu0 %1084
  %1087 = vset.pattern.permute.xlu0 1
  %1088 = vperm.xlu0 %1087, %v561
  %v1089 = vpop.permute.xlu0 %1088
  %1091 = vset.pattern.permute.xlu0 1
  %1092 = vperm.xlu0 %1091, %v562
  %v1093 = vpop.permute.xlu0 %1092
  %1095 = vset.pattern.permute.xlu0 1
  %1096 = vperm.xlu0 %1095, %v563
  %v1097 = vpop.permute.xlu0 %1096
  %1099 = vset.pattern.permute.xlu0 1
  %1100 = vperm.xlu0 %1099, %v564
  %v1101 = vpop.permute.xlu0 %1100
  %1103 = vset.pattern.permute.xlu0 1
  %1104 = vperm.xlu0 %1103, %v565
  %v1105 = vpop.permute.xlu0 %1104
  %1107 = vset.pattern.permute.xlu0 1
  %1108 = vperm.xlu0 %1107, %v566
  %v1109 = vpop.permute.xlu0 %1108
  %1111 = vset.pattern.permute.xlu0 1
  %1112 = vperm.xlu0 %1111, %v567
  %v1113 = vpop.permute.xlu0 %1112
  %1115 = vset.pattern.permute.xlu0 1
  %1116 = vperm.xlu0 %1115, %v568
  %v1117 = vpop.permute.xlu0 %1116
  %1119 = vset.pattern.permute.xlu0 1
  %1120 = vperm.xlu0 %1119, %v569
  %v1121 = vpop.permute.xlu0 %1120
  %1123 = vset.pattern.permute.xlu0 1
  %1124 = vperm.xlu0 %1123, %v570
  %v1125 = vpop.permute.xlu0 %1124
  %1127 = vset.pattern.permute.xlu0 1
  %1128 = vperm.xlu0 %1127, %v571
  %v1129 = vpop.permute.xlu0 %1128
  %1131 = vset.pattern.permute.xlu0 1
  %1132 = vperm.xlu0 %1131, %v572
  %v1133 = vpop.permute.xlu0 %1132
  %1135 = vset.pattern.permute.xlu0 1
  %1136 = vperm.xlu0 %1135, %v573
  %v1137 = vpop.permute.xlu0 %1136
  %1139 = vset.pattern.permute.xlu0 1
  %1140 = vperm.xlu0 %1139, %v574
  %v1141 = vpop.permute.xlu0 %1140
  %1143 = vset.pattern.permute.xlu0 1
  %1144 = vperm.xlu0 %1143, %v575
  %v1145 = vpop.permute.xlu0 %1144
  %1147 = vset.pattern.permute.xlu0 1
  %1148 = vperm.xlu0 %1147, %v576
  %v1149 = vpop.permute.xlu0 %1148
  %1151 = vset.pattern.permute.xlu0 1
  %1152 = vperm.xlu0 %1151, %v577
  %v1153 = vpop.permute.xlu0 %1152
  %1155 = vset.pattern.permute.xlu0 1
  %1156 = vperm.xlu0 %1155, %v578
  %v1157 = vpop.permute.xlu0 %1156
  %1159 = vset.pattern.permute.xlu0 1
  %1160 = vperm.xlu0 %1159, %v579
  %v1161 = vpop.permute.xlu0 %1160
  %1163 = vset.pattern.permute.xlu0 1
  %1164 = vperm.xlu0 %1163, %v580
  %v1165 = vpop.permute.xlu0 %1164
  %1167 = vset.pattern.permute.xlu0 1
  %1168 = vperm.xlu0 %1167, %v581
  %v1169 = vpop.permute.xlu0 %1168
  %1171 = vset.pattern.permute.xlu0 1
  %1172 = vperm.xlu0 %1171, %v582
  %v1173 = vpop.permute.xlu0 %1172
  %1175 = vset.pattern.permute.xlu0 1
  %1176 = vperm.xlu0 %1175, %v583
  %v1177 = vpop.permute.xlu0 %1176
  %1179 = vset.pattern.permute.xlu0 1
  %1180 = vperm.xlu0 %1179, %v584
  %v1181 = vpop.permute.xlu0 %1180
  %1183 = vset.pattern.permute.xlu0 1
  %1184 = vperm.xlu0 %1183, %v585
  %v1185 = vpop.permute.xlu0 %1184
  %1187 = vset.pattern.permute.xlu0 1
  %1188 = vperm.xlu0 %1187, %v586
  %v1189 = vpop.permute.xlu0 %1188
  %1191 = vset.pattern.permute.xlu0 1
  %1192 = vperm.xlu0 %1191, %v587
  %v1193 = vpop.permute.xlu0 %1192
  %1195 = vset.pattern.permute.xlu0 1
  %1196 = vperm.xlu0 %1195, %v588
  %v1197 = vpop.permute.xlu0 %1196
  %1199 = vset.pattern.permute.xlu0 1
  %1200 = vperm.xlu0 %1199, %v589
  %v1201 = vpop.permute.xlu0 %1200
  %1203 = vset.pattern.permute.xlu0 1
  %1204 = vperm.xlu0 %1203, %v590
  %v1205 = vpop.permute.xlu0 %1204
  %1207 = vset.pattern.permute.xlu0 1
  %1208 = vperm.xlu0 %1207, %v591
  %v1209 = vpop.permute.xlu0 %1208
  %1211 = vset.pattern.permute.xlu0 1
  %1212 = vperm.xlu0 %1211, %v592
  %v1213 = vpop.permute.xlu0 %1212
  %1215 = vset.pattern.permute.xlu0 1
  %1216 = vperm.xlu0 %1215, %v593
  %v1217 = vpop.permute.xlu0 %1216
  %1219 = vset.pattern.permute.xlu0 1
  %1220 = vperm.xlu0 %1219, %v594
  %v1221 = vpop.permute.xlu0 %1220
  %1223 = vset.pattern.permute.xlu0 1
  %1224 = vperm.xlu0 %1223, %v595
  %v1225 = vpop.permute.xlu0 %1224
  %1227 = vset.pattern.permute.xlu0 1
  %1228 = vperm.xlu0 %1227, %v596
  %v1229 = vpop.permute.xlu0 %1228
  %1231 = vset.pattern.permute.xlu0 1
  %1232 = vperm.xlu0 %1231, %v597
  %v1233 = vpop.permute.xlu0 %1232
  %1235 = vset.pattern.permute.xlu0 1
  %1236 = vperm.xlu0 %1235, %v598
  %v1237 = vpop.permute.xlu0 %1236
  %1239 = vset.pattern.permute.xlu0 1
  %1240 = vperm.xlu0 %1239, %v599
  %v1241 = vpop.permute.xlu0 %1240
  %1243 = vset.pattern.permute.xlu0 1
  %1244 = vperm.xlu0 %1243, %v600
  %v1245 = vpop.permute.xlu0 %1244
  %1247 = vset.pattern.permute.xlu0 1
  %1248 = vperm.xlu0 %1247, %v601
  %v1249 = vpop.permute.xlu0 %1248
  %1251 = vset.pattern.permute.xlu0 1
  %1252 = vperm.xlu0 %1251, %v602
  %v1253 = vpop.permute.xlu0 %1252
  %1255 = vset.pattern.permute.xlu0 1
  %1256 = vperm.xlu0 %1255, %v603
  %v1257 = vpop.permute.xlu0 %1256
  %1259 = vset.pattern.permute.xlu0 1
  %1260 = vperm.xlu0 %1259, %v604
  %v1261 = vpop.permute.xlu0 %1260
  %1263 = vset.pattern.permute.xlu0 1
  %1264 = vperm.xlu0 %1263, %v605
  %v1265 = vpop.permute.xlu0 %1264
  %1267 = vset.pattern.permute.xlu0 1
  %1268 = vperm.xlu0 %1267, %v606
  %v1269 = vpop.permute.xlu0 %1268
  %1271 = vset.pattern.permute.xlu0 1
  %1272 = vperm.xlu0 %1271, %v607
  %v1273 = vpop.permute.xlu0 %1272
  %1275 = vset.pattern.permute.xlu0 1
  %1276 = vperm.xlu0 %1275, %v608
  %v1277 = vpop.permute.xlu0 %1276
  %1279 = vset.pattern.permute.xlu0 1
  %1280 = vperm.xlu0 %1279, %v609
  %v1281 = vpop.permute.xlu0 %1280
  %1283 = vset.pattern.permute.xlu0 1
  %1284 = vperm.xlu0 %1283, %v610
  %v1285 = vpop.permute.xlu0 %1284
  %1287 = vset.pattern.permute.xlu0 1
  %1288 = vperm.xlu0 %1287, %v611
  %v1289 = vpop.permute.xlu0 %1288
  %1291 = vset.pattern.permute.xlu0 1
  %1292 = vperm.xlu0 %1291, %v612
  %v1293 = vpop.permute.xlu0 %1292
  %1295 = vset.pattern.permute.xlu0 1
  %1296 = vperm.xlu0 %1295, %v613
  %v1297 = vpop.permute.xlu0 %1296
  %1299 = vset.pattern.permute.xlu0 1
  %1300 = vperm.xlu0 %1299, %v614
  %v1301 = vpop.permute.xlu0 %1300
  %1303 = vset.pattern.permute.xlu0 1
  %1304 = vperm.xlu0 %1303, %v615
  %v1305 = vpop.permute.xlu0 %1304
  %1307 = vset.pattern.permute.xlu0 1
  %1308 = vperm.xlu0 %1307, %v616
  %v1309 = vpop.permute.xlu0 %1308
  %1311 = vset.pattern.permute.xlu0 1
  %1312 = vperm.xlu0 %1311, %v617
  %v1313 = vpop.permute.xlu0 %1312
  %1315 = vset.pattern.permute.xlu0 1
  %1316 = vperm.xlu0 %1315, %v618
  %v1317 = vpop.permute.xlu0 %1316
  %1319 = vset.pattern.permute.xlu0 1
  %1320 = vperm.xlu0 %1319, %v619
  %v1321 = vpop.permute.xlu0 %1320
  %1323 = vset.pattern.permute.xlu0 1
  %1324 = vperm.xlu0 %1323, %v620
  %v1325 = vpop.permute.xlu0 %1324
  %1327 = vset.pattern.permute.xlu0 1
  %1328 = vperm.xlu0 %1327, %v621
  %v1329 = vpop.permute.xlu0 %1328
  %v1331 = vlaneseq
  %v1332 = vshrl.u32 %v1331, 7
  %v1333 = vsub.s32 1, %v1332
  %v1334 = vrot.slane %v622, %v1333
  %v1335 = vmul.f32 %v1077, %v1334
  %v1336 = vmul.f32 %v1081, %v1334
  %v1337 = vmul.f32 %v1085, %v1334
  %v1338 = vmul.f32 %v1089, %v1334
  %v1339 = vmul.f32 %v1093, %v1334
  %v1340 = vmul.f32 %v1097, %v1334
  %v1341 = vmul.f32 %v1101, %v1334
  %v1342 = vmul.f32 %v1105, %v1334
  %v1343 = vmul.f32 %v1109, %v1334
  %v1344 = vmul.f32 %v1113, %v1334
  %v1345 = vmul.f32 %v1117, %v1334
  %v1346 = vmul.f32 %v1121, %v1334
  %v1347 = vmul.f32 %v1125, %v1334
  %v1348 = vmul.f32 %v1129, %v1334
  %v1349 = vmul.f32 %v1133, %v1334
  %v1350 = vmul.f32 %v1137, %v1334
  %v1351 = vmul.f32 %v1141, %v1334
  %v1352 = vmul.f32 %v1145, %v1334
  %v1353 = vmul.f32 %v1149, %v1334
  %v1354 = vmul.f32 %v1153, %v1334
  %v1355 = vmul.f32 %v1157, %v1334
  %v1356 = vmul.f32 %v1161, %v1334
  %v1357 = vmul.f32 %v1165, %v1334
  %v1358 = vmul.f32 %v1169, %v1334
  %v1359 = vmul.f32 %v1173, %v1334
  %v1360 = vmul.f32 %v1177, %v1334
  %v1361 = vmul.f32 %v1181, %v1334
  %v1362 = vmul.f32 %v1185, %v1334
  %v1363 = vmul.f32 %v1189, %v1334
  %v1364 = vmul.f32 %v1193, %v1334
  %v1365 = vmul.f32 %v1197, %v1334
  %v1366 = vmul.f32 %v1201, %v1334
  %v1367 = vmul.f32 %v1205, %v1334
  %v1368 = vmul.f32 %v1209, %v1334
  %v1369 = vmul.f32 %v1213, %v1334
  %v1370 = vmul.f32 %v1217, %v1334
  %v1371 = vmul.f32 %v1221, %v1334
  %v1372 = vmul.f32 %v1225, %v1334
  %v1373 = vmul.f32 %v1229, %v1334
  %v1374 = vmul.f32 %v1233, %v1334
  %v1375 = vmul.f32 %v1237, %v1334
  %v1376 = vmul.f32 %v1241, %v1334
  %v1377 = vmul.f32 %v1245, %v1334
  %v1378 = vmul.f32 %v1249, %v1334
  %v1379 = vmul.f32 %v1253, %v1334
  %v1380 = vmul.f32 %v1257, %v1334
  %v1381 = vmul.f32 %v1261, %v1334
  %v1382 = vmul.f32 %v1265, %v1334
  %v1383 = vmul.f32 %v1269, %v1334
  %v1384 = vmul.f32 %v1273, %v1334
  %v1385 = vmul.f32 %v1277, %v1334
  %v1386 = vmul.f32 %v1281, %v1334
  %v1387 = vmul.f32 %v1285, %v1334
  %v1388 = vmul.f32 %v1289, %v1334
  %v1389 = vmul.f32 %v1293, %v1334
  %v1390 = vmul.f32 %v1297, %v1334
  %v1391 = vmul.f32 %v1301, %v1334
  %v1392 = vmul.f32 %v1305, %v1334
  %v1393 = vmul.f32 %v1309, %v1334
  %v1394 = vmul.f32 %v1313, %v1334
  %v1395 = vmul.f32 %v1317, %v1334
  %v1396 = vmul.f32 %v1321, %v1334
  %v1397 = vmul.f32 %v1325, %v1334
  %v1398 = vmul.f32 %v1329, %v1334
  %v1399 = vadd.f32 %v1011, %v1335
  %v1400 = vadd.f32 %v1012, %v1336
  %v1401 = vadd.f32 %v1013, %v1337
  %v1402 = vadd.f32 %v1014, %v1338
  %v1403 = vadd.f32 %v1015, %v1339
  %v1404 = vadd.f32 %v1016, %v1340
  %v1405 = vadd.f32 %v1017, %v1341
  %v1406 = vadd.f32 %v1018, %v1342
  %v1407 = vadd.f32 %v1019, %v1343
  %v1408 = vadd.f32 %v1020, %v1344
  %v1409 = vadd.f32 %v1021, %v1345
  %v1410 = vadd.f32 %v1022, %v1346
  %v1411 = vadd.f32 %v1023, %v1347
  %v1412 = vadd.f32 %v1024, %v1348
  %v1413 = vadd.f32 %v1025, %v1349
  %v1414 = vadd.f32 %v1026, %v1350
  %v1415 = vadd.f32 %v1027, %v1351
  %v1416 = vadd.f32 %v1028, %v1352
  %v1417 = vadd.f32 %v1029, %v1353
  %v1418 = vadd.f32 %v1030, %v1354
  %v1419 = vadd.f32 %v1031, %v1355
  %v1420 = vadd.f32 %v1032, %v1356
  %v1421 = vadd.f32 %v1033, %v1357
  %v1422 = vadd.f32 %v1034, %v1358
  %v1423 = vadd.f32 %v1035, %v1359
  %v1424 = vadd.f32 %v1036, %v1360
  %v1425 = vadd.f32 %v1037, %v1361
  %v1426 = vadd.f32 %v1038, %v1362
  %v1427 = vadd.f32 %v1039, %v1363
  %v1428 = vadd.f32 %v1040, %v1364
  %v1429 = vadd.f32 %v1041, %v1365
  %v1430 = vadd.f32 %v1042, %v1366
  %v1431 = vadd.f32 %v1043, %v1367
  %v1432 = vadd.f32 %v1044, %v1368
  %v1433 = vadd.f32 %v1045, %v1369
  %v1434 = vadd.f32 %v1046, %v1370
  %v1435 = vadd.f32 %v1047, %v1371
  %v1436 = vadd.f32 %v1048, %v1372
  %v1437 = vadd.f32 %v1049, %v1373
  %v1438 = vadd.f32 %v1050, %v1374
  %v1439 = vadd.f32 %v1051, %v1375
  %v1440 = vadd.f32 %v1052, %v1376
  %v1441 = vadd.f32 %v1053, %v1377
  %v1442 = vadd.f32 %v1054, %v1378
  %v1443 = vadd.f32 %v1055, %v1379
  %v1444 = vadd.f32 %v1056, %v1380
  %v1445 = vadd.f32 %v1057, %v1381
  %v1446 = vadd.f32 %v1058, %v1382
  %v1447 = vadd.f32 %v1059, %v1383
  %v1448 = vadd.f32 %v1060, %v1384
  %v1449 = vadd.f32 %v1061, %v1385
  %v1450 = vadd.f32 %v1062, %v1386
  %v1451 = vadd.f32 %v1063, %v1387
  %v1452 = vadd.f32 %v1064, %v1388
  %v1453 = vadd.f32 %v1065, %v1389
  %v1454 = vadd.f32 %v1066, %v1390
  %v1455 = vadd.f32 %v1067, %v1391
  %v1456 = vadd.f32 %v1068, %v1392
  %v1457 = vadd.f32 %v1069, %v1393
  %v1458 = vadd.f32 %v1070, %v1394
  %v1459 = vadd.f32 %v1071, %v1395
  %v1460 = vadd.f32 %v1072, %v1396
  %v1461 = vadd.f32 %v1073, %v1397
  %v1462 = vadd.f32 %v1074, %v1398
  %1463 = vset.pattern.permute.xlu0 2
  %1464 = vperm.xlu0 %1463, %v558
  %v1465 = vpop.permute.xlu0 %1464
  %1467 = vset.pattern.permute.xlu0 2
  %1468 = vperm.xlu0 %1467, %v559
  %v1469 = vpop.permute.xlu0 %1468
  %1471 = vset.pattern.permute.xlu0 2
  %1472 = vperm.xlu0 %1471, %v560
  %v1473 = vpop.permute.xlu0 %1472
  %1475 = vset.pattern.permute.xlu0 2
  %1476 = vperm.xlu0 %1475, %v561
  %v1477 = vpop.permute.xlu0 %1476
  %1479 = vset.pattern.permute.xlu0 2
  %1480 = vperm.xlu0 %1479, %v562
  %v1481 = vpop.permute.xlu0 %1480
  %1483 = vset.pattern.permute.xlu0 2
  %1484 = vperm.xlu0 %1483, %v563
  %v1485 = vpop.permute.xlu0 %1484
  %1487 = vset.pattern.permute.xlu0 2
  %1488 = vperm.xlu0 %1487, %v564
  %v1489 = vpop.permute.xlu0 %1488
  %1491 = vset.pattern.permute.xlu0 2
  %1492 = vperm.xlu0 %1491, %v565
  %v1493 = vpop.permute.xlu0 %1492
  %1495 = vset.pattern.permute.xlu0 2
  %1496 = vperm.xlu0 %1495, %v566
  %v1497 = vpop.permute.xlu0 %1496
  %1499 = vset.pattern.permute.xlu0 2
  %1500 = vperm.xlu0 %1499, %v567
  %v1501 = vpop.permute.xlu0 %1500
  %1503 = vset.pattern.permute.xlu0 2
  %1504 = vperm.xlu0 %1503, %v568
  %v1505 = vpop.permute.xlu0 %1504
  %1507 = vset.pattern.permute.xlu0 2
  %1508 = vperm.xlu0 %1507, %v569
  %v1509 = vpop.permute.xlu0 %1508
  %1511 = vset.pattern.permute.xlu0 2
  %1512 = vperm.xlu0 %1511, %v570
  %v1513 = vpop.permute.xlu0 %1512
  %1515 = vset.pattern.permute.xlu0 2
  %1516 = vperm.xlu0 %1515, %v571
  %v1517 = vpop.permute.xlu0 %1516
  %1519 = vset.pattern.permute.xlu0 2
  %1520 = vperm.xlu0 %1519, %v572
  %v1521 = vpop.permute.xlu0 %1520
  %1523 = vset.pattern.permute.xlu0 2
  %1524 = vperm.xlu0 %1523, %v573
  %v1525 = vpop.permute.xlu0 %1524
  %1527 = vset.pattern.permute.xlu0 2
  %1528 = vperm.xlu0 %1527, %v574
  %v1529 = vpop.permute.xlu0 %1528
  %1531 = vset.pattern.permute.xlu0 2
  %1532 = vperm.xlu0 %1531, %v575
  %v1533 = vpop.permute.xlu0 %1532
  %1535 = vset.pattern.permute.xlu0 2
  %1536 = vperm.xlu0 %1535, %v576
  %v1537 = vpop.permute.xlu0 %1536
  %1539 = vset.pattern.permute.xlu0 2
  %1540 = vperm.xlu0 %1539, %v577
  %v1541 = vpop.permute.xlu0 %1540
  %1543 = vset.pattern.permute.xlu0 2
  %1544 = vperm.xlu0 %1543, %v578
  %v1545 = vpop.permute.xlu0 %1544
  %1547 = vset.pattern.permute.xlu0 2
  %1548 = vperm.xlu0 %1547, %v579
  %v1549 = vpop.permute.xlu0 %1548
  %1551 = vset.pattern.permute.xlu0 2
  %1552 = vperm.xlu0 %1551, %v580
  %v1553 = vpop.permute.xlu0 %1552
  %1555 = vset.pattern.permute.xlu0 2
  %1556 = vperm.xlu0 %1555, %v581
  %v1557 = vpop.permute.xlu0 %1556
  %1559 = vset.pattern.permute.xlu0 2
  %1560 = vperm.xlu0 %1559, %v582
  %v1561 = vpop.permute.xlu0 %1560
  %1563 = vset.pattern.permute.xlu0 2
  %1564 = vperm.xlu0 %1563, %v583
  %v1565 = vpop.permute.xlu0 %1564
  %1567 = vset.pattern.permute.xlu0 2
  %1568 = vperm.xlu0 %1567, %v584
  %v1569 = vpop.permute.xlu0 %1568
  %1571 = vset.pattern.permute.xlu0 2
  %1572 = vperm.xlu0 %1571, %v585
  %v1573 = vpop.permute.xlu0 %1572
  %1575 = vset.pattern.permute.xlu0 2
  %1576 = vperm.xlu0 %1575, %v586
  %v1577 = vpop.permute.xlu0 %1576
  %1579 = vset.pattern.permute.xlu0 2
  %1580 = vperm.xlu0 %1579, %v587
  %v1581 = vpop.permute.xlu0 %1580
  %1583 = vset.pattern.permute.xlu0 2
  %1584 = vperm.xlu0 %1583, %v588
  %v1585 = vpop.permute.xlu0 %1584
  %1587 = vset.pattern.permute.xlu0 2
  %1588 = vperm.xlu0 %1587, %v589
  %v1589 = vpop.permute.xlu0 %1588
  %1591 = vset.pattern.permute.xlu0 2
  %1592 = vperm.xlu0 %1591, %v590
  %v1593 = vpop.permute.xlu0 %1592
  %1595 = vset.pattern.permute.xlu0 2
  %1596 = vperm.xlu0 %1595, %v591
  %v1597 = vpop.permute.xlu0 %1596
  %1599 = vset.pattern.permute.xlu0 2
  %1600 = vperm.xlu0 %1599, %v592
  %v1601 = vpop.permute.xlu0 %1600
  %1603 = vset.pattern.permute.xlu0 2
  %1604 = vperm.xlu0 %1603, %v593
  %v1605 = vpop.permute.xlu0 %1604
  %1607 = vset.pattern.permute.xlu0 2
  %1608 = vperm.xlu0 %1607, %v594
  %v1609 = vpop.permute.xlu0 %1608
  %1611 = vset.pattern.permute.xlu0 2
  %1612 = vperm.xlu0 %1611, %v595
  %v1613 = vpop.permute.xlu0 %1612
  %1615 = vset.pattern.permute.xlu0 2
  %1616 = vperm.xlu0 %1615, %v596
  %v1617 = vpop.permute.xlu0 %1616
  %1619 = vset.pattern.permute.xlu0 2
  %1620 = vperm.xlu0 %1619, %v597
  %v1621 = vpop.permute.xlu0 %1620
  %1623 = vset.pattern.permute.xlu0 2
  %1624 = vperm.xlu0 %1623, %v598
  %v1625 = vpop.permute.xlu0 %1624
  %1627 = vset.pattern.permute.xlu0 2
  %1628 = vperm.xlu0 %1627, %v599
  %v1629 = vpop.permute.xlu0 %1628
  %1631 = vset.pattern.permute.xlu0 2
  %1632 = vperm.xlu0 %1631, %v600
  %v1633 = vpop.permute.xlu0 %1632
  %1635 = vset.pattern.permute.xlu0 2
  %1636 = vperm.xlu0 %1635, %v601
  %v1637 = vpop.permute.xlu0 %1636
  %1639 = vset.pattern.permute.xlu0 2
  %1640 = vperm.xlu0 %1639, %v602
  %v1641 = vpop.permute.xlu0 %1640
  %1643 = vset.pattern.permute.xlu0 2
  %1644 = vperm.xlu0 %1643, %v603
  %v1645 = vpop.permute.xlu0 %1644
  %1647 = vset.pattern.permute.xlu0 2
  %1648 = vperm.xlu0 %1647, %v604
  %v1649 = vpop.permute.xlu0 %1648
  %1651 = vset.pattern.permute.xlu0 2
  %1652 = vperm.xlu0 %1651, %v605
  %v1653 = vpop.permute.xlu0 %1652
  %1655 = vset.pattern.permute.xlu0 2
  %1656 = vperm.xlu0 %1655, %v606
  %v1657 = vpop.permute.xlu0 %1656
  %1659 = vset.pattern.permute.xlu0 2
  %1660 = vperm.xlu0 %1659, %v607
  %v1661 = vpop.permute.xlu0 %1660
  %1663 = vset.pattern.permute.xlu0 2
  %1664 = vperm.xlu0 %1663, %v608
  %v1665 = vpop.permute.xlu0 %1664
  %1667 = vset.pattern.permute.xlu0 2
  %1668 = vperm.xlu0 %1667, %v609
  %v1669 = vpop.permute.xlu0 %1668
  %1671 = vset.pattern.permute.xlu0 2
  %1672 = vperm.xlu0 %1671, %v610
  %v1673 = vpop.permute.xlu0 %1672
  %1675 = vset.pattern.permute.xlu0 2
  %1676 = vperm.xlu0 %1675, %v611
  %v1677 = vpop.permute.xlu0 %1676
  %1679 = vset.pattern.permute.xlu0 2
  %1680 = vperm.xlu0 %1679, %v612
  %v1681 = vpop.permute.xlu0 %1680
  %1683 = vset.pattern.permute.xlu0 2
  %1684 = vperm.xlu0 %1683, %v613
  %v1685 = vpop.permute.xlu0 %1684
  %1687 = vset.pattern.permute.xlu0 2
  %1688 = vperm.xlu0 %1687, %v614
  %v1689 = vpop.permute.xlu0 %1688
  %1691 = vset.pattern.permute.xlu0 2
  %1692 = vperm.xlu0 %1691, %v615
  %v1693 = vpop.permute.xlu0 %1692
  %1695 = vset.pattern.permute.xlu0 2
  %1696 = vperm.xlu0 %1695, %v616
  %v1697 = vpop.permute.xlu0 %1696
  %1699 = vset.pattern.permute.xlu0 2
  %1700 = vperm.xlu0 %1699, %v617
  %v1701 = vpop.permute.xlu0 %1700
  %1703 = vset.pattern.permute.xlu0 2
  %1704 = vperm.xlu0 %1703, %v618
  %v1705 = vpop.permute.xlu0 %1704
  %1707 = vset.pattern.permute.xlu0 2
  %1708 = vperm.xlu0 %1707, %v619
  %v1709 = vpop.permute.xlu0 %1708
  %1711 = vset.pattern.permute.xlu0 2
  %1712 = vperm.xlu0 %1711, %v620
  %v1713 = vpop.permute.xlu0 %1712
  %1715 = vset.pattern.permute.xlu0 2
  %1716 = vperm.xlu0 %1715, %v621
  %v1717 = vpop.permute.xlu0 %1716
  %v1719 = vlaneseq
  %v1720 = vshrl.u32 %v1719, 7
  %v1721 = vsub.s32 2, %v1720
  %v1722 = vrot.slane %v622, %v1721
  %v1723 = vmul.f32 %v1465, %v1722
  %v1724 = vmul.f32 %v1469, %v1722
  %v1725 = vmul.f32 %v1473, %v1722
  %v1726 = vmul.f32 %v1477, %v1722
  %v1727 = vmul.f32 %v1481, %v1722
  %v1728 = vmul.f32 %v1485, %v1722
  %v1729 = vmul.f32 %v1489, %v1722
  %v1730 = vmul.f32 %v1493, %v1722
  %v1731 = vmul.f32 %v1497, %v1722
  %v1732 = vmul.f32 %v1501, %v1722
  %v1733 = vmul.f32 %v1505, %v1722
  %v1734 = vmul.f32 %v1509, %v1722
  %v1735 = vmul.f32 %v1513, %v1722
  %v1736 = vmul.f32 %v1517, %v1722
  %v1737 = vmul.f32 %v1521, %v1722
  %v1738 = vmul.f32 %v1525, %v1722
  %v1739 = vmul.f32 %v1529, %v1722
  %v1740 = vmul.f32 %v1533, %v1722
  %v1741 = vmul.f32 %v1537, %v1722
  %v1742 = vmul.f32 %v1541, %v1722
  %v1743 = vmul.f32 %v1545, %v1722
  %v1744 = vmul.f32 %v1549, %v1722
  %v1745 = vmul.f32 %v1553, %v1722
  %v1746 = vmul.f32 %v1557, %v1722
  %v1747 = vmul.f32 %v1561, %v1722
  %v1748 = vmul.f32 %v1565, %v1722
  %v1749 = vmul.f32 %v1569, %v1722
  %v1750 = vmul.f32 %v1573, %v1722
  %v1751 = vmul.f32 %v1577, %v1722
  %v1752 = vmul.f32 %v1581, %v1722
  %v1753 = vmul.f32 %v1585, %v1722
  %v1754 = vmul.f32 %v1589, %v1722
  %v1755 = vmul.f32 %v1593, %v1722
  %v1756 = vmul.f32 %v1597, %v1722
  %v1757 = vmul.f32 %v1601, %v1722
  %v1758 = vmul.f32 %v1605, %v1722
  %v1759 = vmul.f32 %v1609, %v1722
  %v1760 = vmul.f32 %v1613, %v1722
  %v1761 = vmul.f32 %v1617, %v1722
  %v1762 = vmul.f32 %v1621, %v1722
  %v1763 = vmul.f32 %v1625, %v1722
  %v1764 = vmul.f32 %v1629, %v1722
  %v1765 = vmul.f32 %v1633, %v1722
  %v1766 = vmul.f32 %v1637, %v1722
  %v1767 = vmul.f32 %v1641, %v1722
  %v1768 = vmul.f32 %v1645, %v1722
  %v1769 = vmul.f32 %v1649, %v1722
  %v1770 = vmul.f32 %v1653, %v1722
  %v1771 = vmul.f32 %v1657, %v1722
  %v1772 = vmul.f32 %v1661, %v1722
  %v1773 = vmul.f32 %v1665, %v1722
  %v1774 = vmul.f32 %v1669, %v1722
  %v1775 = vmul.f32 %v1673, %v1722
  %v1776 = vmul.f32 %v1677, %v1722
  %v1777 = vmul.f32 %v1681, %v1722
  %v1778 = vmul.f32 %v1685, %v1722
  %v1779 = vmul.f32 %v1689, %v1722
  %v1780 = vmul.f32 %v1693, %v1722
  %v1781 = vmul.f32 %v1697, %v1722
  %v1782 = vmul.f32 %v1701, %v1722
  %v1783 = vmul.f32 %v1705, %v1722
  %v1784 = vmul.f32 %v1709, %v1722
  %v1785 = vmul.f32 %v1713, %v1722
  %v1786 = vmul.f32 %v1717, %v1722
  %v1787 = vadd.f32 %v1399, %v1723
  %v1788 = vadd.f32 %v1400, %v1724
  %v1789 = vadd.f32 %v1401, %v1725
  %v1790 = vadd.f32 %v1402, %v1726
  %v1791 = vadd.f32 %v1403, %v1727
  %v1792 = vadd.f32 %v1404, %v1728
  %v1793 = vadd.f32 %v1405, %v1729
  %v1794 = vadd.f32 %v1406, %v1730
  %v1795 = vadd.f32 %v1407, %v1731
  %v1796 = vadd.f32 %v1408, %v1732
  %v1797 = vadd.f32 %v1409, %v1733
  %v1798 = vadd.f32 %v1410, %v1734
  %v1799 = vadd.f32 %v1411, %v1735
  %v1800 = vadd.f32 %v1412, %v1736
  %v1801 = vadd.f32 %v1413, %v1737
  %v1802 = vadd.f32 %v1414, %v1738
  %v1803 = vadd.f32 %v1415, %v1739
  %v1804 = vadd.f32 %v1416, %v1740
  %v1805 = vadd.f32 %v1417, %v1741
  %v1806 = vadd.f32 %v1418, %v1742
  %v1807 = vadd.f32 %v1419, %v1743
  %v1808 = vadd.f32 %v1420, %v1744
  %v1809 = vadd.f32 %v1421, %v1745
  %v1810 = vadd.f32 %v1422, %v1746
  %v1811 = vadd.f32 %v1423, %v1747
  %v1812 = vadd.f32 %v1424, %v1748
  %v1813 = vadd.f32 %v1425, %v1749
  %v1814 = vadd.f32 %v1426, %v1750
  %v1815 = vadd.f32 %v1427, %v1751
  %v1816 = vadd.f32 %v1428, %v1752
  %v1817 = vadd.f32 %v1429, %v1753
  %v1818 = vadd.f32 %v1430, %v1754
  %v1819 = vadd.f32 %v1431, %v1755
  %v1820 = vadd.f32 %v1432, %v1756
  %v1821 = vadd.f32 %v1433, %v1757
  %v1822 = vadd.f32 %v1434, %v1758
  %v1823 = vadd.f32 %v1435, %v1759
  %v1824 = vadd.f32 %v1436, %v1760
  %v1825 = vadd.f32 %v1437, %v1761
  %v1826 = vadd.f32 %v1438, %v1762
  %v1827 = vadd.f32 %v1439, %v1763
  %v1828 = vadd.f32 %v1440, %v1764
  %v1829 = vadd.f32 %v1441, %v1765
  %v1830 = vadd.f32 %v1442, %v1766
  %v1831 = vadd.f32 %v1443, %v1767
  %v1832 = vadd.f32 %v1444, %v1768
  %v1833 = vadd.f32 %v1445, %v1769
  %v1834 = vadd.f32 %v1446, %v1770
  %v1835 = vadd.f32 %v1447, %v1771
  %v1836 = vadd.f32 %v1448, %v1772
  %v1837 = vadd.f32 %v1449, %v1773
  %v1838 = vadd.f32 %v1450, %v1774
  %v1839 = vadd.f32 %v1451, %v1775
  %v1840 = vadd.f32 %v1452, %v1776
  %v1841 = vadd.f32 %v1453, %v1777
  %v1842 = vadd.f32 %v1454, %v1778
  %v1843 = vadd.f32 %v1455, %v1779
  %v1844 = vadd.f32 %v1456, %v1780
  %v1845 = vadd.f32 %v1457, %v1781
  %v1846 = vadd.f32 %v1458, %v1782
  %v1847 = vadd.f32 %v1459, %v1783
  %v1848 = vadd.f32 %v1460, %v1784
  %v1849 = vadd.f32 %v1461, %v1785
  %v1850 = vadd.f32 %v1462, %v1786
  %1851 = vset.pattern.permute.xlu0 3
  %1852 = vperm.xlu0 %1851, %v558
  %v1853 = vpop.permute.xlu0 %1852
  %1855 = vset.pattern.permute.xlu0 3
  %1856 = vperm.xlu0 %1855, %v559
  %v1857 = vpop.permute.xlu0 %1856
  %1859 = vset.pattern.permute.xlu0 3
  %1860 = vperm.xlu0 %1859, %v560
  %v1861 = vpop.permute.xlu0 %1860
  %1863 = vset.pattern.permute.xlu0 3
  %1864 = vperm.xlu0 %1863, %v561
  %v1865 = vpop.permute.xlu0 %1864
  %1867 = vset.pattern.permute.xlu0 3
  %1868 = vperm.xlu0 %1867, %v562
  %v1869 = vpop.permute.xlu0 %1868
  %1871 = vset.pattern.permute.xlu0 3
  %1872 = vperm.xlu0 %1871, %v563
  %v1873 = vpop.permute.xlu0 %1872
  %1875 = vset.pattern.permute.xlu0 3
  %1876 = vperm.xlu0 %1875, %v564
  %v1877 = vpop.permute.xlu0 %1876
  %1879 = vset.pattern.permute.xlu0 3
  %1880 = vperm.xlu0 %1879, %v565
  %v1881 = vpop.permute.xlu0 %1880
  %1883 = vset.pattern.permute.xlu0 3
  %1884 = vperm.xlu0 %1883, %v566
  %v1885 = vpop.permute.xlu0 %1884
  %1887 = vset.pattern.permute.xlu0 3
  %1888 = vperm.xlu0 %1887, %v567
  %v1889 = vpop.permute.xlu0 %1888
  %1891 = vset.pattern.permute.xlu0 3
  %1892 = vperm.xlu0 %1891, %v568
  %v1893 = vpop.permute.xlu0 %1892
  %1895 = vset.pattern.permute.xlu0 3
  %1896 = vperm.xlu0 %1895, %v569
  %v1897 = vpop.permute.xlu0 %1896
  %1899 = vset.pattern.permute.xlu0 3
  %1900 = vperm.xlu0 %1899, %v570
  %v1901 = vpop.permute.xlu0 %1900
  %1903 = vset.pattern.permute.xlu0 3
  %1904 = vperm.xlu0 %1903, %v571
  %v1905 = vpop.permute.xlu0 %1904
  %1907 = vset.pattern.permute.xlu0 3
  %1908 = vperm.xlu0 %1907, %v572
  %v1909 = vpop.permute.xlu0 %1908
  %1911 = vset.pattern.permute.xlu0 3
  %1912 = vperm.xlu0 %1911, %v573
  %v1913 = vpop.permute.xlu0 %1912
  %1915 = vset.pattern.permute.xlu0 3
  %1916 = vperm.xlu0 %1915, %v574
  %v1917 = vpop.permute.xlu0 %1916
  %1919 = vset.pattern.permute.xlu0 3
  %1920 = vperm.xlu0 %1919, %v575
  %v1921 = vpop.permute.xlu0 %1920
  %1923 = vset.pattern.permute.xlu0 3
  %1924 = vperm.xlu0 %1923, %v576
  %v1925 = vpop.permute.xlu0 %1924
  %1927 = vset.pattern.permute.xlu0 3
  %1928 = vperm.xlu0 %1927, %v577
  %v1929 = vpop.permute.xlu0 %1928
  %1931 = vset.pattern.permute.xlu0 3
  %1932 = vperm.xlu0 %1931, %v578
  %v1933 = vpop.permute.xlu0 %1932
  %1935 = vset.pattern.permute.xlu0 3
  %1936 = vperm.xlu0 %1935, %v579
  %v1937 = vpop.permute.xlu0 %1936
  %1939 = vset.pattern.permute.xlu0 3
  %1940 = vperm.xlu0 %1939, %v580
  %v1941 = vpop.permute.xlu0 %1940
  %1943 = vset.pattern.permute.xlu0 3
  %1944 = vperm.xlu0 %1943, %v581
  %v1945 = vpop.permute.xlu0 %1944
  %1947 = vset.pattern.permute.xlu0 3
  %1948 = vperm.xlu0 %1947, %v582
  %v1949 = vpop.permute.xlu0 %1948
  %1951 = vset.pattern.permute.xlu0 3
  %1952 = vperm.xlu0 %1951, %v583
  %v1953 = vpop.permute.xlu0 %1952
  %1955 = vset.pattern.permute.xlu0 3
  %1956 = vperm.xlu0 %1955, %v584
  %v1957 = vpop.permute.xlu0 %1956
  %1959 = vset.pattern.permute.xlu0 3
  %1960 = vperm.xlu0 %1959, %v585
  %v1961 = vpop.permute.xlu0 %1960
  %1963 = vset.pattern.permute.xlu0 3
  %1964 = vperm.xlu0 %1963, %v586
  %v1965 = vpop.permute.xlu0 %1964
  %1967 = vset.pattern.permute.xlu0 3
  %1968 = vperm.xlu0 %1967, %v587
  %v1969 = vpop.permute.xlu0 %1968
  %1971 = vset.pattern.permute.xlu0 3
  %1972 = vperm.xlu0 %1971, %v588
  %v1973 = vpop.permute.xlu0 %1972
  %1975 = vset.pattern.permute.xlu0 3
  %1976 = vperm.xlu0 %1975, %v589
  %v1977 = vpop.permute.xlu0 %1976
  %1979 = vset.pattern.permute.xlu0 3
  %1980 = vperm.xlu0 %1979, %v590
  %v1981 = vpop.permute.xlu0 %1980
  %1983 = vset.pattern.permute.xlu0 3
  %1984 = vperm.xlu0 %1983, %v591
  %v1985 = vpop.permute.xlu0 %1984
  %1987 = vset.pattern.permute.xlu0 3
  %1988 = vperm.xlu0 %1987, %v592
  %v1989 = vpop.permute.xlu0 %1988
  %1991 = vset.pattern.permute.xlu0 3
  %1992 = vperm.xlu0 %1991, %v593
  %v1993 = vpop.permute.xlu0 %1992
  %1995 = vset.pattern.permute.xlu0 3
  %1996 = vperm.xlu0 %1995, %v594
  %v1997 = vpop.permute.xlu0 %1996
  %1999 = vset.pattern.permute.xlu0 3
  %2000 = vperm.xlu0 %1999, %v595
  %v2001 = vpop.permute.xlu0 %2000
  %2003 = vset.pattern.permute.xlu0 3
  %2004 = vperm.xlu0 %2003, %v596
  %v2005 = vpop.permute.xlu0 %2004
  %2007 = vset.pattern.permute.xlu0 3
  %2008 = vperm.xlu0 %2007, %v597
  %v2009 = vpop.permute.xlu0 %2008
  %2011 = vset.pattern.permute.xlu0 3
  %2012 = vperm.xlu0 %2011, %v598
  %v2013 = vpop.permute.xlu0 %2012
  %2015 = vset.pattern.permute.xlu0 3
  %2016 = vperm.xlu0 %2015, %v599
  %v2017 = vpop.permute.xlu0 %2016
  %2019 = vset.pattern.permute.xlu0 3
  %2020 = vperm.xlu0 %2019, %v600
  %v2021 = vpop.permute.xlu0 %2020
  %2023 = vset.pattern.permute.xlu0 3
  %2024 = vperm.xlu0 %2023, %v601
  %v2025 = vpop.permute.xlu0 %2024
  %2027 = vset.pattern.permute.xlu0 3
  %2028 = vperm.xlu0 %2027, %v602
  %v2029 = vpop.permute.xlu0 %2028
  %2031 = vset.pattern.permute.xlu0 3
  %2032 = vperm.xlu0 %2031, %v603
  %v2033 = vpop.permute.xlu0 %2032
  %2035 = vset.pattern.permute.xlu0 3
  %2036 = vperm.xlu0 %2035, %v604
  %v2037 = vpop.permute.xlu0 %2036
  %2039 = vset.pattern.permute.xlu0 3
  %2040 = vperm.xlu0 %2039, %v605
  %v2041 = vpop.permute.xlu0 %2040
  %2043 = vset.pattern.permute.xlu0 3
  %2044 = vperm.xlu0 %2043, %v606
  %v2045 = vpop.permute.xlu0 %2044
  %2047 = vset.pattern.permute.xlu0 3
  %2048 = vperm.xlu0 %2047, %v607
  %v2049 = vpop.permute.xlu0 %2048
  %2051 = vset.pattern.permute.xlu0 3
  %2052 = vperm.xlu0 %2051, %v608
  %v2053 = vpop.permute.xlu0 %2052
  %2055 = vset.pattern.permute.xlu0 3
  %2056 = vperm.xlu0 %2055, %v609
  %v2057 = vpop.permute.xlu0 %2056
  %2059 = vset.pattern.permute.xlu0 3
  %2060 = vperm.xlu0 %2059, %v610
  %v2061 = vpop.permute.xlu0 %2060
  %2063 = vset.pattern.permute.xlu0 3
  %2064 = vperm.xlu0 %2063, %v611
  %v2065 = vpop.permute.xlu0 %2064
  %2067 = vset.pattern.permute.xlu0 3
  %2068 = vperm.xlu0 %2067, %v612
  %v2069 = vpop.permute.xlu0 %2068
  %2071 = vset.pattern.permute.xlu0 3
  %2072 = vperm.xlu0 %2071, %v613
  %v2073 = vpop.permute.xlu0 %2072
  %2075 = vset.pattern.permute.xlu0 3
  %2076 = vperm.xlu0 %2075, %v614
  %v2077 = vpop.permute.xlu0 %2076
  %2079 = vset.pattern.permute.xlu0 3
  %2080 = vperm.xlu0 %2079, %v615
  %v2081 = vpop.permute.xlu0 %2080
  %2083 = vset.pattern.permute.xlu0 3
  %2084 = vperm.xlu0 %2083, %v616
  %v2085 = vpop.permute.xlu0 %2084
  %2087 = vset.pattern.permute.xlu0 3
  %2088 = vperm.xlu0 %2087, %v617
  %v2089 = vpop.permute.xlu0 %2088
  %2091 = vset.pattern.permute.xlu0 3
  %2092 = vperm.xlu0 %2091, %v618
  %v2093 = vpop.permute.xlu0 %2092
  %2095 = vset.pattern.permute.xlu0 3
  %2096 = vperm.xlu0 %2095, %v619
  %v2097 = vpop.permute.xlu0 %2096
  %2099 = vset.pattern.permute.xlu0 3
  %2100 = vperm.xlu0 %2099, %v620
  %v2101 = vpop.permute.xlu0 %2100
  %2103 = vset.pattern.permute.xlu0 3
  %2104 = vperm.xlu0 %2103, %v621
  %v2105 = vpop.permute.xlu0 %2104
  %v2107 = vlaneseq
  %v2108 = vshrl.u32 %v2107, 7
  %v2109 = vsub.s32 3, %v2108
  %v2110 = vrot.slane %v622, %v2109
  %v2111 = vmul.f32 %v1853, %v2110
  %v2112 = vmul.f32 %v1857, %v2110
  %v2113 = vmul.f32 %v1861, %v2110
  %v2114 = vmul.f32 %v1865, %v2110
  %v2115 = vmul.f32 %v1869, %v2110
  %v2116 = vmul.f32 %v1873, %v2110
  %v2117 = vmul.f32 %v1877, %v2110
  %v2118 = vmul.f32 %v1881, %v2110
  %v2119 = vmul.f32 %v1885, %v2110
  %v2120 = vmul.f32 %v1889, %v2110
  %v2121 = vmul.f32 %v1893, %v2110
  %v2122 = vmul.f32 %v1897, %v2110
  %v2123 = vmul.f32 %v1901, %v2110
  %v2124 = vmul.f32 %v1905, %v2110
  %v2125 = vmul.f32 %v1909, %v2110
  %v2126 = vmul.f32 %v1913, %v2110
  %v2127 = vmul.f32 %v1917, %v2110
  %v2128 = vmul.f32 %v1921, %v2110
  %v2129 = vmul.f32 %v1925, %v2110
  %v2130 = vmul.f32 %v1929, %v2110
  %v2131 = vmul.f32 %v1933, %v2110
  %v2132 = vmul.f32 %v1937, %v2110
  %v2133 = vmul.f32 %v1941, %v2110
  %v2134 = vmul.f32 %v1945, %v2110
  %v2135 = vmul.f32 %v1949, %v2110
  %v2136 = vmul.f32 %v1953, %v2110
  %v2137 = vmul.f32 %v1957, %v2110
  %v2138 = vmul.f32 %v1961, %v2110
  %v2139 = vmul.f32 %v1965, %v2110
  %v2140 = vmul.f32 %v1969, %v2110
  %v2141 = vmul.f32 %v1973, %v2110
  %v2142 = vmul.f32 %v1977, %v2110
  %v2143 = vmul.f32 %v1981, %v2110
  %v2144 = vmul.f32 %v1985, %v2110
  %v2145 = vmul.f32 %v1989, %v2110
  %v2146 = vmul.f32 %v1993, %v2110
  %v2147 = vmul.f32 %v1997, %v2110
  %v2148 = vmul.f32 %v2001, %v2110
  %v2149 = vmul.f32 %v2005, %v2110
  %v2150 = vmul.f32 %v2009, %v2110
  %v2151 = vmul.f32 %v2013, %v2110
  %v2152 = vmul.f32 %v2017, %v2110
  %v2153 = vmul.f32 %v2021, %v2110
  %v2154 = vmul.f32 %v2025, %v2110
  %v2155 = vmul.f32 %v2029, %v2110
  %v2156 = vmul.f32 %v2033, %v2110
  %v2157 = vmul.f32 %v2037, %v2110
  %v2158 = vmul.f32 %v2041, %v2110
  %v2159 = vmul.f32 %v2045, %v2110
  %v2160 = vmul.f32 %v2049, %v2110
  %v2161 = vmul.f32 %v2053, %v2110
  %v2162 = vmul.f32 %v2057, %v2110
  %v2163 = vmul.f32 %v2061, %v2110
  %v2164 = vmul.f32 %v2065, %v2110
  %v2165 = vmul.f32 %v2069, %v2110
  %v2166 = vmul.f32 %v2073, %v2110
  %v2167 = vmul.f32 %v2077, %v2110
  %v2168 = vmul.f32 %v2081, %v2110
  %v2169 = vmul.f32 %v2085, %v2110
  %v2170 = vmul.f32 %v2089, %v2110
  %v2171 = vmul.f32 %v2093, %v2110
  %v2172 = vmul.f32 %v2097, %v2110
  %v2173 = vmul.f32 %v2101, %v2110
  %v2174 = vmul.f32 %v2105, %v2110
  %v2175 = vadd.f32 %v1787, %v2111
  %v2176 = vadd.f32 %v1788, %v2112
  %v2177 = vadd.f32 %v1789, %v2113
  %v2178 = vadd.f32 %v1790, %v2114
  %v2179 = vadd.f32 %v1791, %v2115
  %v2180 = vadd.f32 %v1792, %v2116
  %v2181 = vadd.f32 %v1793, %v2117
  %v2182 = vadd.f32 %v1794, %v2118
  %v2183 = vadd.f32 %v1795, %v2119
  %v2184 = vadd.f32 %v1796, %v2120
  %v2185 = vadd.f32 %v1797, %v2121
  %v2186 = vadd.f32 %v1798, %v2122
  %v2187 = vadd.f32 %v1799, %v2123
  %v2188 = vadd.f32 %v1800, %v2124
  %v2189 = vadd.f32 %v1801, %v2125
  %v2190 = vadd.f32 %v1802, %v2126
  %v2191 = vadd.f32 %v1803, %v2127
  %v2192 = vadd.f32 %v1804, %v2128
  %v2193 = vadd.f32 %v1805, %v2129
  %v2194 = vadd.f32 %v1806, %v2130
  %v2195 = vadd.f32 %v1807, %v2131
  %v2196 = vadd.f32 %v1808, %v2132
  %v2197 = vadd.f32 %v1809, %v2133
  %v2198 = vadd.f32 %v1810, %v2134
  %v2199 = vadd.f32 %v1811, %v2135
  %v2200 = vadd.f32 %v1812, %v2136
  %v2201 = vadd.f32 %v1813, %v2137
  %v2202 = vadd.f32 %v1814, %v2138
  %v2203 = vadd.f32 %v1815, %v2139
  %v2204 = vadd.f32 %v1816, %v2140
  %v2205 = vadd.f32 %v1817, %v2141
  %v2206 = vadd.f32 %v1818, %v2142
  %v2207 = vadd.f32 %v1819, %v2143
  %v2208 = vadd.f32 %v1820, %v2144
  %v2209 = vadd.f32 %v1821, %v2145
  %v2210 = vadd.f32 %v1822, %v2146
  %v2211 = vadd.f32 %v1823, %v2147
  %v2212 = vadd.f32 %v1824, %v2148
  %v2213 = vadd.f32 %v1825, %v2149
  %v2214 = vadd.f32 %v1826, %v2150
  %v2215 = vadd.f32 %v1827, %v2151
  %v2216 = vadd.f32 %v1828, %v2152
  %v2217 = vadd.f32 %v1829, %v2153
  %v2218 = vadd.f32 %v1830, %v2154
  %v2219 = vadd.f32 %v1831, %v2155
  %v2220 = vadd.f32 %v1832, %v2156
  %v2221 = vadd.f32 %v1833, %v2157
  %v2222 = vadd.f32 %v1834, %v2158
  %v2223 = vadd.f32 %v1835, %v2159
  %v2224 = vadd.f32 %v1836, %v2160
  %v2225 = vadd.f32 %v1837, %v2161
  %v2226 = vadd.f32 %v1838, %v2162
  %v2227 = vadd.f32 %v1839, %v2163
  %v2228 = vadd.f32 %v1840, %v2164
  %v2229 = vadd.f32 %v1841, %v2165
  %v2230 = vadd.f32 %v1842, %v2166
  %v2231 = vadd.f32 %v1843, %v2167
  %v2232 = vadd.f32 %v1844, %v2168
  %v2233 = vadd.f32 %v1845, %v2169
  %v2234 = vadd.f32 %v1846, %v2170
  %v2235 = vadd.f32 %v1847, %v2171
  %v2236 = vadd.f32 %v1848, %v2172
  %v2237 = vadd.f32 %v1849, %v2173
  %v2238 = vadd.f32 %v1850, %v2174
  %v2239 = vld [vmem:[%s5] sm:$0xff]
  %v2240 = vld [vmem:[%s5 + $0x8] sm:$0xff]
  %v2241 = vld [vmem:[%s5 + $0x10] sm:$0xff]
  %v2242 = vld [vmem:[%s5 + $0x18] sm:$0xff]
  %v2243 = vld [vmem:[%s5 + $0x20] sm:$0xff]
  %v2244 = vld [vmem:[%s5 + $0x28] sm:$0xff]
  %v2245 = vld [vmem:[%s5 + $0x30] sm:$0xff]
  %v2246 = vld [vmem:[%s5 + $0x38] sm:$0xff]
  %v2247 = vld [vmem:[%s6] sm:$0x1]
  %v2249 = vlaneseq
  %v2250 = vshrl.u32 %v2249, 7
  %v2251 = vsub.s32 0, %v2250
  %v2252 = vrot.slane %v2247, %v2251
  %vm2254 = vcmask 523264
  %v2256 = vsel %vm2254, %v2175, 0
  %v2259 = vsel %vm2254, %v2176, 0
  %v2262 = vsel %vm2254, %v2177, 0
  %v2265 = vsel %vm2254, %v2178, 0
  %v2268 = vsel %vm2254, %v2179, 0
  %v2271 = vsel %vm2254, %v2180, 0
  %v2274 = vsel %vm2254, %v2181, 0
  %v2277 = vsel %vm2254, %v2182, 0
  %v2280 = vsel %vm2254, %v2183, 0
  %v2283 = vsel %vm2254, %v2184, 0
  %v2286 = vsel %vm2254, %v2185, 0
  %v2289 = vsel %vm2254, %v2186, 0
  %v2292 = vsel %vm2254, %v2187, 0
  %v2295 = vsel %vm2254, %v2188, 0
  %v2298 = vsel %vm2254, %v2189, 0
  %v2301 = vsel %vm2254, %v2190, 0
  %v2304 = vsel %vm2254, %v2191, 0
  %v2307 = vsel %vm2254, %v2192, 0
  %v2310 = vsel %vm2254, %v2193, 0
  %v2313 = vsel %vm2254, %v2194, 0
  %v2316 = vsel %vm2254, %v2195, 0
  %v2319 = vsel %vm2254, %v2196, 0
  %v2322 = vsel %vm2254, %v2197, 0
  %v2325 = vsel %vm2254, %v2198, 0
  %v2328 = vsel %vm2254, %v2199, 0
  %v2331 = vsel %vm2254, %v2200, 0
  %v2334 = vsel %vm2254, %v2201, 0
  %v2337 = vsel %vm2254, %v2202, 0
  %v2340 = vsel %vm2254, %v2203, 0
  %v2343 = vsel %vm2254, %v2204, 0
  %v2346 = vsel %vm2254, %v2205, 0
  %v2349 = vsel %vm2254, %v2206, 0
  %v2352 = vsel %vm2254, %v2207, 0
  %v2355 = vsel %vm2254, %v2208, 0
  %v2358 = vsel %vm2254, %v2209, 0
  %v2361 = vsel %vm2254, %v2210, 0
  %v2364 = vsel %vm2254, %v2211, 0
  %v2367 = vsel %vm2254, %v2212, 0
  %v2370 = vsel %vm2254, %v2213, 0
  %v2373 = vsel %vm2254, %v2214, 0
  %v2376 = vsel %vm2254, %v2215, 0
  %v2379 = vsel %vm2254, %v2216, 0
  %v2382 = vsel %vm2254, %v2217, 0
  %v2385 = vsel %vm2254, %v2218, 0
  %v2388 = vsel %vm2254, %v2219, 0
  %v2391 = vsel %vm2254, %v2220, 0
  %v2394 = vsel %vm2254, %v2221, 0
  %v2397 = vsel %vm2254, %v2222, 0
  %v2400 = vsel %vm2254, %v2223, 0
  %v2403 = vsel %vm2254, %v2224, 0
  %v2406 = vsel %vm2254, %v2225, 0
  %v2409 = vsel %vm2254, %v2226, 0
  %v2412 = vsel %vm2254, %v2227, 0
  %v2415 = vsel %vm2254, %v2228, 0
  %v2418 = vsel %vm2254, %v2229, 0
  %v2421 = vsel %vm2254, %v2230, 0
  %v2424 = vsel %vm2254, %v2231, 0
  %v2427 = vsel %vm2254, %v2232, 0
  %v2430 = vsel %vm2254, %v2233, 0
  %v2433 = vsel %vm2254, %v2234, 0
  %v2436 = vsel %vm2254, %v2235, 0
  %v2439 = vsel %vm2254, %v2236, 0
  %v2442 = vsel %vm2254, %v2237, 0
  %v2445 = vsel %vm2254, %v2238, 0
  %2447 = vmatprep.subr.mxu0 0.0
  %2448 = vmatpush1.msra.mxu0 %v2239
  %2449 = vmatprep.subr.mxu0 0.0
  %2450 = vmatpush1.msra.mxu0 %v2240
  %2451 = vmatprep.subr.mxu0 0.0
  %2452 = vmatpush1.msra.mxu0 %v2241
  %2453 = vmatprep.subr.mxu0 0.0
  %2454 = vmatpush1.msra.mxu0 %v2242
  %2455 = vmatprep.subr.mxu0 0.0
  %2456 = vmatpush1.msra.mxu0 %v2243
  %2457 = vmatprep.subr.mxu0 0.0
  %2458 = vmatpush1.msra.mxu0 %v2244
  %2459 = vmatprep.subr.mxu0 0.0
  %2460 = vmatpush1.msra.mxu0 %v2245
  %2461 = vmatprep.subr.mxu0 0.0
  %2462 = vmatpush1.msra.mxu0 %v2246
  %2463 = vmatprep.subr.mxu0 0.0
  %2464 = vmatpush1.msra.mxu0 0.0
  %2465 = vmatprep.subr.mxu0 0.0
  %2466 = vmatpush1.msra.mxu0 0.0
  %2467 = vmatprep.subr.mxu0 0.0
  %2468 = vmatpush1.msra.mxu0 0.0
  %2469 = vmatprep.subr.mxu0 0.0
  %2470 = vmatpush1.msra.mxu0 0.0
  %2471 = vmatprep.subr.mxu0 0.0
  %2472 = vmatpush1.msra.mxu0 0.0
  %2473 = vmatprep.subr.mxu0 0.0
  %2474 = vmatpush1.msra.mxu0 0.0
  %2475 = vmatprep.subr.mxu0 0.0
  %2476 = vmatpush1.msra.mxu0 0.0
  %2477 = vmatprep.subr.mxu0 0.0
  %2478 = vmatpush1.msra.mxu0 0.0
  %2479 = vmatprep.subr.mxu0 0.0
  %2480 = vmatpush1.msra.mxu0 0.0
  %2481 = vmatprep.subr.mxu0 0.0
  %2482 = vmatpush1.msra.mxu0 0.0
  %2483 = vmatprep.subr.mxu0 0.0
  %2484 = vmatpush1.msra.mxu0 0.0
  %2485 = vmatprep.subr.mxu0 0.0
  %2486 = vmatpush1.msra.mxu0 0.0
  %2487 = vmatprep.subr.mxu0 0.0
  %2488 = vmatpush1.msra.mxu0 0.0
  %2489 = vmatprep.subr.mxu0 0.0
  %2490 = vmatpush1.msra.mxu0 0.0
  %2491 = vmatprep.subr.mxu0 0.0
  %2492 = vmatpush1.msra.mxu0 0.0
  %2493 = vmatprep.subr.mxu0 0.0
  %2494 = vmatpush1.msra.mxu0 0.0
  %2495 = vmatprep.subr.mxu0 0.0
  %2496 = vmatpush1.msra.mxu0 0.0
  %2497 = vmatprep.subr.mxu0 0.0
  %2498 = vmatpush1.msra.mxu0 0.0
  %2499 = vmatprep.subr.mxu0 0.0
  %2500 = vmatpush1.msra.mxu0 0.0
  %2501 = vmatprep.subr.mxu0 0.0
  %2502 = vmatpush1.msra.mxu0 0.0
  %2503 = vmatprep.subr.mxu0 0.0
  %2504 = vmatpush1.msra.mxu0 0.0
  %2505 = vmatprep.subr.mxu0 0.0
  %2506 = vmatpush1.msra.mxu0 0.0
  %2507 = vmatprep.subr.mxu0 0.0
  %2508 = vmatpush1.msra.mxu0 0.0
  %2509 = vmatprep.subr.mxu0 0.0
  %2510 = vmatpush1.msra.mxu0 0.0
  %2511 = vmatprep.mubr.f32.mxu0 0.0
  %2512 = vmatmul.mubr.f32.gmra.mrb[0].mxu0 %v2256
  %v2513 = vpop.f32.mrb[0].mxu0
  %v2514 = vadd.f32 %v2252, %v2513
  %v2515 = vpop.f32.mrb[0].mxu0
  %2516 = vmatprep.mubr.f32.mxu0 0.0
  %2517 = vmatmul.mubr.f32.gmra.mrb[0].mxu0 %v2259
  %v2518 = vpop.f32.mrb[0].mxu0
  %v2519 = vadd.f32 %v2252, %v2518
  %v2520 = vpop.f32.mrb[0].mxu0
  %2521 = vmatprep.mubr.f32.mxu0 0.0
  %2522 = vmatmul.mubr.f32.gmra.mrb[0].mxu0 %v2262
  %v2523 = vpop.f32.mrb[0].mxu0
  %v2524 = vadd.f32 %v2252, %v2523
  %v2525 = vpop.f32.mrb[0].mxu0
  %2526 = vmatprep.mubr.f32.mxu0 0.0
  %2527 = vmatmul.mubr.f32.gmra.mrb[0].mxu0 %v2265
  %v2528 = vpop.f32.mrb[0].mxu0
  %v2529 = vadd.f32 %v2252, %v2528
  %v2530 = vpop.f32.mrb[0].mxu0
  %2531 = vmatprep.mubr.f32.mxu0 0.0
  %2532 = vmatmul.mubr.f32.gmra.mrb[0].mxu0 %v2268
  %v2533 = vpop.f32.mrb[0].mxu0
  %v2534 = vadd.f32 %v2252, %v2533
  %v2535 = vpop.f32.mrb[0].mxu0
  %2536 = vmatprep.mubr.f32.mxu0 0.0
  %2537 = vmatmul.mubr.f32.gmra.mrb[0].mxu0 %v2271
  %v2538 = vpop.f32.mrb[0].mxu0
  %v2539 = vadd.f32 %v2252, %v2538
  %v2540 = vpop.f32.mrb[0].mxu0
  %2541 = vmatprep.mubr.f32.mxu0 0.0
  %2542 = vmatmul.mubr.f32.gmra.mrb[0].mxu0 %v2274
  %v2543 = vpop.f32.mrb[0].mxu0
  %v2544 = vadd.f32 %v2252, %v2543
  %v2545 = vpop.f32.mrb[0].mxu0
  %2546 = vmatprep.mubr.f32.mxu0 0.0
  %2547 = vmatmul.mubr.f32.gmra.mrb[0].mxu0 %v2277
  %v2548 = vpop.f32.mrb[0].mxu0
  %v2549 = vadd.f32 %v2252, %v2548
  %v2550 = vpop.f32.mrb[0].mxu0
  %2551 = vmatprep.mubr.f32.mxu0 0.0
  %2552 = vmatmul.mubr.f32.gmra.mrb[0].mxu0 %v2280
  %v2553 = vpop.f32.mrb[0].mxu0
  %v2554 = vadd.f32 %v2252, %v2553
  %v2555 = vpop.f32.mrb[0].mxu0
  %2556 = vmatprep.mubr.f32.mxu0 0.0
  %2557 = vmatmul.mubr.f32.gmra.mrb[0].mxu0 %v2283
  %v2558 = vpop.f32.mrb[0].mxu0
  %v2559 = vadd.f32 %v2252, %v2558
  %v2560 = vpop.f32.mrb[0].mxu0
  %2561 = vmatprep.mubr.f32.mxu0 0.0
  %2562 = vmatmul.mubr.f32.gmra.mrb[0].mxu0 %v2286
  %v2563 = vpop.f32.mrb[0].mxu0
  %v2564 = vadd.f32 %v2252, %v2563
  %v2565 = vpop.f32.mrb[0].mxu0
  %2566 = vmatprep.mubr.f32.mxu0 0.0
  %2567 = vmatmul.mubr.f32.gmra.mrb[0].mxu0 %v2289
  %v2568 = vpop.f32.mrb[0].mxu0
  %v2569 = vadd.f32 %v2252, %v2568
  %v2570 = vpop.f32.mrb[0].mxu0
  %2571 = vmatprep.mubr.f32.mxu0 0.0
  %2572 = vmatmul.mubr.f32.gmra.mrb[0].mxu0 %v2292
  %v2573 = vpop.f32.mrb[0].mxu0
  %v2574 = vadd.f32 %v2252, %v2573
  %v2575 = vpop.f32.mrb[0].mxu0
  %2576 = vmatprep.mubr.f32.mxu0 0.0
  %2577 = vmatmul.mubr.f32.gmra.mrb[0].mxu0 %v2295
  %v2578 = vpop.f32.mrb[0].mxu0
  %v2579 = vadd.f32 %v2252, %v2578
  %v2580 = vpop.f32.mrb[0].mxu0
  %2581 = vmatprep.mubr.f32.mxu0 0.0
  %2582 = vmatmul.mubr.f32.gmra.mrb[0].mxu0 %v2298
  %v2583 = vpop.f32.mrb[0].mxu0
  %v2584 = vadd.f32 %v2252, %v2583
  %v2585 = vpop.f32.mrb[0].mxu0
  %2586 = vmatprep.mubr.f32.mxu0 0.0
  %2587 = vmatmul.mubr.f32.gmra.mrb[0].mxu0 %v2301
  %v2588 = vpop.f32.mrb[0].mxu0
  %v2589 = vadd.f32 %v2252, %v2588
  %v2590 = vpop.f32.mrb[0].mxu0
  %2591 = vmatprep.mubr.f32.mxu0 0.0
  %2592 = vmatmul.mubr.f32.gmra.mrb[0].mxu0 %v2304
  %v2593 = vpop.f32.mrb[0].mxu0
  %v2594 = vadd.f32 %v2252, %v2593
  %v2595 = vpop.f32.mrb[0].mxu0
  %2596 = vmatprep.mubr.f32.mxu0 0.0
  %2597 = vmatmul.mubr.f32.gmra.mrb[0].mxu0 %v2307
  %v2598 = vpop.f32.mrb[0].mxu0
  %v2599 = vadd.f32 %v2252, %v2598
  %v2600 = vpop.f32.mrb[0].mxu0
  %2601 = vmatprep.mubr.f32.mxu0 0.0
  %2602 = vmatmul.mubr.f32.gmra.mrb[0].mxu0 %v2310
  %v2603 = vpop.f32.mrb[0].mxu0
  %v2604 = vadd.f32 %v2252, %v2603
  %v2605 = vpop.f32.mrb[0].mxu0
  %2606 = vmatprep.mubr.f32.mxu0 0.0
  %2607 = vmatmul.mubr.f32.gmra.mrb[0].mxu0 %v2313
  %v2608 = vpop.f32.mrb[0].mxu0
  %v2609 = vadd.f32 %v2252, %v2608
  %v2610 = vpop.f32.mrb[0].mxu0
  %2611 = vmatprep.mubr.f32.mxu0 0.0
  %2612 = vmatmul.mubr.f32.gmra.mrb[0].mxu0 %v2316
  %v2613 = vpop.f32.mrb[0].mxu0
  %v2614 = vadd.f32 %v2252, %v2613
  %v2615 = vpop.f32.mrb[0].mxu0
  %2616 = vmatprep.mubr.f32.mxu0 0.0
  %2617 = vmatmul.mubr.f32.gmra.mrb[0].mxu0 %v2319
  %v2618 = vpop.f32.mrb[0].mxu0
  %v2619 = vadd.f32 %v2252, %v2618
  %v2620 = vpop.f32.mrb[0].mxu0
  %2621 = vmatprep.mubr.f32.mxu0 0.0
  %2622 = vmatmul.mubr.f32.gmra.mrb[0].mxu0 %v2322
  %v2623 = vpop.f32.mrb[0].mxu0
  %v2624 = vadd.f32 %v2252, %v2623
  %v2625 = vpop.f32.mrb[0].mxu0
  %2626 = vmatprep.mubr.f32.mxu0 0.0
  %2627 = vmatmul.mubr.f32.gmra.mrb[0].mxu0 %v2325
  %v2628 = vpop.f32.mrb[0].mxu0
  %v2629 = vadd.f32 %v2252, %v2628
  %v2630 = vpop.f32.mrb[0].mxu0
  %2631 = vmatprep.mubr.f32.mxu0 0.0
  %2632 = vmatmul.mubr.f32.gmra.mrb[0].mxu0 %v2328
  %v2633 = vpop.f32.mrb[0].mxu0
  %v2634 = vadd.f32 %v2252, %v2633
  %v2635 = vpop.f32.mrb[0].mxu0
  %2636 = vmatprep.mubr.f32.mxu0 0.0
  %2637 = vmatmul.mubr.f32.gmra.mrb[0].mxu0 %v2331
  %v2638 = vpop.f32.mrb[0].mxu0
  %v2639 = vadd.f32 %v2252, %v2638
  %v2640 = vpop.f32.mrb[0].mxu0
  %2641 = vmatprep.mubr.f32.mxu0 0.0
  %2642 = vmatmul.mubr.f32.gmra.mrb[0].mxu0 %v2334
  %v2643 = vpop.f32.mrb[0].mxu0
  %v2644 = vadd.f32 %v2252, %v2643
  %v2645 = vpop.f32.mrb[0].mxu0
  %2646 = vmatprep.mubr.f32.mxu0 0.0
  %2647 = vmatmul.mubr.f32.gmra.mrb[0].mxu0 %v2337
  %v2648 = vpop.f32.mrb[0].mxu0
  %v2649 = vadd.f32 %v2252, %v2648
  %v2650 = vpop.f32.mrb[0].mxu0
  %2651 = vmatprep.mubr.f32.mxu0 0.0
  %2652 = vmatmul.mubr.f32.gmra.mrb[0].mxu0 %v2340
  %v2653 = vpop.f32.mrb[0].mxu0
  %v2654 = vadd.f32 %v2252, %v2653
  %v2655 = vpop.f32.mrb[0].mxu0
  %2656 = vmatprep.mubr.f32.mxu0 0.0
  %2657 = vmatmul.mubr.f32.gmra.mrb[0].mxu0 %v2343
  %v2658 = vpop.f32.mrb[0].mxu0
  %v2659 = vadd.f32 %v2252, %v2658
  %v2660 = vpop.f32.mrb[0].mxu0
  %2661 = vmatprep.mubr.f32.mxu0 0.0
  %2662 = vmatmul.mubr.f32.gmra.mrb[0].mxu0 %v2346
  %v2663 = vpop.f32.mrb[0].mxu0
  %v2664 = vadd.f32 %v2252, %v2663
  %v2665 = vpop.f32.mrb[0].mxu0
  %2666 = vmatprep.mubr.f32.mxu0 0.0
  %2667 = vmatmul.mubr.f32.gmra.mrb[0].mxu0 %v2349
  %v2668 = vpop.f32.mrb[0].mxu0
  %v2669 = vadd.f32 %v2252, %v2668
  %v2670 = vpop.f32.mrb[0].mxu0
  %2671 = vmatprep.mubr.f32.mxu0 0.0
  %2672 = vmatmul.mubr.f32.gmra.mrb[0].mxu0 %v2352
  %v2673 = vpop.f32.mrb[0].mxu0
  %v2674 = vadd.f32 %v2252, %v2673
  %v2675 = vpop.f32.mrb[0].mxu0
  %2676 = vmatprep.mubr.f32.mxu0 0.0
  %2677 = vmatmul.mubr.f32.gmra.mrb[0].mxu0 %v2355
  %v2678 = vpop.f32.mrb[0].mxu0
  %v2679 = vadd.f32 %v2252, %v2678
  %v2680 = vpop.f32.mrb[0].mxu0
  %2681 = vmatprep.mubr.f32.mxu0 0.0
  %2682 = vmatmul.mubr.f32.gmra.mrb[0].mxu0 %v2358
  %v2683 = vpop.f32.mrb[0].mxu0
  %v2684 = vadd.f32 %v2252, %v2683
  %v2685 = vpop.f32.mrb[0].mxu0
  %2686 = vmatprep.mubr.f32.mxu0 0.0
  %2687 = vmatmul.mubr.f32.gmra.mrb[0].mxu0 %v2361
  %v2688 = vpop.f32.mrb[0].mxu0
  %v2689 = vadd.f32 %v2252, %v2688
  %v2690 = vpop.f32.mrb[0].mxu0
  %2691 = vmatprep.mubr.f32.mxu0 0.0
  %2692 = vmatmul.mubr.f32.gmra.mrb[0].mxu0 %v2364
  %v2693 = vpop.f32.mrb[0].mxu0
  %v2694 = vadd.f32 %v2252, %v2693
  %v2695 = vpop.f32.mrb[0].mxu0
  %2696 = vmatprep.mubr.f32.mxu0 0.0
  %2697 = vmatmul.mubr.f32.gmra.mrb[0].mxu0 %v2367
  %v2698 = vpop.f32.mrb[0].mxu0
  %v2699 = vadd.f32 %v2252, %v2698
  %v2700 = vpop.f32.mrb[0].mxu0
  %2701 = vmatprep.mubr.f32.mxu0 0.0
  %2702 = vmatmul.mubr.f32.gmra.mrb[0].mxu0 %v2370
  %v2703 = vpop.f32.mrb[0].mxu0
  %v2704 = vadd.f32 %v2252, %v2703
  %v2705 = vpop.f32.mrb[0].mxu0
  %2706 = vmatprep.mubr.f32.mxu0 0.0
  %2707 = vmatmul.mubr.f32.gmra.mrb[0].mxu0 %v2373
  %v2708 = vpop.f32.mrb[0].mxu0
  %v2709 = vadd.f32 %v2252, %v2708
  %v2710 = vpop.f32.mrb[0].mxu0
  %2711 = vmatprep.mubr.f32.mxu0 0.0
  %2712 = vmatmul.mubr.f32.gmra.mrb[0].mxu0 %v2376
  %v2713 = vpop.f32.mrb[0].mxu0
  %v2714 = vadd.f32 %v2252, %v2713
  %v2715 = vpop.f32.mrb[0].mxu0
  %2716 = vmatprep.mubr.f32.mxu0 0.0
  %2717 = vmatmul.mubr.f32.gmra.mrb[0].mxu0 %v2379
  %v2718 = vpop.f32.mrb[0].mxu0
  %v2719 = vadd.f32 %v2252, %v2718
  %v2720 = vpop.f32.mrb[0].mxu0
  %2721 = vmatprep.mubr.f32.mxu0 0.0
  %2722 = vmatmul.mubr.f32.gmra.mrb[0].mxu0 %v2382
  %v2723 = vpop.f32.mrb[0].mxu0
  %v2724 = vadd.f32 %v2252, %v2723
  %v2725 = vpop.f32.mrb[0].mxu0
  %2726 = vmatprep.mubr.f32.mxu0 0.0
  %2727 = vmatmul.mubr.f32.gmra.mrb[0].mxu0 %v2385
  %v2728 = vpop.f32.mrb[0].mxu0
  %v2729 = vadd.f32 %v2252, %v2728
  %v2730 = vpop.f32.mrb[0].mxu0
  %2731 = vmatprep.mubr.f32.mxu0 0.0
  %2732 = vmatmul.mubr.f32.gmra.mrb[0].mxu0 %v2388
  %v2733 = vpop.f32.mrb[0].mxu0
  %v2734 = vadd.f32 %v2252, %v2733
  %v2735 = vpop.f32.mrb[0].mxu0
  %2736 = vmatprep.mubr.f32.mxu0 0.0
  %2737 = vmatmul.mubr.f32.gmra.mrb[0].mxu0 %v2391
  %v2738 = vpop.f32.mrb[0].mxu0
  %v2739 = vadd.f32 %v2252, %v2738
  %v2740 = vpop.f32.mrb[0].mxu0
  %2741 = vmatprep.mubr.f32.mxu0 0.0
  %2742 = vmatmul.mubr.f32.gmra.mrb[0].mxu0 %v2394
  %v2743 = vpop.f32.mrb[0].mxu0
  %v2744 = vadd.f32 %v2252, %v2743
  %v2745 = vpop.f32.mrb[0].mxu0
  %2746 = vmatprep.mubr.f32.mxu0 0.0
  %2747 = vmatmul.mubr.f32.gmra.mrb[0].mxu0 %v2397
  %v2748 = vpop.f32.mrb[0].mxu0
  %v2749 = vadd.f32 %v2252, %v2748
  %v2750 = vpop.f32.mrb[0].mxu0
  %2751 = vmatprep.mubr.f32.mxu0 0.0
  %2752 = vmatmul.mubr.f32.gmra.mrb[0].mxu0 %v2400
  %v2753 = vpop.f32.mrb[0].mxu0
  %v2754 = vadd.f32 %v2252, %v2753
  %v2755 = vpop.f32.mrb[0].mxu0
  %2756 = vmatprep.mubr.f32.mxu0 0.0
  %2757 = vmatmul.mubr.f32.gmra.mrb[0].mxu0 %v2403
  %v2758 = vpop.f32.mrb[0].mxu0
  %v2759 = vadd.f32 %v2252, %v2758
  %v2760 = vpop.f32.mrb[0].mxu0
  %2761 = vmatprep.mubr.f32.mxu0 0.0
  %2762 = vmatmul.mubr.f32.gmra.mrb[0].mxu0 %v2406
  %v2763 = vpop.f32.mrb[0].mxu0
  %v2764 = vadd.f32 %v2252, %v2763
  %v2765 = vpop.f32.mrb[0].mxu0
  %2766 = vmatprep.mubr.f32.mxu0 0.0
  %2767 = vmatmul.mubr.f32.gmra.mrb[0].mxu0 %v2409
  %v2768 = vpop.f32.mrb[0].mxu0
  %v2769 = vadd.f32 %v2252, %v2768
  %v2770 = vpop.f32.mrb[0].mxu0
  %2771 = vmatprep.mubr.f32.mxu0 0.0
  %2772 = vmatmul.mubr.f32.gmra.mrb[0].mxu0 %v2412
  %v2773 = vpop.f32.mrb[0].mxu0
  %v2774 = vadd.f32 %v2252, %v2773
  %v2775 = vpop.f32.mrb[0].mxu0
  %2776 = vmatprep.mubr.f32.mxu0 0.0
  %2777 = vmatmul.mubr.f32.gmra.mrb[0].mxu0 %v2415
  %v2778 = vpop.f32.mrb[0].mxu0
  %v2779 = vadd.f32 %v2252, %v2778
  %v2780 = vpop.f32.mrb[0].mxu0
  %2781 = vmatprep.mubr.f32.mxu0 0.0
  %2782 = vmatmul.mubr.f32.gmra.mrb[0].mxu0 %v2418
  %v2783 = vpop.f32.mrb[0].mxu0
  %v2784 = vadd.f32 %v2252, %v2783
  %v2785 = vpop.f32.mrb[0].mxu0
  %2786 = vmatprep.mubr.f32.mxu0 0.0
  %2787 = vmatmul.mubr.f32.gmra.mrb[0].mxu0 %v2421
  %v2788 = vpop.f32.mrb[0].mxu0
  %v2789 = vadd.f32 %v2252, %v2788
  %v2790 = vpop.f32.mrb[0].mxu0
  %2791 = vmatprep.mubr.f32.mxu0 0.0
  %2792 = vmatmul.mubr.f32.gmra.mrb[0].mxu0 %v2424
  %v2793 = vpop.f32.mrb[0].mxu0
  %v2794 = vadd.f32 %v2252, %v2793
  %v2795 = vpop.f32.mrb[0].mxu0
  %2796 = vmatprep.mubr.f32.mxu0 0.0
  %2797 = vmatmul.mubr.f32.gmra.mrb[0].mxu0 %v2427
  %v2798 = vpop.f32.mrb[0].mxu0
  %v2799 = vadd.f32 %v2252, %v2798
  %v2800 = vpop.f32.mrb[0].mxu0
  %2801 = vmatprep.mubr.f32.mxu0 0.0
  %2802 = vmatmul.mubr.f32.gmra.mrb[0].mxu0 %v2430
  %v2803 = vpop.f32.mrb[0].mxu0
  %v2804 = vadd.f32 %v2252, %v2803
  %v2805 = vpop.f32.mrb[0].mxu0
  %2806 = vmatprep.mubr.f32.mxu0 0.0
  %2807 = vmatmul.mubr.f32.gmra.mrb[0].mxu0 %v2433
  %v2808 = vpop.f32.mrb[0].mxu0
  %v2809 = vadd.f32 %v2252, %v2808
  %v2810 = vpop.f32.mrb[0].mxu0
  %2811 = vmatprep.mubr.f32.mxu0 0.0
  %2812 = vmatmul.mubr.f32.gmra.mrb[0].mxu0 %v2436
  %v2813 = vpop.f32.mrb[0].mxu0
  %v2814 = vadd.f32 %v2252, %v2813
  %v2815 = vpop.f32.mrb[0].mxu0
  %2816 = vmatprep.mubr.f32.mxu0 0.0
  %2817 = vmatmul.mubr.f32.gmra.mrb[0].mxu0 %v2439
  %v2818 = vpop.f32.mrb[0].mxu0
  %v2819 = vadd.f32 %v2252, %v2818
  %v2820 = vpop.f32.mrb[0].mxu0
  %2821 = vmatprep.mubr.f32.mxu0 0.0
  %2822 = vmatmul.mubr.f32.gmra.mrb[0].mxu0 %v2442
  %v2823 = vpop.f32.mrb[0].mxu0
  %v2824 = vadd.f32 %v2252, %v2823
  %v2825 = vpop.f32.mrb[0].mxu0
  %2826 = vmatprep.mubr.f32.mxu0 0.0
  %2827 = vmatmul.mubr.f32.gmra.mrb[0].mxu0 %v2445
  %v2828 = vpop.f32.mrb[0].mxu0
  %v2829 = vadd.f32 %v2252, %v2828
  %v2830 = vpop.f32.mrb[0].mxu0
  %2831 = vdwg.mxu0
  %v2832 = vxor.u32 %v2514, 2147483648
  %v2833 = vxor.u32 %v2519, 2147483648
  %v2834 = vxor.u32 %v2524, 2147483648
  %v2835 = vxor.u32 %v2529, 2147483648
  %v2836 = vxor.u32 %v2534, 2147483648
  %v2837 = vxor.u32 %v2539, 2147483648
  %v2838 = vxor.u32 %v2544, 2147483648
  %v2839 = vxor.u32 %v2549, 2147483648
  %v2840 = vxor.u32 %v2554, 2147483648
  %v2841 = vxor.u32 %v2559, 2147483648
  %v2842 = vxor.u32 %v2564, 2147483648
  %v2843 = vxor.u32 %v2569, 2147483648
  %v2844 = vxor.u32 %v2574, 2147483648
  %v2845 = vxor.u32 %v2579, 2147483648
  %v2846 = vxor.u32 %v2584, 2147483648
  %v2847 = vxor.u32 %v2589, 2147483648
  %v2848 = vxor.u32 %v2594, 2147483648
  %v2849 = vxor.u32 %v2599, 2147483648
  %v2850 = vxor.u32 %v2604, 2147483648
  %v2851 = vxor.u32 %v2609, 2147483648
  %v2852 = vxor.u32 %v2614, 2147483648
  %v2853 = vxor.u32 %v2619, 2147483648
  %v2854 = vxor.u32 %v2624, 2147483648
  %v2855 = vxor.u32 %v2629, 2147483648
  %v2856 = vxor.u32 %v2634, 2147483648
  %v2857 = vxor.u32 %v2639, 2147483648
  %v2858 = vxor.u32 %v2644, 2147483648
  %v2859 = vxor.u32 %v2649, 2147483648
  %v2860 = vxor.u32 %v2654, 2147483648
  %v2861 = vxor.u32 %v2659, 2147483648
  %v2862 = vxor.u32 %v2664, 2147483648
  %v2863 = vxor.u32 %v2669, 2147483648
  %v2864 = vxor.u32 %v2674, 2147483648
  %v2865 = vxor.u32 %v2679, 2147483648
  %v2866 = vxor.u32 %v2684, 2147483648
  %v2867 = vxor.u32 %v2689, 2147483648
  %v2868 = vxor.u32 %v2694, 2147483648
  %v2869 = vxor.u32 %v2699, 2147483648
  %v2870 = vxor.u32 %v2704, 2147483648
  %v2871 = vxor.u32 %v2709, 2147483648
  %v2872 = vxor.u32 %v2714, 2147483648
  %v2873 = vxor.u32 %v2719, 2147483648
  %v2874 = vxor.u32 %v2724, 2147483648
  %v2875 = vxor.u32 %v2729, 2147483648
  %v2876 = vxor.u32 %v2734, 2147483648
  %v2877 = vxor.u32 %v2739, 2147483648
  %v2878 = vxor.u32 %v2744, 2147483648
  %v2879 = vxor.u32 %v2749, 2147483648
  %v2880 = vxor.u32 %v2754, 2147483648
  %v2881 = vxor.u32 %v2759, 2147483648
  %v2882 = vxor.u32 %v2764, 2147483648
  %v2883 = vxor.u32 %v2769, 2147483648
  %v2884 = vxor.u32 %v2774, 2147483648
  %v2885 = vxor.u32 %v2779, 2147483648
  %v2886 = vxor.u32 %v2784, 2147483648
  %v2887 = vxor.u32 %v2789, 2147483648
  %v2888 = vxor.u32 %v2794, 2147483648
  %v2889 = vxor.u32 %v2799, 2147483648
  %v2890 = vxor.u32 %v2804, 2147483648
  %v2891 = vxor.u32 %v2809, 2147483648
  %v2892 = vxor.u32 %v2814, 2147483648
  %v2893 = vxor.u32 %v2819, 2147483648
  %v2894 = vxor.u32 %v2824, 2147483648
  %v2895 = vxor.u32 %v2829, 2147483648
  %v2896 = vmul.f32 %v2832, 1.442695
  %v2897 = vpow.pop %v2896
  %v2898 = vmul.f32 %v2833, 1.442695
  %v2899 = vpow.pop %v2898
  %v2900 = vmul.f32 %v2834, 1.442695
  %v2901 = vpow.pop %v2900
  %v2902 = vmul.f32 %v2835, 1.442695
  %v2903 = vpow.pop %v2902
  %v2904 = vmul.f32 %v2836, 1.442695
  %v2905 = vpow.pop %v2904
  %v2906 = vmul.f32 %v2837, 1.442695
  %v2907 = vpow.pop %v2906
  %v2908 = vmul.f32 %v2838, 1.442695
  %v2909 = vpow.pop %v2908
  %v2910 = vmul.f32 %v2839, 1.442695
  %v2911 = vpow.pop %v2910
  %v2912 = vmul.f32 %v2840, 1.442695
  %v2913 = vpow.pop %v2912
  %v2914 = vmul.f32 %v2841, 1.442695
  %v2915 = vpow.pop %v2914
  %v2916 = vmul.f32 %v2842, 1.442695
  %v2917 = vpow.pop %v2916
  %v2918 = vmul.f32 %v2843, 1.442695
  %v2919 = vpow.pop %v2918
  %v2920 = vmul.f32 %v2844, 1.442695
  %v2921 = vpow.pop %v2920
  %v2922 = vmul.f32 %v2845, 1.442695
  %v2923 = vpow.pop %v2922
  %v2924 = vmul.f32 %v2846, 1.442695
  %v2925 = vpow.pop %v2924
  %v2926 = vmul.f32 %v2847, 1.442695
  %v2927 = vpow.pop %v2926
  %v2928 = vmul.f32 %v2848, 1.442695
  %v2929 = vpow.pop %v2928
  %v2930 = vmul.f32 %v2849, 1.442695
  %v2931 = vpow.pop %v2930
  %v2932 = vmul.f32 %v2850, 1.442695
  %v2933 = vpow.pop %v2932
  %v2934 = vmul.f32 %v2851, 1.442695
  %v2935 = vpow.pop %v2934
  %v2936 = vmul.f32 %v2852, 1.442695
  %v2937 = vpow.pop %v2936
  %v2938 = vmul.f32 %v2853, 1.442695
  %v2939 = vpow.pop %v2938
  %v2940 = vmul.f32 %v2854, 1.442695
  %v2941 = vpow.pop %v2940
  %v2942 = vmul.f32 %v2855, 1.442695
  %v2943 = vpow.pop %v2942
  %v2944 = vmul.f32 %v2856, 1.442695
  %v2945 = vpow.pop %v2944
  %v2946 = vmul.f32 %v2857, 1.442695
  %v2947 = vpow.pop %v2946
  %v2948 = vmul.f32 %v2858, 1.442695
  %v2949 = vpow.pop %v2948
  %v2950 = vmul.f32 %v2859, 1.442695
  %v2951 = vpow.pop %v2950
  %v2952 = vmul.f32 %v2860, 1.442695
  %v2953 = vpow.pop %v2952
  %v2954 = vmul.f32 %v2861, 1.442695
  %v2955 = vpow.pop %v2954
  %v2956 = vmul.f32 %v2862, 1.442695
  %v2957 = vpow.pop %v2956
  %v2958 = vmul.f32 %v2863, 1.442695
  %v2959 = vpow.pop %v2958
  %v2960 = vmul.f32 %v2864, 1.442695
  %v2961 = vpow.pop %v2960
  %v2962 = vmul.f32 %v2865, 1.442695
  %v2963 = vpow.pop %v2962
  %v2964 = vmul.f32 %v2866, 1.442695
  %v2965 = vpow.pop %v2964
  %v2966 = vmul.f32 %v2867, 1.442695
  %v2967 = vpow.pop %v2966
  %v2968 = vmul.f32 %v2868, 1.442695
  %v2969 = vpow.pop %v2968
  %v2970 = vmul.f32 %v2869, 1.442695
  %v2971 = vpow.pop %v2970
  %v2972 = vmul.f32 %v2870, 1.442695
  %v2973 = vpow.pop %v2972
  %v2974 = vmul.f32 %v2871, 1.442695
  %v2975 = vpow.pop %v2974
  %v2976 = vmul.f32 %v2872, 1.442695
  %v2977 = vpow.pop %v2976
  %v2978 = vmul.f32 %v2873, 1.442695
  %v2979 = vpow.pop %v2978
  %v2980 = vmul.f32 %v2874, 1.442695
  %v2981 = vpow.pop %v2980
  %v2982 = vmul.f32 %v2875, 1.442695
  %v2983 = vpow.pop %v2982
  %v2984 = vmul.f32 %v2876, 1.442695
  %v2985 = vpow.pop %v2984
  %v2986 = vmul.f32 %v2877, 1.442695
  %v2987 = vpow.pop %v2986
  %v2988 = vmul.f32 %v2878, 1.442695
  %v2989 = vpow.pop %v2988
  %v2990 = vmul.f32 %v2879, 1.442695
  %v2991 = vpow.pop %v2990
  %v2992 = vmul.f32 %v2880, 1.442695
  %v2993 = vpow.pop %v2992
  %v2994 = vmul.f32 %v2881, 1.442695
  %v2995 = vpow.pop %v2994
  %v2996 = vmul.f32 %v2882, 1.442695
  %v2997 = vpow.pop %v2996
  %v2998 = vmul.f32 %v2883, 1.442695
  %v2999 = vpow.pop %v2998
  %v3000 = vmul.f32 %v2884, 1.442695
  %v3001 = vpow.pop %v3000
  %v3002 = vmul.f32 %v2885, 1.442695
  %v3003 = vpow.pop %v3002
  %v3004 = vmul.f32 %v2886, 1.442695
  %v3005 = vpow.pop %v3004
  %v3006 = vmul.f32 %v2887, 1.442695
  %v3007 = vpow.pop %v3006
  %v3008 = vmul.f32 %v2888, 1.442695
  %v3009 = vpow.pop %v3008
  %v3010 = vmul.f32 %v2889, 1.442695
  %v3011 = vpow.pop %v3010
  %v3012 = vmul.f32 %v2890, 1.442695
  %v3013 = vpow.pop %v3012
  %v3014 = vmul.f32 %v2891, 1.442695
  %v3015 = vpow.pop %v3014
  %v3016 = vmul.f32 %v2892, 1.442695
  %v3017 = vpow.pop %v3016
  %v3018 = vmul.f32 %v2893, 1.442695
  %v3019 = vpow.pop %v3018
  %v3020 = vmul.f32 %v2894, 1.442695
  %v3021 = vpow.pop %v3020
  %v3022 = vmul.f32 %v2895, 1.442695
  %v3023 = vpow.pop %v3022
  %v3024 = vadd.f32 %v2897, 1.0
  %v3025 = vadd.f32 %v2899, 1.0
  %v3026 = vadd.f32 %v2901, 1.0
  %v3027 = vadd.f32 %v2903, 1.0
  %v3028 = vadd.f32 %v2905, 1.0
  %v3029 = vadd.f32 %v2907, 1.0
  %v3030 = vadd.f32 %v2909, 1.0
  %v3031 = vadd.f32 %v2911, 1.0
  %v3032 = vadd.f32 %v2913, 1.0
  %v3033 = vadd.f32 %v2915, 1.0
  %v3034 = vadd.f32 %v2917, 1.0
  %v3035 = vadd.f32 %v2919, 1.0
  %v3036 = vadd.f32 %v2921, 1.0
  %v3037 = vadd.f32 %v2923, 1.0
  %v3038 = vadd.f32 %v2925, 1.0
  %v3039 = vadd.f32 %v2927, 1.0
  %v3040 = vadd.f32 %v2929, 1.0
  %v3041 = vadd.f32 %v2931, 1.0
  %v3042 = vadd.f32 %v2933, 1.0
  %v3043 = vadd.f32 %v2935, 1.0
  %v3044 = vadd.f32 %v2937, 1.0
  %v3045 = vadd.f32 %v2939, 1.0
  %v3046 = vadd.f32 %v2941, 1.0
  %v3047 = vadd.f32 %v2943, 1.0
  %v3048 = vadd.f32 %v2945, 1.0
  %v3049 = vadd.f32 %v2947, 1.0
  %v3050 = vadd.f32 %v2949, 1.0
  %v3051 = vadd.f32 %v2951, 1.0
  %v3052 = vadd.f32 %v2953, 1.0
  %v3053 = vadd.f32 %v2955, 1.0
  %v3054 = vadd.f32 %v2957, 1.0
  %v3055 = vadd.f32 %v2959, 1.0
  %v3056 = vadd.f32 %v2961, 1.0
  %v3057 = vadd.f32 %v2963, 1.0
  %v3058 = vadd.f32 %v2965, 1.0
  %v3059 = vadd.f32 %v2967, 1.0
  %v3060 = vadd.f32 %v2969, 1.0
  %v3061 = vadd.f32 %v2971, 1.0
  %v3062 = vadd.f32 %v2973, 1.0
  %v3063 = vadd.f32 %v2975, 1.0
  %v3064 = vadd.f32 %v2977, 1.0
  %v3065 = vadd.f32 %v2979, 1.0
  %v3066 = vadd.f32 %v2981, 1.0
  %v3067 = vadd.f32 %v2983, 1.0
  %v3068 = vadd.f32 %v2985, 1.0
  %v3069 = vadd.f32 %v2987, 1.0
  %v3070 = vadd.f32 %v2989, 1.0
  %v3071 = vadd.f32 %v2991, 1.0
  %v3072 = vadd.f32 %v2993, 1.0
  %v3073 = vadd.f32 %v2995, 1.0
  %v3074 = vadd.f32 %v2997, 1.0
  %v3075 = vadd.f32 %v2999, 1.0
  %v3076 = vadd.f32 %v3001, 1.0
  %v3077 = vadd.f32 %v3003, 1.0
  %v3078 = vadd.f32 %v3005, 1.0
  %v3079 = vadd.f32 %v3007, 1.0
  %v3080 = vadd.f32 %v3009, 1.0
  %v3081 = vadd.f32 %v3011, 1.0
  %v3082 = vadd.f32 %v3013, 1.0
  %v3083 = vadd.f32 %v3015, 1.0
  %v3084 = vadd.f32 %v3017, 1.0
  %v3085 = vadd.f32 %v3019, 1.0
  %v3086 = vadd.f32 %v3021, 1.0
  %v3087 = vadd.f32 %v3023, 1.0
  %v3088 = vrcp.pop %v3024
  %v3089 = vmul.f32 1.0, %v3088
  %v3090 = vrcp.pop %v3025
  %v3091 = vmul.f32 1.0, %v3090
  %v3092 = vrcp.pop %v3026
  %v3093 = vmul.f32 1.0, %v3092
  %v3094 = vrcp.pop %v3027
  %v3095 = vmul.f32 1.0, %v3094
  %v3096 = vrcp.pop %v3028
  %v3097 = vmul.f32 1.0, %v3096
  %v3098 = vrcp.pop %v3029
  %v3099 = vmul.f32 1.0, %v3098
  %v3100 = vrcp.pop %v3030
  %v3101 = vmul.f32 1.0, %v3100
  %v3102 = vrcp.pop %v3031
  %v3103 = vmul.f32 1.0, %v3102
  %v3104 = vrcp.pop %v3032
  %v3105 = vmul.f32 1.0, %v3104
  %v3106 = vrcp.pop %v3033
  %v3107 = vmul.f32 1.0, %v3106
  %v3108 = vrcp.pop %v3034
  %v3109 = vmul.f32 1.0, %v3108
  %v3110 = vrcp.pop %v3035
  %v3111 = vmul.f32 1.0, %v3110
  %v3112 = vrcp.pop %v3036
  %v3113 = vmul.f32 1.0, %v3112
  %v3114 = vrcp.pop %v3037
  %v3115 = vmul.f32 1.0, %v3114
  %v3116 = vrcp.pop %v3038
  %v3117 = vmul.f32 1.0, %v3116
  %v3118 = vrcp.pop %v3039
  %v3119 = vmul.f32 1.0, %v3118
  %v3120 = vrcp.pop %v3040
  %v3121 = vmul.f32 1.0, %v3120
  %v3122 = vrcp.pop %v3041
  %v3123 = vmul.f32 1.0, %v3122
  %v3124 = vrcp.pop %v3042
  %v3125 = vmul.f32 1.0, %v3124
  %v3126 = vrcp.pop %v3043
  %v3127 = vmul.f32 1.0, %v3126
  %v3128 = vrcp.pop %v3044
  %v3129 = vmul.f32 1.0, %v3128
  %v3130 = vrcp.pop %v3045
  %v3131 = vmul.f32 1.0, %v3130
  %v3132 = vrcp.pop %v3046
  %v3133 = vmul.f32 1.0, %v3132
  %v3134 = vrcp.pop %v3047
  %v3135 = vmul.f32 1.0, %v3134
  %v3136 = vrcp.pop %v3048
  %v3137 = vmul.f32 1.0, %v3136
  %v3138 = vrcp.pop %v3049
  %v3139 = vmul.f32 1.0, %v3138
  %v3140 = vrcp.pop %v3050
  %v3141 = vmul.f32 1.0, %v3140
  %v3142 = vrcp.pop %v3051
  %v3143 = vmul.f32 1.0, %v3142
  %v3144 = vrcp.pop %v3052
  %v3145 = vmul.f32 1.0, %v3144
  %v3146 = vrcp.pop %v3053
  %v3147 = vmul.f32 1.0, %v3146
  %v3148 = vrcp.pop %v3054
  %v3149 = vmul.f32 1.0, %v3148
  %v3150 = vrcp.pop %v3055
  %v3151 = vmul.f32 1.0, %v3150
  %v3152 = vrcp.pop %v3056
  %v3153 = vmul.f32 1.0, %v3152
  %v3154 = vrcp.pop %v3057
  %v3155 = vmul.f32 1.0, %v3154
  %v3156 = vrcp.pop %v3058
  %v3157 = vmul.f32 1.0, %v3156
  %v3158 = vrcp.pop %v3059
  %v3159 = vmul.f32 1.0, %v3158
  %v3160 = vrcp.pop %v3060
  %v3161 = vmul.f32 1.0, %v3160
  %v3162 = vrcp.pop %v3061
  %v3163 = vmul.f32 1.0, %v3162
  %v3164 = vrcp.pop %v3062
  %v3165 = vmul.f32 1.0, %v3164
  %v3166 = vrcp.pop %v3063
  %v3167 = vmul.f32 1.0, %v3166
  %v3168 = vrcp.pop %v3064
  %v3169 = vmul.f32 1.0, %v3168
  %v3170 = vrcp.pop %v3065
  %v3171 = vmul.f32 1.0, %v3170
  %v3172 = vrcp.pop %v3066
  %v3173 = vmul.f32 1.0, %v3172
  %v3174 = vrcp.pop %v3067
  %v3175 = vmul.f32 1.0, %v3174
  %v3176 = vrcp.pop %v3068
  %v3177 = vmul.f32 1.0, %v3176
  %v3178 = vrcp.pop %v3069
  %v3179 = vmul.f32 1.0, %v3178
  %v3180 = vrcp.pop %v3070
  %v3181 = vmul.f32 1.0, %v3180
  %v3182 = vrcp.pop %v3071
  %v3183 = vmul.f32 1.0, %v3182
  %v3184 = vrcp.pop %v3072
  %v3185 = vmul.f32 1.0, %v3184
  %v3186 = vrcp.pop %v3073
  %v3187 = vmul.f32 1.0, %v3186
  %v3188 = vrcp.pop %v3074
  %v3189 = vmul.f32 1.0, %v3188
  %v3190 = vrcp.pop %v3075
  %v3191 = vmul.f32 1.0, %v3190
  %v3192 = vrcp.pop %v3076
  %v3193 = vmul.f32 1.0, %v3192
  %v3194 = vrcp.pop %v3077
  %v3195 = vmul.f32 1.0, %v3194
  %v3196 = vrcp.pop %v3078
  %v3197 = vmul.f32 1.0, %v3196
  %v3198 = vrcp.pop %v3079
  %v3199 = vmul.f32 1.0, %v3198
  %v3200 = vrcp.pop %v3080
  %v3201 = vmul.f32 1.0, %v3200
  %v3202 = vrcp.pop %v3081
  %v3203 = vmul.f32 1.0, %v3202
  %v3204 = vrcp.pop %v3082
  %v3205 = vmul.f32 1.0, %v3204
  %v3206 = vrcp.pop %v3083
  %v3207 = vmul.f32 1.0, %v3206
  %v3208 = vrcp.pop %v3084
  %v3209 = vmul.f32 1.0, %v3208
  %v3210 = vrcp.pop %v3085
  %v3211 = vmul.f32 1.0, %v3210
  %v3212 = vrcp.pop %v3086
  %v3213 = vmul.f32 1.0, %v3212
  %v3214 = vrcp.pop %v3087
  %v3215 = vmul.f32 1.0, %v3214
  %v3216 = vmul.f32 %v2514, %v3089
  %v3217 = vmul.f32 %v2519, %v3091
  %v3218 = vmul.f32 %v2524, %v3093
  %v3219 = vmul.f32 %v2529, %v3095
  %v3220 = vmul.f32 %v2534, %v3097
  %v3221 = vmul.f32 %v2539, %v3099
  %v3222 = vmul.f32 %v2544, %v3101
  %v3223 = vmul.f32 %v2549, %v3103
  %v3224 = vmul.f32 %v2554, %v3105
  %v3225 = vmul.f32 %v2559, %v3107
  %v3226 = vmul.f32 %v2564, %v3109
  %v3227 = vmul.f32 %v2569, %v3111
  %v3228 = vmul.f32 %v2574, %v3113
  %v3229 = vmul.f32 %v2579, %v3115
  %v3230 = vmul.f32 %v2584, %v3117
  %v3231 = vmul.f32 %v2589, %v3119
  %v3232 = vmul.f32 %v2594, %v3121
  %v3233 = vmul.f32 %v2599, %v3123
  %v3234 = vmul.f32 %v2604, %v3125
  %v3235 = vmul.f32 %v2609, %v3127
  %v3236 = vmul.f32 %v2614, %v3129
  %v3237 = vmul.f32 %v2619, %v3131
  %v3238 = vmul.f32 %v2624, %v3133
  %v3239 = vmul.f32 %v2629, %v3135
  %v3240 = vmul.f32 %v2634, %v3137
  %v3241 = vmul.f32 %v2639, %v3139
  %v3242 = vmul.f32 %v2644, %v3141
  %v3243 = vmul.f32 %v2649, %v3143
  %v3244 = vmul.f32 %v2654, %v3145
  %v3245 = vmul.f32 %v2659, %v3147
  %v3246 = vmul.f32 %v2664, %v3149
  %v3247 = vmul.f32 %v2669, %v3151
  %v3248 = vmul.f32 %v2674, %v3153
  %v3249 = vmul.f32 %v2679, %v3155
  %v3250 = vmul.f32 %v2684, %v3157
  %v3251 = vmul.f32 %v2689, %v3159
  %v3252 = vmul.f32 %v2694, %v3161
  %v3253 = vmul.f32 %v2699, %v3163
  %v3254 = vmul.f32 %v2704, %v3165
  %v3255 = vmul.f32 %v2709, %v3167
  %v3256 = vmul.f32 %v2714, %v3169
  %v3257 = vmul.f32 %v2719, %v3171
  %v3258 = vmul.f32 %v2724, %v3173
  %v3259 = vmul.f32 %v2729, %v3175
  %v3260 = vmul.f32 %v2734, %v3177
  %v3261 = vmul.f32 %v2739, %v3179
  %v3262 = vmul.f32 %v2744, %v3181
  %v3263 = vmul.f32 %v2749, %v3183
  %v3264 = vmul.f32 %v2754, %v3185
  %v3265 = vmul.f32 %v2759, %v3187
  %v3266 = vmul.f32 %v2764, %v3189
  %v3267 = vmul.f32 %v2769, %v3191
  %v3268 = vmul.f32 %v2774, %v3193
  %v3269 = vmul.f32 %v2779, %v3195
  %v3270 = vmul.f32 %v2784, %v3197
  %v3271 = vmul.f32 %v2789, %v3199
  %v3272 = vmul.f32 %v2794, %v3201
  %v3273 = vmul.f32 %v2799, %v3203
  %v3274 = vmul.f32 %v2804, %v3205
  %v3275 = vmul.f32 %v2809, %v3207
  %v3276 = vmul.f32 %v2814, %v3209
  %v3277 = vmul.f32 %v2819, %v3211
  %v3278 = vmul.f32 %v2824, %v3213
  %v3279 = vmul.f32 %v2829, %v3215
  %s3280 = scalar_lea.vmem %s5, 64
  %v3281 = vld [vmem:[%s3280] sm:$0xff]
  %v3282 = vld [vmem:[%s3280 + $0x8] sm:$0xff]
  %v3283 = vld [vmem:[%s3280 + $0x10] sm:$0xff]
  %v3284 = vld [vmem:[%s3280 + $0x18] sm:$0xff]
  %v3285 = vld [vmem:[%s3280 + $0x20] sm:$0xff]
  %v3286 = vld [vmem:[%s3280 + $0x28] sm:$0xff]
  %v3287 = vld [vmem:[%s3280 + $0x30] sm:$0xff]
  %v3288 = vld [vmem:[%s3280 + $0x38] sm:$0xff]
  %s3289 = scalar_lea.vmem %s6, 1
  %v3290 = vld [vmem:[%s3289] sm:$0x1]
  %v3292 = vlaneseq
  %v3293 = vshrl.u32 %v3292, 7
  %v3294 = vsub.s32 0, %v3293
  %v3295 = vrot.slane %v3290, %v3294
  %v3298 = vsel %vm2254, %v3216, 0
  %v3301 = vsel %vm2254, %v3217, 0
  %v3304 = vsel %vm2254, %v3218, 0
  %v3307 = vsel %vm2254, %v3219, 0
  %v3310 = vsel %vm2254, %v3220, 0
  %v3313 = vsel %vm2254, %v3221, 0
  %v3316 = vsel %vm2254, %v3222, 0
  %v3319 = vsel %vm2254, %v3223, 0
  %v3322 = vsel %vm2254, %v3224, 0
  %v3325 = vsel %vm2254, %v3225, 0
  %v3328 = vsel %vm2254, %v3226, 0
  %v3331 = vsel %vm2254, %v3227, 0
  %v3334 = vsel %vm2254, %v3228, 0
  %v3337 = vsel %vm2254, %v3229, 0
  %v3340 = vsel %vm2254, %v3230, 0
  %v3343 = vsel %vm2254, %v3231, 0
  %v3346 = vsel %vm2254, %v3232, 0
  %v3349 = vsel %vm2254, %v3233, 0
  %v3352 = vsel %vm2254, %v3234, 0
  %v3355 = vsel %vm2254, %v3235, 0
  %v3358 = vsel %vm2254, %v3236, 0
  %v3361 = vsel %vm2254, %v3237, 0
  %v3364 = vsel %vm2254, %v3238, 0
  %v3367 = vsel %vm2254, %v3239, 0
  %v3370 = vsel %vm2254, %v3240, 0
  %v3373 = vsel %vm2254, %v3241, 0
  %v3376 = vsel %vm2254, %v3242, 0
  %v3379 = vsel %vm2254, %v3243, 0
  %v3382 = vsel %vm2254, %v3244, 0
  %v3385 = vsel %vm2254, %v3245, 0
  %v3388 = vsel %vm2254, %v3246, 0
  %v3391 = vsel %vm2254, %v3247, 0
  %v3394 = vsel %vm2254, %v3248, 0
  %v3397 = vsel %vm2254, %v3249, 0
  %v3400 = vsel %vm2254, %v3250, 0
  %v3403 = vsel %vm2254, %v3251, 0
  %v3406 = vsel %vm2254, %v3252, 0
  %v3409 = vsel %vm2254, %v3253, 0
  %v3412 = vsel %vm2254, %v3254, 0
  %v3415 = vsel %vm2254, %v3255, 0
  %v3418 = vsel %vm2254, %v3256, 0
  %v3421 = vsel %vm2254, %v3257, 0
  %v3424 = vsel %vm2254, %v3258, 0
  %v3427 = vsel %vm2254, %v3259, 0
  %v3430 = vsel %vm2254, %v3260, 0
  %v3433 = vsel %vm2254, %v3261, 0
  %v3436 = vsel %vm2254, %v3262, 0
  %v3439 = vsel %vm2254, %v3263, 0
  %v3442 = vsel %vm2254, %v3264, 0
  %v3445 = vsel %vm2254, %v3265, 0
  %v3448 = vsel %vm2254, %v3266, 0
  %v3451 = vsel %vm2254, %v3267, 0
  %v3454 = vsel %vm2254, %v3268, 0
  %v3457 = vsel %vm2254, %v3269, 0
  %v3460 = vsel %vm2254, %v3270, 0
  %v3463 = vsel %vm2254, %v3271, 0
  %v3466 = vsel %vm2254, %v3272, 0
  %v3469 = vsel %vm2254, %v3273, 0
  %v3472 = vsel %vm2254, %v3274, 0
  %v3475 = vsel %vm2254, %v3275, 0
  %v3478 = vsel %vm2254, %v3276, 0
  %v3481 = vsel %vm2254, %v3277, 0
  %v3484 = vsel %vm2254, %v3278, 0
  %v3487 = vsel %vm2254, %v3279, 0
  %3489 = vmatprep.subr.mxu0 0.0
  %3490 = vmatpush1.msra.mxu0 %v3281
  %3491 = vmatprep.subr.mxu0 0.0
  %3492 = vmatpush1.msra.mxu0 %v3282
  %3493 = vmatprep.subr.mxu0 0.0
  %3494 = vmatpush1.msra.mxu0 %v3283
  %3495 = vmatprep.subr.mxu0 0.0
  %3496 = vmatpush1.msra.mxu0 %v3284
  %3497 = vmatprep.subr.mxu0 0.0
  %3498 = vmatpush1.msra.mxu0 %v3285
  %3499 = vmatprep.subr.mxu0 0.0
  %3500 = vmatpush1.msra.mxu0 %v3286
  %3501 = vmatprep.subr.mxu0 0.0
  %3502 = vmatpush1.msra.mxu0 %v3287
  %3503 = vmatprep.subr.mxu0 0.0
  %3504 = vmatpush1.msra.mxu0 %v3288
  %3505 = vmatprep.subr.mxu0 0.0
  %3506 = vmatpush1.msra.mxu0 0.0
  %3507 = vmatprep.subr.mxu0 0.0
  %3508 = vmatpush1.msra.mxu0 0.0
  %3509 = vmatprep.subr.mxu0 0.0
  %3510 = vmatpush1.msra.mxu0 0.0
  %3511 = vmatprep.subr.mxu0 0.0
  %3512 = vmatpush1.msra.mxu0 0.0
  %3513 = vmatprep.subr.mxu0 0.0
  %3514 = vmatpush1.msra.mxu0 0.0
  %3515 = vmatprep.subr.mxu0 0.0
  %3516 = vmatpush1.msra.mxu0 0.0
  %3517 = vmatprep.subr.mxu0 0.0
  %3518 = vmatpush1.msra.mxu0 0.0
  %3519 = vmatprep.subr.mxu0 0.0
  %3520 = vmatpush1.msra.mxu0 0.0
  %3521 = vmatprep.subr.mxu0 0.0
  %3522 = vmatpush1.msra.mxu0 0.0
  %3523 = vmatprep.subr.mxu0 0.0
  %3524 = vmatpush1.msra.mxu0 0.0
  %3525 = vmatprep.subr.mxu0 0.0
  %3526 = vmatpush1.msra.mxu0 0.0
  %3527 = vmatprep.subr.mxu0 0.0
  %3528 = vmatpush1.msra.mxu0 0.0
  %3529 = vmatprep.subr.mxu0 0.0
  %3530 = vmatpush1.msra.mxu0 0.0
  %3531 = vmatprep.subr.mxu0 0.0
  %3532 = vmatpush1.msra.mxu0 0.0
  %3533 = vmatprep.subr.mxu0 0.0
  %3534 = vmatpush1.msra.mxu0 0.0
  %3535 = vmatprep.subr.mxu0 0.0
  %3536 = vmatpush1.msra.mxu0 0.0
  %3537 = vmatprep.subr.mxu0 0.0
  %3538 = vmatpush1.msra.mxu0 0.0
  %3539 = vmatprep.subr.mxu0 0.0
  %3540 = vmatpush1.msra.mxu0 0.0
  %3541 = vmatprep.subr.mxu0 0.0
  %3542 = vmatpush1.msra.mxu0 0.0
  %3543 = vmatprep.subr.mxu0 0.0
  %3544 = vmatpush1.msra.mxu0 0.0
  %3545 = vmatprep.subr.mxu0 0.0
  %3546 = vmatpush1.msra.mxu0 0.0
  %3547 = vmatprep.subr.mxu0 0.0
  %3548 = vmatpush1.msra.mxu0 0.0
  %3549 = vmatprep.subr.mxu0 0.0
  %3550 = vmatpush1.msra.mxu0 0.0
  %3551 = vmatprep.subr.mxu0 0.0
  %3552 = vmatpush1.msra.mxu0 0.0
  %3553 = vmatprep.mubr.f32.mxu0 0.0
  %3554 = vmatmul.mubr.f32.gmra.mrb[0].mxu0 %v3298
  %v3555 = vpop.f32.mrb[0].mxu0
  %v3556 = vadd.f32 %v3295, %v3555
  %v3557 = vpop.f32.mrb[0].mxu0
  %3558 = vmatprep.mubr.f32.mxu0 0.0
  %3559 = vmatmul.mubr.f32.gmra.mrb[0].mxu0 %v3301
  %v3560 = vpop.f32.mrb[0].mxu0
  %v3561 = vadd.f32 %v3295, %v3560
  %v3562 = vpop.f32.mrb[0].mxu0
  %3563 = vmatprep.mubr.f32.mxu0 0.0
  %3564 = vmatmul.mubr.f32.gmra.mrb[0].mxu0 %v3304
  %v3565 = vpop.f32.mrb[0].mxu0
  %v3566 = vadd.f32 %v3295, %v3565
  %v3567 = vpop.f32.mrb[0].mxu0
  %3568 = vmatprep.mubr.f32.mxu0 0.0
  %3569 = vmatmul.mubr.f32.gmra.mrb[0].mxu0 %v3307
  %v3570 = vpop.f32.mrb[0].mxu0
  %v3571 = vadd.f32 %v3295, %v3570
  %v3572 = vpop.f32.mrb[0].mxu0
  %3573 = vmatprep.mubr.f32.mxu0 0.0
  %3574 = vmatmul.mubr.f32.gmra.mrb[0].mxu0 %v3310
  %v3575 = vpop.f32.mrb[0].mxu0
  %v3576 = vadd.f32 %v3295, %v3575
  %v3577 = vpop.f32.mrb[0].mxu0
  %3578 = vmatprep.mubr.f32.mxu0 0.0
  %3579 = vmatmul.mubr.f32.gmra.mrb[0].mxu0 %v3313
  %v3580 = vpop.f32.mrb[0].mxu0
  %v3581 = vadd.f32 %v3295, %v3580
  %v3582 = vpop.f32.mrb[0].mxu0
  %3583 = vmatprep.mubr.f32.mxu0 0.0
  %3584 = vmatmul.mubr.f32.gmra.mrb[0].mxu0 %v3316
  %v3585 = vpop.f32.mrb[0].mxu0
  %v3586 = vadd.f32 %v3295, %v3585
  %v3587 = vpop.f32.mrb[0].mxu0
  %3588 = vmatprep.mubr.f32.mxu0 0.0
  %3589 = vmatmul.mubr.f32.gmra.mrb[0].mxu0 %v3319
  %v3590 = vpop.f32.mrb[0].mxu0
  %v3591 = vadd.f32 %v3295, %v3590
  %v3592 = vpop.f32.mrb[0].mxu0
  %3593 = vmatprep.mubr.f32.mxu0 0.0
  %3594 = vmatmul.mubr.f32.gmra.mrb[0].mxu0 %v3322
  %v3595 = vpop.f32.mrb[0].mxu0
  %v3596 = vadd.f32 %v3295, %v3595
  %v3597 = vpop.f32.mrb[0].mxu0
  %3598 = vmatprep.mubr.f32.mxu0 0.0
  %3599 = vmatmul.mubr.f32.gmra.mrb[0].mxu0 %v3325
  %v3600 = vpop.f32.mrb[0].mxu0
  %v3601 = vadd.f32 %v3295, %v3600
  %v3602 = vpop.f32.mrb[0].mxu0
  %3603 = vmatprep.mubr.f32.mxu0 0.0
  %3604 = vmatmul.mubr.f32.gmra.mrb[0].mxu0 %v3328
  %v3605 = vpop.f32.mrb[0].mxu0
  %v3606 = vadd.f32 %v3295, %v3605
  %v3607 = vpop.f32.mrb[0].mxu0
  %3608 = vmatprep.mubr.f32.mxu0 0.0
  %3609 = vmatmul.mubr.f32.gmra.mrb[0].mxu0 %v3331
  %v3610 = vpop.f32.mrb[0].mxu0
  %v3611 = vadd.f32 %v3295, %v3610
  %v3612 = vpop.f32.mrb[0].mxu0
  %3613 = vmatprep.mubr.f32.mxu0 0.0
  %3614 = vmatmul.mubr.f32.gmra.mrb[0].mxu0 %v3334
  %v3615 = vpop.f32.mrb[0].mxu0
  %v3616 = vadd.f32 %v3295, %v3615
  %v3617 = vpop.f32.mrb[0].mxu0
  %3618 = vmatprep.mubr.f32.mxu0 0.0
  %3619 = vmatmul.mubr.f32.gmra.mrb[0].mxu0 %v3337
  %v3620 = vpop.f32.mrb[0].mxu0
  %v3621 = vadd.f32 %v3295, %v3620
  %v3622 = vpop.f32.mrb[0].mxu0
  %3623 = vmatprep.mubr.f32.mxu0 0.0
  %3624 = vmatmul.mubr.f32.gmra.mrb[0].mxu0 %v3340
  %v3625 = vpop.f32.mrb[0].mxu0
  %v3626 = vadd.f32 %v3295, %v3625
  %v3627 = vpop.f32.mrb[0].mxu0
  %3628 = vmatprep.mubr.f32.mxu0 0.0
  %3629 = vmatmul.mubr.f32.gmra.mrb[0].mxu0 %v3343
  %v3630 = vpop.f32.mrb[0].mxu0
  %v3631 = vadd.f32 %v3295, %v3630
  %v3632 = vpop.f32.mrb[0].mxu0
  %3633 = vmatprep.mubr.f32.mxu0 0.0
  %3634 = vmatmul.mubr.f32.gmra.mrb[0].mxu0 %v3346
  %v3635 = vpop.f32.mrb[0].mxu0
  %v3636 = vadd.f32 %v3295, %v3635
  %v3637 = vpop.f32.mrb[0].mxu0
  %3638 = vmatprep.mubr.f32.mxu0 0.0
  %3639 = vmatmul.mubr.f32.gmra.mrb[0].mxu0 %v3349
  %v3640 = vpop.f32.mrb[0].mxu0
  %v3641 = vadd.f32 %v3295, %v3640
  %v3642 = vpop.f32.mrb[0].mxu0
  %3643 = vmatprep.mubr.f32.mxu0 0.0
  %3644 = vmatmul.mubr.f32.gmra.mrb[0].mxu0 %v3352
  %v3645 = vpop.f32.mrb[0].mxu0
  %v3646 = vadd.f32 %v3295, %v3645
  %v3647 = vpop.f32.mrb[0].mxu0
  %3648 = vmatprep.mubr.f32.mxu0 0.0
  %3649 = vmatmul.mubr.f32.gmra.mrb[0].mxu0 %v3355
  %v3650 = vpop.f32.mrb[0].mxu0
  %v3651 = vadd.f32 %v3295, %v3650
  %v3652 = vpop.f32.mrb[0].mxu0
  %3653 = vmatprep.mubr.f32.mxu0 0.0
  %3654 = vmatmul.mubr.f32.gmra.mrb[0].mxu0 %v3358
  %v3655 = vpop.f32.mrb[0].mxu0
  %v3656 = vadd.f32 %v3295, %v3655
  %v3657 = vpop.f32.mrb[0].mxu0
  %3658 = vmatprep.mubr.f32.mxu0 0.0
  %3659 = vmatmul.mubr.f32.gmra.mrb[0].mxu0 %v3361
  %v3660 = vpop.f32.mrb[0].mxu0
  %v3661 = vadd.f32 %v3295, %v3660
  %v3662 = vpop.f32.mrb[0].mxu0
  %3663 = vmatprep.mubr.f32.mxu0 0.0
  %3664 = vmatmul.mubr.f32.gmra.mrb[0].mxu0 %v3364
  %v3665 = vpop.f32.mrb[0].mxu0
  %v3666 = vadd.f32 %v3295, %v3665
  %v3667 = vpop.f32.mrb[0].mxu0
  %3668 = vmatprep.mubr.f32.mxu0 0.0
  %3669 = vmatmul.mubr.f32.gmra.mrb[0].mxu0 %v3367
  %v3670 = vpop.f32.mrb[0].mxu0
  %v3671 = vadd.f32 %v3295, %v3670
  %v3672 = vpop.f32.mrb[0].mxu0
  %3673 = vmatprep.mubr.f32.mxu0 0.0
  %3674 = vmatmul.mubr.f32.gmra.mrb[0].mxu0 %v3370
  %v3675 = vpop.f32.mrb[0].mxu0
  %v3676 = vadd.f32 %v3295, %v3675
  %v3677 = vpop.f32.mrb[0].mxu0
  %3678 = vmatprep.mubr.f32.mxu0 0.0
  %3679 = vmatmul.mubr.f32.gmra.mrb[0].mxu0 %v3373
  %v3680 = vpop.f32.mrb[0].mxu0
  %v3681 = vadd.f32 %v3295, %v3680
  %v3682 = vpop.f32.mrb[0].mxu0
  %3683 = vmatprep.mubr.f32.mxu0 0.0
  %3684 = vmatmul.mubr.f32.gmra.mrb[0].mxu0 %v3376
  %v3685 = vpop.f32.mrb[0].mxu0
  %v3686 = vadd.f32 %v3295, %v3685
  %v3687 = vpop.f32.mrb[0].mxu0
  %3688 = vmatprep.mubr.f32.mxu0 0.0
  %3689 = vmatmul.mubr.f32.gmra.mrb[0].mxu0 %v3379
  %v3690 = vpop.f32.mrb[0].mxu0
  %v3691 = vadd.f32 %v3295, %v3690
  %v3692 = vpop.f32.mrb[0].mxu0
  %3693 = vmatprep.mubr.f32.mxu0 0.0
  %3694 = vmatmul.mubr.f32.gmra.mrb[0].mxu0 %v3382
  %v3695 = vpop.f32.mrb[0].mxu0
  %v3696 = vadd.f32 %v3295, %v3695
  %v3697 = vpop.f32.mrb[0].mxu0
  %3698 = vmatprep.mubr.f32.mxu0 0.0
  %3699 = vmatmul.mubr.f32.gmra.mrb[0].mxu0 %v3385
  %v3700 = vpop.f32.mrb[0].mxu0
  %v3701 = vadd.f32 %v3295, %v3700
  %v3702 = vpop.f32.mrb[0].mxu0
  %3703 = vmatprep.mubr.f32.mxu0 0.0
  %3704 = vmatmul.mubr.f32.gmra.mrb[0].mxu0 %v3388
  %v3705 = vpop.f32.mrb[0].mxu0
  %v3706 = vadd.f32 %v3295, %v3705
  %v3707 = vpop.f32.mrb[0].mxu0
  %3708 = vmatprep.mubr.f32.mxu0 0.0
  %3709 = vmatmul.mubr.f32.gmra.mrb[0].mxu0 %v3391
  %v3710 = vpop.f32.mrb[0].mxu0
  %v3711 = vadd.f32 %v3295, %v3710
  %v3712 = vpop.f32.mrb[0].mxu0
  %3713 = vmatprep.mubr.f32.mxu0 0.0
  %3714 = vmatmul.mubr.f32.gmra.mrb[0].mxu0 %v3394
  %v3715 = vpop.f32.mrb[0].mxu0
  %v3716 = vadd.f32 %v3295, %v3715
  %v3717 = vpop.f32.mrb[0].mxu0
  %3718 = vmatprep.mubr.f32.mxu0 0.0
  %3719 = vmatmul.mubr.f32.gmra.mrb[0].mxu0 %v3397
  %v3720 = vpop.f32.mrb[0].mxu0
  %v3721 = vadd.f32 %v3295, %v3720
  %v3722 = vpop.f32.mrb[0].mxu0
  %3723 = vmatprep.mubr.f32.mxu0 0.0
  %3724 = vmatmul.mubr.f32.gmra.mrb[0].mxu0 %v3400
  %v3725 = vpop.f32.mrb[0].mxu0
  %v3726 = vadd.f32 %v3295, %v3725
  %v3727 = vpop.f32.mrb[0].mxu0
  %3728 = vmatprep.mubr.f32.mxu0 0.0
  %3729 = vmatmul.mubr.f32.gmra.mrb[0].mxu0 %v3403
  %v3730 = vpop.f32.mrb[0].mxu0
  %v3731 = vadd.f32 %v3295, %v3730
  %v3732 = vpop.f32.mrb[0].mxu0
  %3733 = vmatprep.mubr.f32.mxu0 0.0
  %3734 = vmatmul.mubr.f32.gmra.mrb[0].mxu0 %v3406
  %v3735 = vpop.f32.mrb[0].mxu0
  %v3736 = vadd.f32 %v3295, %v3735
  %v3737 = vpop.f32.mrb[0].mxu0
  %3738 = vmatprep.mubr.f32.mxu0 0.0
  %3739 = vmatmul.mubr.f32.gmra.mrb[0].mxu0 %v3409
  %v3740 = vpop.f32.mrb[0].mxu0
  %v3741 = vadd.f32 %v3295, %v3740
  %v3742 = vpop.f32.mrb[0].mxu0
  %3743 = vmatprep.mubr.f32.mxu0 0.0
  %3744 = vmatmul.mubr.f32.gmra.mrb[0].mxu0 %v3412
  %v3745 = vpop.f32.mrb[0].mxu0
  %v3746 = vadd.f32 %v3295, %v3745
  %v3747 = vpop.f32.mrb[0].mxu0
  %3748 = vmatprep.mubr.f32.mxu0 0.0
  %3749 = vmatmul.mubr.f32.gmra.mrb[0].mxu0 %v3415
  %v3750 = vpop.f32.mrb[0].mxu0
  %v3751 = vadd.f32 %v3295, %v3750
  %v3752 = vpop.f32.mrb[0].mxu0
  %3753 = vmatprep.mubr.f32.mxu0 0.0
  %3754 = vmatmul.mubr.f32.gmra.mrb[0].mxu0 %v3418
  %v3755 = vpop.f32.mrb[0].mxu0
  %v3756 = vadd.f32 %v3295, %v3755
  %v3757 = vpop.f32.mrb[0].mxu0
  %3758 = vmatprep.mubr.f32.mxu0 0.0
  %3759 = vmatmul.mubr.f32.gmra.mrb[0].mxu0 %v3421
  %v3760 = vpop.f32.mrb[0].mxu0
  %v3761 = vadd.f32 %v3295, %v3760
  %v3762 = vpop.f32.mrb[0].mxu0
  %3763 = vmatprep.mubr.f32.mxu0 0.0
  %3764 = vmatmul.mubr.f32.gmra.mrb[0].mxu0 %v3424
  %v3765 = vpop.f32.mrb[0].mxu0
  %v3766 = vadd.f32 %v3295, %v3765
  %v3767 = vpop.f32.mrb[0].mxu0
  %3768 = vmatprep.mubr.f32.mxu0 0.0
  %3769 = vmatmul.mubr.f32.gmra.mrb[0].mxu0 %v3427
  %v3770 = vpop.f32.mrb[0].mxu0
  %v3771 = vadd.f32 %v3295, %v3770
  %v3772 = vpop.f32.mrb[0].mxu0
  %3773 = vmatprep.mubr.f32.mxu0 0.0
  %3774 = vmatmul.mubr.f32.gmra.mrb[0].mxu0 %v3430
  %v3775 = vpop.f32.mrb[0].mxu0
  %v3776 = vadd.f32 %v3295, %v3775
  %v3777 = vpop.f32.mrb[0].mxu0
  %3778 = vmatprep.mubr.f32.mxu0 0.0
  %3779 = vmatmul.mubr.f32.gmra.mrb[0].mxu0 %v3433
  %v3780 = vpop.f32.mrb[0].mxu0
  %v3781 = vadd.f32 %v3295, %v3780
  %v3782 = vpop.f32.mrb[0].mxu0
  %3783 = vmatprep.mubr.f32.mxu0 0.0
  %3784 = vmatmul.mubr.f32.gmra.mrb[0].mxu0 %v3436
  %v3785 = vpop.f32.mrb[0].mxu0
  %v3786 = vadd.f32 %v3295, %v3785
  %v3787 = vpop.f32.mrb[0].mxu0
  %3788 = vmatprep.mubr.f32.mxu0 0.0
  %3789 = vmatmul.mubr.f32.gmra.mrb[0].mxu0 %v3439
  %v3790 = vpop.f32.mrb[0].mxu0
  %v3791 = vadd.f32 %v3295, %v3790
  %v3792 = vpop.f32.mrb[0].mxu0
  %3793 = vmatprep.mubr.f32.mxu0 0.0
  %3794 = vmatmul.mubr.f32.gmra.mrb[0].mxu0 %v3442
  %v3795 = vpop.f32.mrb[0].mxu0
  %v3796 = vadd.f32 %v3295, %v3795
  %v3797 = vpop.f32.mrb[0].mxu0
  %3798 = vmatprep.mubr.f32.mxu0 0.0
  %3799 = vmatmul.mubr.f32.gmra.mrb[0].mxu0 %v3445
  %v3800 = vpop.f32.mrb[0].mxu0
  %v3801 = vadd.f32 %v3295, %v3800
  %v3802 = vpop.f32.mrb[0].mxu0
  %3803 = vmatprep.mubr.f32.mxu0 0.0
  %3804 = vmatmul.mubr.f32.gmra.mrb[0].mxu0 %v3448
  %v3805 = vpop.f32.mrb[0].mxu0
  %v3806 = vadd.f32 %v3295, %v3805
  %v3807 = vpop.f32.mrb[0].mxu0
  %3808 = vmatprep.mubr.f32.mxu0 0.0
  %3809 = vmatmul.mubr.f32.gmra.mrb[0].mxu0 %v3451
  %v3810 = vpop.f32.mrb[0].mxu0
  %v3811 = vadd.f32 %v3295, %v3810
  %v3812 = vpop.f32.mrb[0].mxu0
  %3813 = vmatprep.mubr.f32.mxu0 0.0
  %3814 = vmatmul.mubr.f32.gmra.mrb[0].mxu0 %v3454
  %v3815 = vpop.f32.mrb[0].mxu0
  %v3816 = vadd.f32 %v3295, %v3815
  %v3817 = vpop.f32.mrb[0].mxu0
  %3818 = vmatprep.mubr.f32.mxu0 0.0
  %3819 = vmatmul.mubr.f32.gmra.mrb[0].mxu0 %v3457
  %v3820 = vpop.f32.mrb[0].mxu0
  %v3821 = vadd.f32 %v3295, %v3820
  %v3822 = vpop.f32.mrb[0].mxu0
  %3823 = vmatprep.mubr.f32.mxu0 0.0
  %3824 = vmatmul.mubr.f32.gmra.mrb[0].mxu0 %v3460
  %v3825 = vpop.f32.mrb[0].mxu0
  %v3826 = vadd.f32 %v3295, %v3825
  %v3827 = vpop.f32.mrb[0].mxu0
  %3828 = vmatprep.mubr.f32.mxu0 0.0
  %3829 = vmatmul.mubr.f32.gmra.mrb[0].mxu0 %v3463
  %v3830 = vpop.f32.mrb[0].mxu0
  %v3831 = vadd.f32 %v3295, %v3830
  %v3832 = vpop.f32.mrb[0].mxu0
  %3833 = vmatprep.mubr.f32.mxu0 0.0
  %3834 = vmatmul.mubr.f32.gmra.mrb[0].mxu0 %v3466
  %v3835 = vpop.f32.mrb[0].mxu0
  %v3836 = vadd.f32 %v3295, %v3835
  %v3837 = vpop.f32.mrb[0].mxu0
  %3838 = vmatprep.mubr.f32.mxu0 0.0
  %3839 = vmatmul.mubr.f32.gmra.mrb[0].mxu0 %v3469
  %v3840 = vpop.f32.mrb[0].mxu0
  %v3841 = vadd.f32 %v3295, %v3840
  %v3842 = vpop.f32.mrb[0].mxu0
  %3843 = vmatprep.mubr.f32.mxu0 0.0
  %3844 = vmatmul.mubr.f32.gmra.mrb[0].mxu0 %v3472
  %v3845 = vpop.f32.mrb[0].mxu0
  %v3846 = vadd.f32 %v3295, %v3845
  %v3847 = vpop.f32.mrb[0].mxu0
  %3848 = vmatprep.mubr.f32.mxu0 0.0
  %3849 = vmatmul.mubr.f32.gmra.mrb[0].mxu0 %v3475
  %v3850 = vpop.f32.mrb[0].mxu0
  %v3851 = vadd.f32 %v3295, %v3850
  %v3852 = vpop.f32.mrb[0].mxu0
  %3853 = vmatprep.mubr.f32.mxu0 0.0
  %3854 = vmatmul.mubr.f32.gmra.mrb[0].mxu0 %v3478
  %v3855 = vpop.f32.mrb[0].mxu0
  %v3856 = vadd.f32 %v3295, %v3855
  %v3857 = vpop.f32.mrb[0].mxu0
  %3858 = vmatprep.mubr.f32.mxu0 0.0
  %3859 = vmatmul.mubr.f32.gmra.mrb[0].mxu0 %v3481
  %v3860 = vpop.f32.mrb[0].mxu0
  %v3861 = vadd.f32 %v3295, %v3860
  %v3862 = vpop.f32.mrb[0].mxu0
  %3863 = vmatprep.mubr.f32.mxu0 0.0
  %3864 = vmatmul.mubr.f32.gmra.mrb[0].mxu0 %v3484
  %v3865 = vpop.f32.mrb[0].mxu0
  %v3866 = vadd.f32 %v3295, %v3865
  %v3867 = vpop.f32.mrb[0].mxu0
  %3868 = vmatprep.mubr.f32.mxu0 0.0
  %3869 = vmatmul.mubr.f32.gmra.mrb[0].mxu0 %v3487
  %v3870 = vpop.f32.mrb[0].mxu0
  %v3871 = vadd.f32 %v3295, %v3870
  %v3872 = vpop.f32.mrb[0].mxu0
  %3873 = vdwg.mxu0
  %v3874 = vxor.u32 %v3556, 2147483648
  %v3875 = vxor.u32 %v3561, 2147483648
  %v3876 = vxor.u32 %v3566, 2147483648
  %v3877 = vxor.u32 %v3571, 2147483648
  %v3878 = vxor.u32 %v3576, 2147483648
  %v3879 = vxor.u32 %v3581, 2147483648
  %v3880 = vxor.u32 %v3586, 2147483648
  %v3881 = vxor.u32 %v3591, 2147483648
  %v3882 = vxor.u32 %v3596, 2147483648
  %v3883 = vxor.u32 %v3601, 2147483648
  %v3884 = vxor.u32 %v3606, 2147483648
  %v3885 = vxor.u32 %v3611, 2147483648
  %v3886 = vxor.u32 %v3616, 2147483648
  %v3887 = vxor.u32 %v3621, 2147483648
  %v3888 = vxor.u32 %v3626, 2147483648
  %v3889 = vxor.u32 %v3631, 2147483648
  %v3890 = vxor.u32 %v3636, 2147483648
  %v3891 = vxor.u32 %v3641, 2147483648
  %v3892 = vxor.u32 %v3646, 2147483648
  %v3893 = vxor.u32 %v3651, 2147483648
  %v3894 = vxor.u32 %v3656, 2147483648
  %v3895 = vxor.u32 %v3661, 2147483648
  %v3896 = vxor.u32 %v3666, 2147483648
  %v3897 = vxor.u32 %v3671, 2147483648
  %v3898 = vxor.u32 %v3676, 2147483648
  %v3899 = vxor.u32 %v3681, 2147483648
  %v3900 = vxor.u32 %v3686, 2147483648
  %v3901 = vxor.u32 %v3691, 2147483648
  %v3902 = vxor.u32 %v3696, 2147483648
  %v3903 = vxor.u32 %v3701, 2147483648
  %v3904 = vxor.u32 %v3706, 2147483648
  %v3905 = vxor.u32 %v3711, 2147483648
  %v3906 = vxor.u32 %v3716, 2147483648
  %v3907 = vxor.u32 %v3721, 2147483648
  %v3908 = vxor.u32 %v3726, 2147483648
  %v3909 = vxor.u32 %v3731, 2147483648
  %v3910 = vxor.u32 %v3736, 2147483648
  %v3911 = vxor.u32 %v3741, 2147483648
  %v3912 = vxor.u32 %v3746, 2147483648
  %v3913 = vxor.u32 %v3751, 2147483648
  %v3914 = vxor.u32 %v3756, 2147483648
  %v3915 = vxor.u32 %v3761, 2147483648
  %v3916 = vxor.u32 %v3766, 2147483648
  %v3917 = vxor.u32 %v3771, 2147483648
  %v3918 = vxor.u32 %v3776, 2147483648
  %v3919 = vxor.u32 %v3781, 2147483648
  %v3920 = vxor.u32 %v3786, 2147483648
  %v3921 = vxor.u32 %v3791, 2147483648
  %v3922 = vxor.u32 %v3796, 2147483648
  %v3923 = vxor.u32 %v3801, 2147483648
  %v3924 = vxor.u32 %v3806, 2147483648
  %v3925 = vxor.u32 %v3811, 2147483648
  %v3926 = vxor.u32 %v3816, 2147483648
  %v3927 = vxor.u32 %v3821, 2147483648
  %v3928 = vxor.u32 %v3826, 2147483648
  %v3929 = vxor.u32 %v3831, 2147483648
  %v3930 = vxor.u32 %v3836, 2147483648
  %v3931 = vxor.u32 %v3841, 2147483648
  %v3932 = vxor.u32 %v3846, 2147483648
  %v3933 = vxor.u32 %v3851, 2147483648
  %v3934 = vxor.u32 %v3856, 2147483648
  %v3935 = vxor.u32 %v3861, 2147483648
  %v3936 = vxor.u32 %v3866, 2147483648
  %v3937 = vxor.u32 %v3871, 2147483648
  %v3938 = vmul.f32 %v3874, 1.442695
  %v3939 = vpow.pop %v3938
  %v3940 = vmul.f32 %v3875, 1.442695
  %v3941 = vpow.pop %v3940
  %v3942 = vmul.f32 %v3876, 1.442695
  %v3943 = vpow.pop %v3942
  %v3944 = vmul.f32 %v3877, 1.442695
  %v3945 = vpow.pop %v3944
  %v3946 = vmul.f32 %v3878, 1.442695
  %v3947 = vpow.pop %v3946
  %v3948 = vmul.f32 %v3879, 1.442695
  %v3949 = vpow.pop %v3948
  %v3950 = vmul.f32 %v3880, 1.442695
  %v3951 = vpow.pop %v3950
  %v3952 = vmul.f32 %v3881, 1.442695
  %v3953 = vpow.pop %v3952
  %v3954 = vmul.f32 %v3882, 1.442695
  %v3955 = vpow.pop %v3954
  %v3956 = vmul.f32 %v3883, 1.442695
  %v3957 = vpow.pop %v3956
  %v3958 = vmul.f32 %v3884, 1.442695
  %v3959 = vpow.pop %v3958
  %v3960 = vmul.f32 %v3885, 1.442695
  %v3961 = vpow.pop %v3960
  %v3962 = vmul.f32 %v3886, 1.442695
  %v3963 = vpow.pop %v3962
  %v3964 = vmul.f32 %v3887, 1.442695
  %v3965 = vpow.pop %v3964
  %v3966 = vmul.f32 %v3888, 1.442695
  %v3967 = vpow.pop %v3966
  %v3968 = vmul.f32 %v3889, 1.442695
  %v3969 = vpow.pop %v3968
  %v3970 = vmul.f32 %v3890, 1.442695
  %v3971 = vpow.pop %v3970
  %v3972 = vmul.f32 %v3891, 1.442695
  %v3973 = vpow.pop %v3972
  %v3974 = vmul.f32 %v3892, 1.442695
  %v3975 = vpow.pop %v3974
  %v3976 = vmul.f32 %v3893, 1.442695
  %v3977 = vpow.pop %v3976
  %v3978 = vmul.f32 %v3894, 1.442695
  %v3979 = vpow.pop %v3978
  %v3980 = vmul.f32 %v3895, 1.442695
  %v3981 = vpow.pop %v3980
  %v3982 = vmul.f32 %v3896, 1.442695
  %v3983 = vpow.pop %v3982
  %v3984 = vmul.f32 %v3897, 1.442695
  %v3985 = vpow.pop %v3984
  %v3986 = vmul.f32 %v3898, 1.442695
  %v3987 = vpow.pop %v3986
  %v3988 = vmul.f32 %v3899, 1.442695
  %v3989 = vpow.pop %v3988
  %v3990 = vmul.f32 %v3900, 1.442695
  %v3991 = vpow.pop %v3990
  %v3992 = vmul.f32 %v3901, 1.442695
  %v3993 = vpow.pop %v3992
  %v3994 = vmul.f32 %v3902, 1.442695
  %v3995 = vpow.pop %v3994
  %v3996 = vmul.f32 %v3903, 1.442695
  %v3997 = vpow.pop %v3996
  %v3998 = vmul.f32 %v3904, 1.442695
  %v3999 = vpow.pop %v3998
  %v4000 = vmul.f32 %v3905, 1.442695
  %v4001 = vpow.pop %v4000
  %v4002 = vmul.f32 %v3906, 1.442695
  %v4003 = vpow.pop %v4002
  %v4004 = vmul.f32 %v3907, 1.442695
  %v4005 = vpow.pop %v4004
  %v4006 = vmul.f32 %v3908, 1.442695
  %v4007 = vpow.pop %v4006
  %v4008 = vmul.f32 %v3909, 1.442695
  %v4009 = vpow.pop %v4008
  %v4010 = vmul.f32 %v3910, 1.442695
  %v4011 = vpow.pop %v4010
  %v4012 = vmul.f32 %v3911, 1.442695
  %v4013 = vpow.pop %v4012
  %v4014 = vmul.f32 %v3912, 1.442695
  %v4015 = vpow.pop %v4014
  %v4016 = vmul.f32 %v3913, 1.442695
  %v4017 = vpow.pop %v4016
  %v4018 = vmul.f32 %v3914, 1.442695
  %v4019 = vpow.pop %v4018
  %v4020 = vmul.f32 %v3915, 1.442695
  %v4021 = vpow.pop %v4020
  %v4022 = vmul.f32 %v3916, 1.442695
  %v4023 = vpow.pop %v4022
  %v4024 = vmul.f32 %v3917, 1.442695
  %v4025 = vpow.pop %v4024
  %v4026 = vmul.f32 %v3918, 1.442695
  %v4027 = vpow.pop %v4026
  %v4028 = vmul.f32 %v3919, 1.442695
  %v4029 = vpow.pop %v4028
  %v4030 = vmul.f32 %v3920, 1.442695
  %v4031 = vpow.pop %v4030
  %v4032 = vmul.f32 %v3921, 1.442695
  %v4033 = vpow.pop %v4032
  %v4034 = vmul.f32 %v3922, 1.442695
  %v4035 = vpow.pop %v4034
  %v4036 = vmul.f32 %v3923, 1.442695
  %v4037 = vpow.pop %v4036
  %v4038 = vmul.f32 %v3924, 1.442695
  %v4039 = vpow.pop %v4038
  %v4040 = vmul.f32 %v3925, 1.442695
  %v4041 = vpow.pop %v4040
  %v4042 = vmul.f32 %v3926, 1.442695
  %v4043 = vpow.pop %v4042
  %v4044 = vmul.f32 %v3927, 1.442695
  %v4045 = vpow.pop %v4044
  %v4046 = vmul.f32 %v3928, 1.442695
  %v4047 = vpow.pop %v4046
  %v4048 = vmul.f32 %v3929, 1.442695
  %v4049 = vpow.pop %v4048
  %v4050 = vmul.f32 %v3930, 1.442695
  %v4051 = vpow.pop %v4050
  %v4052 = vmul.f32 %v3931, 1.442695
  %v4053 = vpow.pop %v4052
  %v4054 = vmul.f32 %v3932, 1.442695
  %v4055 = vpow.pop %v4054
  %v4056 = vmul.f32 %v3933, 1.442695
  %v4057 = vpow.pop %v4056
  %v4058 = vmul.f32 %v3934, 1.442695
  %v4059 = vpow.pop %v4058
  %v4060 = vmul.f32 %v3935, 1.442695
  %v4061 = vpow.pop %v4060
  %v4062 = vmul.f32 %v3936, 1.442695
  %v4063 = vpow.pop %v4062
  %v4064 = vmul.f32 %v3937, 1.442695
  %v4065 = vpow.pop %v4064
  %v4066 = vadd.f32 %v3939, 1.0
  %v4067 = vadd.f32 %v3941, 1.0
  %v4068 = vadd.f32 %v3943, 1.0
  %v4069 = vadd.f32 %v3945, 1.0
  %v4070 = vadd.f32 %v3947, 1.0
  %v4071 = vadd.f32 %v3949, 1.0
  %v4072 = vadd.f32 %v3951, 1.0
  %v4073 = vadd.f32 %v3953, 1.0
  %v4074 = vadd.f32 %v3955, 1.0
  %v4075 = vadd.f32 %v3957, 1.0
  %v4076 = vadd.f32 %v3959, 1.0
  %v4077 = vadd.f32 %v3961, 1.0
  %v4078 = vadd.f32 %v3963, 1.0
  %v4079 = vadd.f32 %v3965, 1.0
  %v4080 = vadd.f32 %v3967, 1.0
  %v4081 = vadd.f32 %v3969, 1.0
  %v4082 = vadd.f32 %v3971, 1.0
  %v4083 = vadd.f32 %v3973, 1.0
  %v4084 = vadd.f32 %v3975, 1.0
  %v4085 = vadd.f32 %v3977, 1.0
  %v4086 = vadd.f32 %v3979, 1.0
  %v4087 = vadd.f32 %v3981, 1.0
  %v4088 = vadd.f32 %v3983, 1.0
  %v4089 = vadd.f32 %v3985, 1.0
  %v4090 = vadd.f32 %v3987, 1.0
  %v4091 = vadd.f32 %v3989, 1.0
  %v4092 = vadd.f32 %v3991, 1.0
  %v4093 = vadd.f32 %v3993, 1.0
  %v4094 = vadd.f32 %v3995, 1.0
  %v4095 = vadd.f32 %v3997, 1.0
  %v4096 = vadd.f32 %v3999, 1.0
  %v4097 = vadd.f32 %v4001, 1.0
  %v4098 = vadd.f32 %v4003, 1.0
  %v4099 = vadd.f32 %v4005, 1.0
  %v4100 = vadd.f32 %v4007, 1.0
  %v4101 = vadd.f32 %v4009, 1.0
  %v4102 = vadd.f32 %v4011, 1.0
  %v4103 = vadd.f32 %v4013, 1.0
  %v4104 = vadd.f32 %v4015, 1.0
  %v4105 = vadd.f32 %v4017, 1.0
  %v4106 = vadd.f32 %v4019, 1.0
  %v4107 = vadd.f32 %v4021, 1.0
  %v4108 = vadd.f32 %v4023, 1.0
  %v4109 = vadd.f32 %v4025, 1.0
  %v4110 = vadd.f32 %v4027, 1.0
  %v4111 = vadd.f32 %v4029, 1.0
  %v4112 = vadd.f32 %v4031, 1.0
  %v4113 = vadd.f32 %v4033, 1.0
  %v4114 = vadd.f32 %v4035, 1.0
  %v4115 = vadd.f32 %v4037, 1.0
  %v4116 = vadd.f32 %v4039, 1.0
  %v4117 = vadd.f32 %v4041, 1.0
  %v4118 = vadd.f32 %v4043, 1.0
  %v4119 = vadd.f32 %v4045, 1.0
  %v4120 = vadd.f32 %v4047, 1.0
  %v4121 = vadd.f32 %v4049, 1.0
  %v4122 = vadd.f32 %v4051, 1.0
  %v4123 = vadd.f32 %v4053, 1.0
  %v4124 = vadd.f32 %v4055, 1.0
  %v4125 = vadd.f32 %v4057, 1.0
  %v4126 = vadd.f32 %v4059, 1.0
  %v4127 = vadd.f32 %v4061, 1.0
  %v4128 = vadd.f32 %v4063, 1.0
  %v4129 = vadd.f32 %v4065, 1.0
  %v4130 = vrcp.pop %v4066
  %v4131 = vmul.f32 1.0, %v4130
  %v4132 = vrcp.pop %v4067
  %v4133 = vmul.f32 1.0, %v4132
  %v4134 = vrcp.pop %v4068
  %v4135 = vmul.f32 1.0, %v4134
  %v4136 = vrcp.pop %v4069
  %v4137 = vmul.f32 1.0, %v4136
  %v4138 = vrcp.pop %v4070
  %v4139 = vmul.f32 1.0, %v4138
  %v4140 = vrcp.pop %v4071
  %v4141 = vmul.f32 1.0, %v4140
  %v4142 = vrcp.pop %v4072
  %v4143 = vmul.f32 1.0, %v4142
  %v4144 = vrcp.pop %v4073
  %v4145 = vmul.f32 1.0, %v4144
  %v4146 = vrcp.pop %v4074
  %v4147 = vmul.f32 1.0, %v4146
  %v4148 = vrcp.pop %v4075
  %v4149 = vmul.f32 1.0, %v4148
  %v4150 = vrcp.pop %v4076
  %v4151 = vmul.f32 1.0, %v4150
  %v4152 = vrcp.pop %v4077
  %v4153 = vmul.f32 1.0, %v4152
  %v4154 = vrcp.pop %v4078
  %v4155 = vmul.f32 1.0, %v4154
  %v4156 = vrcp.pop %v4079
  %v4157 = vmul.f32 1.0, %v4156
  %v4158 = vrcp.pop %v4080
  %v4159 = vmul.f32 1.0, %v4158
  %v4160 = vrcp.pop %v4081
  %v4161 = vmul.f32 1.0, %v4160
  %v4162 = vrcp.pop %v4082
  %v4163 = vmul.f32 1.0, %v4162
  %v4164 = vrcp.pop %v4083
  %v4165 = vmul.f32 1.0, %v4164
  %v4166 = vrcp.pop %v4084
  %v4167 = vmul.f32 1.0, %v4166
  %v4168 = vrcp.pop %v4085
  %v4169 = vmul.f32 1.0, %v4168
  %v4170 = vrcp.pop %v4086
  %v4171 = vmul.f32 1.0, %v4170
  %v4172 = vrcp.pop %v4087
  %v4173 = vmul.f32 1.0, %v4172
  %v4174 = vrcp.pop %v4088
  %v4175 = vmul.f32 1.0, %v4174
  %v4176 = vrcp.pop %v4089
  %v4177 = vmul.f32 1.0, %v4176
  %v4178 = vrcp.pop %v4090
  %v4179 = vmul.f32 1.0, %v4178
  %v4180 = vrcp.pop %v4091
  %v4181 = vmul.f32 1.0, %v4180
  %v4182 = vrcp.pop %v4092
  %v4183 = vmul.f32 1.0, %v4182
  %v4184 = vrcp.pop %v4093
  %v4185 = vmul.f32 1.0, %v4184
  %v4186 = vrcp.pop %v4094
  %v4187 = vmul.f32 1.0, %v4186
  %v4188 = vrcp.pop %v4095
  %v4189 = vmul.f32 1.0, %v4188
  %v4190 = vrcp.pop %v4096
  %v4191 = vmul.f32 1.0, %v4190
  %v4192 = vrcp.pop %v4097
  %v4193 = vmul.f32 1.0, %v4192
  %v4194 = vrcp.pop %v4098
  %v4195 = vmul.f32 1.0, %v4194
  %v4196 = vrcp.pop %v4099
  %v4197 = vmul.f32 1.0, %v4196
  %v4198 = vrcp.pop %v4100
  %v4199 = vmul.f32 1.0, %v4198
  %v4200 = vrcp.pop %v4101
  %v4201 = vmul.f32 1.0, %v4200
  %v4202 = vrcp.pop %v4102
  %v4203 = vmul.f32 1.0, %v4202
  %v4204 = vrcp.pop %v4103
  %v4205 = vmul.f32 1.0, %v4204
  %v4206 = vrcp.pop %v4104
  %v4207 = vmul.f32 1.0, %v4206
  %v4208 = vrcp.pop %v4105
  %v4209 = vmul.f32 1.0, %v4208
  %v4210 = vrcp.pop %v4106
  %v4211 = vmul.f32 1.0, %v4210
  %v4212 = vrcp.pop %v4107
  %v4213 = vmul.f32 1.0, %v4212
  %v4214 = vrcp.pop %v4108
  %v4215 = vmul.f32 1.0, %v4214
  %v4216 = vrcp.pop %v4109
  %v4217 = vmul.f32 1.0, %v4216
  %v4218 = vrcp.pop %v4110
  %v4219 = vmul.f32 1.0, %v4218
  %v4220 = vrcp.pop %v4111
  %v4221 = vmul.f32 1.0, %v4220
  %v4222 = vrcp.pop %v4112
  %v4223 = vmul.f32 1.0, %v4222
  %v4224 = vrcp.pop %v4113
  %v4225 = vmul.f32 1.0, %v4224
  %v4226 = vrcp.pop %v4114
  %v4227 = vmul.f32 1.0, %v4226
  %v4228 = vrcp.pop %v4115
  %v4229 = vmul.f32 1.0, %v4228
  %v4230 = vrcp.pop %v4116
  %v4231 = vmul.f32 1.0, %v4230
  %v4232 = vrcp.pop %v4117
  %v4233 = vmul.f32 1.0, %v4232
  %v4234 = vrcp.pop %v4118
  %v4235 = vmul.f32 1.0, %v4234
  %v4236 = vrcp.pop %v4119
  %v4237 = vmul.f32 1.0, %v4236
  %v4238 = vrcp.pop %v4120
  %v4239 = vmul.f32 1.0, %v4238
  %v4240 = vrcp.pop %v4121
  %v4241 = vmul.f32 1.0, %v4240
  %v4242 = vrcp.pop %v4122
  %v4243 = vmul.f32 1.0, %v4242
  %v4244 = vrcp.pop %v4123
  %v4245 = vmul.f32 1.0, %v4244
  %v4246 = vrcp.pop %v4124
  %v4247 = vmul.f32 1.0, %v4246
  %v4248 = vrcp.pop %v4125
  %v4249 = vmul.f32 1.0, %v4248
  %v4250 = vrcp.pop %v4126
  %v4251 = vmul.f32 1.0, %v4250
  %v4252 = vrcp.pop %v4127
  %v4253 = vmul.f32 1.0, %v4252
  %v4254 = vrcp.pop %v4128
  %v4255 = vmul.f32 1.0, %v4254
  %v4256 = vrcp.pop %v4129
  %v4257 = vmul.f32 1.0, %v4256
  %v4258 = vmul.f32 %v3556, %v4131
  %v4259 = vmul.f32 %v3561, %v4133
  %v4260 = vmul.f32 %v3566, %v4135
  %v4261 = vmul.f32 %v3571, %v4137
  %v4262 = vmul.f32 %v3576, %v4139
  %v4263 = vmul.f32 %v3581, %v4141
  %v4264 = vmul.f32 %v3586, %v4143
  %v4265 = vmul.f32 %v3591, %v4145
  %v4266 = vmul.f32 %v3596, %v4147
  %v4267 = vmul.f32 %v3601, %v4149
  %v4268 = vmul.f32 %v3606, %v4151
  %v4269 = vmul.f32 %v3611, %v4153
  %v4270 = vmul.f32 %v3616, %v4155
  %v4271 = vmul.f32 %v3621, %v4157
  %v4272 = vmul.f32 %v3626, %v4159
  %v4273 = vmul.f32 %v3631, %v4161
  %v4274 = vmul.f32 %v3636, %v4163
  %v4275 = vmul.f32 %v3641, %v4165
  %v4276 = vmul.f32 %v3646, %v4167
  %v4277 = vmul.f32 %v3651, %v4169
  %v4278 = vmul.f32 %v3656, %v4171
  %v4279 = vmul.f32 %v3661, %v4173
  %v4280 = vmul.f32 %v3666, %v4175
  %v4281 = vmul.f32 %v3671, %v4177
  %v4282 = vmul.f32 %v3676, %v4179
  %v4283 = vmul.f32 %v3681, %v4181
  %v4284 = vmul.f32 %v3686, %v4183
  %v4285 = vmul.f32 %v3691, %v4185
  %v4286 = vmul.f32 %v3696, %v4187
  %v4287 = vmul.f32 %v3701, %v4189
  %v4288 = vmul.f32 %v3706, %v4191
  %v4289 = vmul.f32 %v3711, %v4193
  %v4290 = vmul.f32 %v3716, %v4195
  %v4291 = vmul.f32 %v3721, %v4197
  %v4292 = vmul.f32 %v3726, %v4199
  %v4293 = vmul.f32 %v3731, %v4201
  %v4294 = vmul.f32 %v3736, %v4203
  %v4295 = vmul.f32 %v3741, %v4205
  %v4296 = vmul.f32 %v3746, %v4207
  %v4297 = vmul.f32 %v3751, %v4209
  %v4298 = vmul.f32 %v3756, %v4211
  %v4299 = vmul.f32 %v3761, %v4213
  %v4300 = vmul.f32 %v3766, %v4215
  %v4301 = vmul.f32 %v3771, %v4217
  %v4302 = vmul.f32 %v3776, %v4219
  %v4303 = vmul.f32 %v3781, %v4221
  %v4304 = vmul.f32 %v3786, %v4223
  %v4305 = vmul.f32 %v3791, %v4225
  %v4306 = vmul.f32 %v3796, %v4227
  %v4307 = vmul.f32 %v3801, %v4229
  %v4308 = vmul.f32 %v3806, %v4231
  %v4309 = vmul.f32 %v3811, %v4233
  %v4310 = vmul.f32 %v3816, %v4235
  %v4311 = vmul.f32 %v3821, %v4237
  %v4312 = vmul.f32 %v3826, %v4239
  %v4313 = vmul.f32 %v3831, %v4241
  %v4314 = vmul.f32 %v3836, %v4243
  %v4315 = vmul.f32 %v3841, %v4245
  %v4316 = vmul.f32 %v3846, %v4247
  %v4317 = vmul.f32 %v3851, %v4249
  %v4318 = vmul.f32 %v3856, %v4251
  %v4319 = vmul.f32 %v3861, %v4253
  %v4320 = vmul.f32 %v3866, %v4255
  %v4321 = vmul.f32 %v3871, %v4257
  %v4322 = vld [vmem:[%s7] sm:$0xff]
  %v4323 = vld [vmem:[%s7 + $0x8] sm:$0xff]
  %v4324 = vld [vmem:[%s7 + $0x10] sm:$0xff]
  %v4325 = vld [vmem:[%s7 + $0x18] sm:$0xff]
  %v4326 = vld [vmem:[%s7 + $0x20] sm:$0xff]
  %v4327 = vld [vmem:[%s7 + $0x28] sm:$0xff]
  %v4328 = vld [vmem:[%s7 + $0x30] sm:$0xff]
  %v4329 = vld [vmem:[%s7 + $0x38] sm:$0xff]
  %v4330 = vld [vmem:[%s8] sm:$0x1]
  %v4332 = vlaneseq
  %v4333 = vshrl.u32 %v4332, 7
  %v4334 = vsub.s32 0, %v4333
  %v4335 = vrot.slane %v4330, %v4334
  %v4338 = vsel %vm2254, %v4258, 0
  %v4341 = vsel %vm2254, %v4259, 0
  %v4344 = vsel %vm2254, %v4260, 0
  %v4347 = vsel %vm2254, %v4261, 0
  %v4350 = vsel %vm2254, %v4262, 0
  %v4353 = vsel %vm2254, %v4263, 0
  %v4356 = vsel %vm2254, %v4264, 0
  %v4359 = vsel %vm2254, %v4265, 0
  %v4362 = vsel %vm2254, %v4266, 0
  %v4365 = vsel %vm2254, %v4267, 0
  %v4368 = vsel %vm2254, %v4268, 0
  %v4371 = vsel %vm2254, %v4269, 0
  %v4374 = vsel %vm2254, %v4270, 0
  %v4377 = vsel %vm2254, %v4271, 0
  %v4380 = vsel %vm2254, %v4272, 0
  %v4383 = vsel %vm2254, %v4273, 0
  %v4386 = vsel %vm2254, %v4274, 0
  %v4389 = vsel %vm2254, %v4275, 0
  %v4392 = vsel %vm2254, %v4276, 0
  %v4395 = vsel %vm2254, %v4277, 0
  %v4398 = vsel %vm2254, %v4278, 0
  %v4401 = vsel %vm2254, %v4279, 0
  %v4404 = vsel %vm2254, %v4280, 0
  %v4407 = vsel %vm2254, %v4281, 0
  %v4410 = vsel %vm2254, %v4282, 0
  %v4413 = vsel %vm2254, %v4283, 0
  %v4416 = vsel %vm2254, %v4284, 0
  %v4419 = vsel %vm2254, %v4285, 0
  %v4422 = vsel %vm2254, %v4286, 0
  %v4425 = vsel %vm2254, %v4287, 0
  %v4428 = vsel %vm2254, %v4288, 0
  %v4431 = vsel %vm2254, %v4289, 0
  %v4434 = vsel %vm2254, %v4290, 0
  %v4437 = vsel %vm2254, %v4291, 0
  %v4440 = vsel %vm2254, %v4292, 0
  %v4443 = vsel %vm2254, %v4293, 0
  %v4446 = vsel %vm2254, %v4294, 0
  %v4449 = vsel %vm2254, %v4295, 0
  %v4452 = vsel %vm2254, %v4296, 0
  %v4455 = vsel %vm2254, %v4297, 0
  %v4458 = vsel %vm2254, %v4298, 0
  %v4461 = vsel %vm2254, %v4299, 0
  %v4464 = vsel %vm2254, %v4300, 0
  %v4467 = vsel %vm2254, %v4301, 0
  %v4470 = vsel %vm2254, %v4302, 0
  %v4473 = vsel %vm2254, %v4303, 0
  %v4476 = vsel %vm2254, %v4304, 0
  %v4479 = vsel %vm2254, %v4305, 0
  %v4482 = vsel %vm2254, %v4306, 0
  %v4485 = vsel %vm2254, %v4307, 0
  %v4488 = vsel %vm2254, %v4308, 0
  %v4491 = vsel %vm2254, %v4309, 0
  %v4494 = vsel %vm2254, %v4310, 0
  %v4497 = vsel %vm2254, %v4311, 0
  %v4500 = vsel %vm2254, %v4312, 0
  %v4503 = vsel %vm2254, %v4313, 0
  %v4506 = vsel %vm2254, %v4314, 0
  %v4509 = vsel %vm2254, %v4315, 0
  %v4512 = vsel %vm2254, %v4316, 0
  %v4515 = vsel %vm2254, %v4317, 0
  %v4518 = vsel %vm2254, %v4318, 0
  %v4521 = vsel %vm2254, %v4319, 0
  %v4524 = vsel %vm2254, %v4320, 0
  %v4527 = vsel %vm2254, %v4321, 0
  %4529 = vmatprep.subr.mxu0 0.0
  %4530 = vmatpush1.msra.mxu0 %v4322
  %4531 = vmatprep.subr.mxu0 0.0
  %4532 = vmatpush1.msra.mxu0 %v4323
  %4533 = vmatprep.subr.mxu0 0.0
  %4534 = vmatpush1.msra.mxu0 %v4324
  %4535 = vmatprep.subr.mxu0 0.0
  %4536 = vmatpush1.msra.mxu0 %v4325
  %4537 = vmatprep.subr.mxu0 0.0
  %4538 = vmatpush1.msra.mxu0 %v4326
  %4539 = vmatprep.subr.mxu0 0.0
  %4540 = vmatpush1.msra.mxu0 %v4327
  %4541 = vmatprep.subr.mxu0 0.0
  %4542 = vmatpush1.msra.mxu0 %v4328
  %4543 = vmatprep.subr.mxu0 0.0
  %4544 = vmatpush1.msra.mxu0 %v4329
  %4545 = vmatprep.subr.mxu0 0.0
  %4546 = vmatpush1.msra.mxu0 0.0
  %4547 = vmatprep.subr.mxu0 0.0
  %4548 = vmatpush1.msra.mxu0 0.0
  %4549 = vmatprep.subr.mxu0 0.0
  %4550 = vmatpush1.msra.mxu0 0.0
  %4551 = vmatprep.subr.mxu0 0.0
  %4552 = vmatpush1.msra.mxu0 0.0
  %4553 = vmatprep.subr.mxu0 0.0
  %4554 = vmatpush1.msra.mxu0 0.0
  %4555 = vmatprep.subr.mxu0 0.0
  %4556 = vmatpush1.msra.mxu0 0.0
  %4557 = vmatprep.subr.mxu0 0.0
  %4558 = vmatpush1.msra.mxu0 0.0
  %4559 = vmatprep.subr.mxu0 0.0
  %4560 = vmatpush1.msra.mxu0 0.0
  %4561 = vmatprep.subr.mxu0 0.0
  %4562 = vmatpush1.msra.mxu0 0.0
  %4563 = vmatprep.subr.mxu0 0.0
  %4564 = vmatpush1.msra.mxu0 0.0
  %4565 = vmatprep.subr.mxu0 0.0
  %4566 = vmatpush1.msra.mxu0 0.0
  %4567 = vmatprep.subr.mxu0 0.0
  %4568 = vmatpush1.msra.mxu0 0.0
  %4569 = vmatprep.subr.mxu0 0.0
  %4570 = vmatpush1.msra.mxu0 0.0
  %4571 = vmatprep.subr.mxu0 0.0
  %4572 = vmatpush1.msra.mxu0 0.0
  %4573 = vmatprep.subr.mxu0 0.0
  %4574 = vmatpush1.msra.mxu0 0.0
  %4575 = vmatprep.subr.mxu0 0.0
  %4576 = vmatpush1.msra.mxu0 0.0
  %4577 = vmatprep.subr.mxu0 0.0
  %4578 = vmatpush1.msra.mxu0 0.0
  %4579 = vmatprep.subr.mxu0 0.0
  %4580 = vmatpush1.msra.mxu0 0.0
  %4581 = vmatprep.subr.mxu0 0.0
  %4582 = vmatpush1.msra.mxu0 0.0
  %4583 = vmatprep.subr.mxu0 0.0
  %4584 = vmatpush1.msra.mxu0 0.0
  %4585 = vmatprep.subr.mxu0 0.0
  %4586 = vmatpush1.msra.mxu0 0.0
  %4587 = vmatprep.subr.mxu0 0.0
  %4588 = vmatpush1.msra.mxu0 0.0
  %4589 = vmatprep.subr.mxu0 0.0
  %4590 = vmatpush1.msra.mxu0 0.0
  %4591 = vmatprep.subr.mxu0 0.0
  %4592 = vmatpush1.msra.mxu0 0.0
  %4593 = vmatprep.mubr.f32.mxu0 0.0
  %4594 = vmatmul.mubr.f32.gmra.mrb[0].mxu0 %v4338
  %v4595 = vpop.f32.mrb[0].mxu0
  %v4596 = vadd.f32 %v4335, %v4595
  %v4597 = vpop.f32.mrb[0].mxu0
  %4598 = vmatprep.mubr.f32.mxu0 0.0
  %4599 = vmatmul.mubr.f32.gmra.mrb[0].mxu0 %v4341
  %v4600 = vpop.f32.mrb[0].mxu0
  %v4601 = vadd.f32 %v4335, %v4600
  %v4602 = vpop.f32.mrb[0].mxu0
  %4603 = vmatprep.mubr.f32.mxu0 0.0
  %4604 = vmatmul.mubr.f32.gmra.mrb[0].mxu0 %v4344
  %v4605 = vpop.f32.mrb[0].mxu0
  %v4606 = vadd.f32 %v4335, %v4605
  %v4607 = vpop.f32.mrb[0].mxu0
  %4608 = vmatprep.mubr.f32.mxu0 0.0
  %4609 = vmatmul.mubr.f32.gmra.mrb[0].mxu0 %v4347
  %v4610 = vpop.f32.mrb[0].mxu0
  %v4611 = vadd.f32 %v4335, %v4610
  %v4612 = vpop.f32.mrb[0].mxu0
  %4613 = vmatprep.mubr.f32.mxu0 0.0
  %4614 = vmatmul.mubr.f32.gmra.mrb[0].mxu0 %v4350
  %v4615 = vpop.f32.mrb[0].mxu0
  %v4616 = vadd.f32 %v4335, %v4615
  %v4617 = vpop.f32.mrb[0].mxu0
  %4618 = vmatprep.mubr.f32.mxu0 0.0
  %4619 = vmatmul.mubr.f32.gmra.mrb[0].mxu0 %v4353
  %v4620 = vpop.f32.mrb[0].mxu0
  %v4621 = vadd.f32 %v4335, %v4620
  %v4622 = vpop.f32.mrb[0].mxu0
  %4623 = vmatprep.mubr.f32.mxu0 0.0
  %4624 = vmatmul.mubr.f32.gmra.mrb[0].mxu0 %v4356
  %v4625 = vpop.f32.mrb[0].mxu0
  %v4626 = vadd.f32 %v4335, %v4625
  %v4627 = vpop.f32.mrb[0].mxu0
  %4628 = vmatprep.mubr.f32.mxu0 0.0
  %4629 = vmatmul.mubr.f32.gmra.mrb[0].mxu0 %v4359
  %v4630 = vpop.f32.mrb[0].mxu0
  %v4631 = vadd.f32 %v4335, %v4630
  %v4632 = vpop.f32.mrb[0].mxu0
  %4633 = vmatprep.mubr.f32.mxu0 0.0
  %4634 = vmatmul.mubr.f32.gmra.mrb[0].mxu0 %v4362
  %v4635 = vpop.f32.mrb[0].mxu0
  %v4636 = vadd.f32 %v4335, %v4635
  %v4637 = vpop.f32.mrb[0].mxu0
  %4638 = vmatprep.mubr.f32.mxu0 0.0
  %4639 = vmatmul.mubr.f32.gmra.mrb[0].mxu0 %v4365
  %v4640 = vpop.f32.mrb[0].mxu0
  %v4641 = vadd.f32 %v4335, %v4640
  %v4642 = vpop.f32.mrb[0].mxu0
  %4643 = vmatprep.mubr.f32.mxu0 0.0
  %4644 = vmatmul.mubr.f32.gmra.mrb[0].mxu0 %v4368
  %v4645 = vpop.f32.mrb[0].mxu0
  %v4646 = vadd.f32 %v4335, %v4645
  %v4647 = vpop.f32.mrb[0].mxu0
  %4648 = vmatprep.mubr.f32.mxu0 0.0
  %4649 = vmatmul.mubr.f32.gmra.mrb[0].mxu0 %v4371
  %v4650 = vpop.f32.mrb[0].mxu0
  %v4651 = vadd.f32 %v4335, %v4650
  %v4652 = vpop.f32.mrb[0].mxu0
  %4653 = vmatprep.mubr.f32.mxu0 0.0
  %4654 = vmatmul.mubr.f32.gmra.mrb[0].mxu0 %v4374
  %v4655 = vpop.f32.mrb[0].mxu0
  %v4656 = vadd.f32 %v4335, %v4655
  %v4657 = vpop.f32.mrb[0].mxu0
  %4658 = vmatprep.mubr.f32.mxu0 0.0
  %4659 = vmatmul.mubr.f32.gmra.mrb[0].mxu0 %v4377
  %v4660 = vpop.f32.mrb[0].mxu0
  %v4661 = vadd.f32 %v4335, %v4660
  %v4662 = vpop.f32.mrb[0].mxu0
  %4663 = vmatprep.mubr.f32.mxu0 0.0
  %4664 = vmatmul.mubr.f32.gmra.mrb[0].mxu0 %v4380
  %v4665 = vpop.f32.mrb[0].mxu0
  %v4666 = vadd.f32 %v4335, %v4665
  %v4667 = vpop.f32.mrb[0].mxu0
  %4668 = vmatprep.mubr.f32.mxu0 0.0
  %4669 = vmatmul.mubr.f32.gmra.mrb[0].mxu0 %v4383
  %v4670 = vpop.f32.mrb[0].mxu0
  %v4671 = vadd.f32 %v4335, %v4670
  %v4672 = vpop.f32.mrb[0].mxu0
  %4673 = vmatprep.mubr.f32.mxu0 0.0
  %4674 = vmatmul.mubr.f32.gmra.mrb[0].mxu0 %v4386
  %v4675 = vpop.f32.mrb[0].mxu0
  %v4676 = vadd.f32 %v4335, %v4675
  %v4677 = vpop.f32.mrb[0].mxu0
  %4678 = vmatprep.mubr.f32.mxu0 0.0
  %4679 = vmatmul.mubr.f32.gmra.mrb[0].mxu0 %v4389
  %v4680 = vpop.f32.mrb[0].mxu0
  %v4681 = vadd.f32 %v4335, %v4680
  %v4682 = vpop.f32.mrb[0].mxu0
  %4683 = vmatprep.mubr.f32.mxu0 0.0
  %4684 = vmatmul.mubr.f32.gmra.mrb[0].mxu0 %v4392
  %v4685 = vpop.f32.mrb[0].mxu0
  %v4686 = vadd.f32 %v4335, %v4685
  %v4687 = vpop.f32.mrb[0].mxu0
  %4688 = vmatprep.mubr.f32.mxu0 0.0
  %4689 = vmatmul.mubr.f32.gmra.mrb[0].mxu0 %v4395
  %v4690 = vpop.f32.mrb[0].mxu0
  %v4691 = vadd.f32 %v4335, %v4690
  %v4692 = vpop.f32.mrb[0].mxu0
  %4693 = vmatprep.mubr.f32.mxu0 0.0
  %4694 = vmatmul.mubr.f32.gmra.mrb[0].mxu0 %v4398
  %v4695 = vpop.f32.mrb[0].mxu0
  %v4696 = vadd.f32 %v4335, %v4695
  %v4697 = vpop.f32.mrb[0].mxu0
  %4698 = vmatprep.mubr.f32.mxu0 0.0
  %4699 = vmatmul.mubr.f32.gmra.mrb[0].mxu0 %v4401
  %v4700 = vpop.f32.mrb[0].mxu0
  %v4701 = vadd.f32 %v4335, %v4700
  %v4702 = vpop.f32.mrb[0].mxu0
  %4703 = vmatprep.mubr.f32.mxu0 0.0
  %4704 = vmatmul.mubr.f32.gmra.mrb[0].mxu0 %v4404
  %v4705 = vpop.f32.mrb[0].mxu0
  %v4706 = vadd.f32 %v4335, %v4705
  %v4707 = vpop.f32.mrb[0].mxu0
  %4708 = vmatprep.mubr.f32.mxu0 0.0
  %4709 = vmatmul.mubr.f32.gmra.mrb[0].mxu0 %v4407
  %v4710 = vpop.f32.mrb[0].mxu0
  %v4711 = vadd.f32 %v4335, %v4710
  %v4712 = vpop.f32.mrb[0].mxu0
  %4713 = vmatprep.mubr.f32.mxu0 0.0
  %4714 = vmatmul.mubr.f32.gmra.mrb[0].mxu0 %v4410
  %v4715 = vpop.f32.mrb[0].mxu0
  %v4716 = vadd.f32 %v4335, %v4715
  %v4717 = vpop.f32.mrb[0].mxu0
  %4718 = vmatprep.mubr.f32.mxu0 0.0
  %4719 = vmatmul.mubr.f32.gmra.mrb[0].mxu0 %v4413
  %v4720 = vpop.f32.mrb[0].mxu0
  %v4721 = vadd.f32 %v4335, %v4720
  %v4722 = vpop.f32.mrb[0].mxu0
  %4723 = vmatprep.mubr.f32.mxu0 0.0
  %4724 = vmatmul.mubr.f32.gmra.mrb[0].mxu0 %v4416
  %v4725 = vpop.f32.mrb[0].mxu0
  %v4726 = vadd.f32 %v4335, %v4725
  %v4727 = vpop.f32.mrb[0].mxu0
  %4728 = vmatprep.mubr.f32.mxu0 0.0
  %4729 = vmatmul.mubr.f32.gmra.mrb[0].mxu0 %v4419
  %v4730 = vpop.f32.mrb[0].mxu0
  %v4731 = vadd.f32 %v4335, %v4730
  %v4732 = vpop.f32.mrb[0].mxu0
  %4733 = vmatprep.mubr.f32.mxu0 0.0
  %4734 = vmatmul.mubr.f32.gmra.mrb[0].mxu0 %v4422
  %v4735 = vpop.f32.mrb[0].mxu0
  %v4736 = vadd.f32 %v4335, %v4735
  %v4737 = vpop.f32.mrb[0].mxu0
  %4738 = vmatprep.mubr.f32.mxu0 0.0
  %4739 = vmatmul.mubr.f32.gmra.mrb[0].mxu0 %v4425
  %v4740 = vpop.f32.mrb[0].mxu0
  %v4741 = vadd.f32 %v4335, %v4740
  %v4742 = vpop.f32.mrb[0].mxu0
  %4743 = vmatprep.mubr.f32.mxu0 0.0
  %4744 = vmatmul.mubr.f32.gmra.mrb[0].mxu0 %v4428
  %v4745 = vpop.f32.mrb[0].mxu0
  %v4746 = vadd.f32 %v4335, %v4745
  %v4747 = vpop.f32.mrb[0].mxu0
  %4748 = vmatprep.mubr.f32.mxu0 0.0
  %4749 = vmatmul.mubr.f32.gmra.mrb[0].mxu0 %v4431
  %v4750 = vpop.f32.mrb[0].mxu0
  %v4751 = vadd.f32 %v4335, %v4750
  %v4752 = vpop.f32.mrb[0].mxu0
  %4753 = vmatprep.mubr.f32.mxu0 0.0
  %4754 = vmatmul.mubr.f32.gmra.mrb[0].mxu0 %v4434
  %v4755 = vpop.f32.mrb[0].mxu0
  %v4756 = vadd.f32 %v4335, %v4755
  %v4757 = vpop.f32.mrb[0].mxu0
  %4758 = vmatprep.mubr.f32.mxu0 0.0
  %4759 = vmatmul.mubr.f32.gmra.mrb[0].mxu0 %v4437
  %v4760 = vpop.f32.mrb[0].mxu0
  %v4761 = vadd.f32 %v4335, %v4760
  %v4762 = vpop.f32.mrb[0].mxu0
  %4763 = vmatprep.mubr.f32.mxu0 0.0
  %4764 = vmatmul.mubr.f32.gmra.mrb[0].mxu0 %v4440
  %v4765 = vpop.f32.mrb[0].mxu0
  %v4766 = vadd.f32 %v4335, %v4765
  %v4767 = vpop.f32.mrb[0].mxu0
  %4768 = vmatprep.mubr.f32.mxu0 0.0
  %4769 = vmatmul.mubr.f32.gmra.mrb[0].mxu0 %v4443
  %v4770 = vpop.f32.mrb[0].mxu0
  %v4771 = vadd.f32 %v4335, %v4770
  %v4772 = vpop.f32.mrb[0].mxu0
  %4773 = vmatprep.mubr.f32.mxu0 0.0
  %4774 = vmatmul.mubr.f32.gmra.mrb[0].mxu0 %v4446
  %v4775 = vpop.f32.mrb[0].mxu0
  %v4776 = vadd.f32 %v4335, %v4775
  %v4777 = vpop.f32.mrb[0].mxu0
  %4778 = vmatprep.mubr.f32.mxu0 0.0
  %4779 = vmatmul.mubr.f32.gmra.mrb[0].mxu0 %v4449
  %v4780 = vpop.f32.mrb[0].mxu0
  %v4781 = vadd.f32 %v4335, %v4780
  %v4782 = vpop.f32.mrb[0].mxu0
  %4783 = vmatprep.mubr.f32.mxu0 0.0
  %4784 = vmatmul.mubr.f32.gmra.mrb[0].mxu0 %v4452
  %v4785 = vpop.f32.mrb[0].mxu0
  %v4786 = vadd.f32 %v4335, %v4785
  %v4787 = vpop.f32.mrb[0].mxu0
  %4788 = vmatprep.mubr.f32.mxu0 0.0
  %4789 = vmatmul.mubr.f32.gmra.mrb[0].mxu0 %v4455
  %v4790 = vpop.f32.mrb[0].mxu0
  %v4791 = vadd.f32 %v4335, %v4790
  %v4792 = vpop.f32.mrb[0].mxu0
  %4793 = vmatprep.mubr.f32.mxu0 0.0
  %4794 = vmatmul.mubr.f32.gmra.mrb[0].mxu0 %v4458
  %v4795 = vpop.f32.mrb[0].mxu0
  %v4796 = vadd.f32 %v4335, %v4795
  %v4797 = vpop.f32.mrb[0].mxu0
  %4798 = vmatprep.mubr.f32.mxu0 0.0
  %4799 = vmatmul.mubr.f32.gmra.mrb[0].mxu0 %v4461
  %v4800 = vpop.f32.mrb[0].mxu0
  %v4801 = vadd.f32 %v4335, %v4800
  %v4802 = vpop.f32.mrb[0].mxu0
  %4803 = vmatprep.mubr.f32.mxu0 0.0
  %4804 = vmatmul.mubr.f32.gmra.mrb[0].mxu0 %v4464
  %v4805 = vpop.f32.mrb[0].mxu0
  %v4806 = vadd.f32 %v4335, %v4805
  %v4807 = vpop.f32.mrb[0].mxu0
  %4808 = vmatprep.mubr.f32.mxu0 0.0
  %4809 = vmatmul.mubr.f32.gmra.mrb[0].mxu0 %v4467
  %v4810 = vpop.f32.mrb[0].mxu0
  %v4811 = vadd.f32 %v4335, %v4810
  %v4812 = vpop.f32.mrb[0].mxu0
  %4813 = vmatprep.mubr.f32.mxu0 0.0
  %4814 = vmatmul.mubr.f32.gmra.mrb[0].mxu0 %v4470
  %v4815 = vpop.f32.mrb[0].mxu0
  %v4816 = vadd.f32 %v4335, %v4815
  %v4817 = vpop.f32.mrb[0].mxu0
  %4818 = vmatprep.mubr.f32.mxu0 0.0
  %4819 = vmatmul.mubr.f32.gmra.mrb[0].mxu0 %v4473
  %v4820 = vpop.f32.mrb[0].mxu0
  %v4821 = vadd.f32 %v4335, %v4820
  %v4822 = vpop.f32.mrb[0].mxu0
  %4823 = vmatprep.mubr.f32.mxu0 0.0
  %4824 = vmatmul.mubr.f32.gmra.mrb[0].mxu0 %v4476
  %v4825 = vpop.f32.mrb[0].mxu0
  %v4826 = vadd.f32 %v4335, %v4825
  %v4827 = vpop.f32.mrb[0].mxu0
  %4828 = vmatprep.mubr.f32.mxu0 0.0
  %4829 = vmatmul.mubr.f32.gmra.mrb[0].mxu0 %v4479
  %v4830 = vpop.f32.mrb[0].mxu0
  %v4831 = vadd.f32 %v4335, %v4830
  %v4832 = vpop.f32.mrb[0].mxu0
  %4833 = vmatprep.mubr.f32.mxu0 0.0
  %4834 = vmatmul.mubr.f32.gmra.mrb[0].mxu0 %v4482
  %v4835 = vpop.f32.mrb[0].mxu0
  %v4836 = vadd.f32 %v4335, %v4835
  %v4837 = vpop.f32.mrb[0].mxu0
  %4838 = vmatprep.mubr.f32.mxu0 0.0
  %4839 = vmatmul.mubr.f32.gmra.mrb[0].mxu0 %v4485
  %v4840 = vpop.f32.mrb[0].mxu0
  %v4841 = vadd.f32 %v4335, %v4840
  %v4842 = vpop.f32.mrb[0].mxu0
  %4843 = vmatprep.mubr.f32.mxu0 0.0
  %4844 = vmatmul.mubr.f32.gmra.mrb[0].mxu0 %v4488
  %v4845 = vpop.f32.mrb[0].mxu0
  %v4846 = vadd.f32 %v4335, %v4845
  %v4847 = vpop.f32.mrb[0].mxu0
  %4848 = vmatprep.mubr.f32.mxu0 0.0
  %4849 = vmatmul.mubr.f32.gmra.mrb[0].mxu0 %v4491
  %v4850 = vpop.f32.mrb[0].mxu0
  %v4851 = vadd.f32 %v4335, %v4850
  %v4852 = vpop.f32.mrb[0].mxu0
  %4853 = vmatprep.mubr.f32.mxu0 0.0
  %4854 = vmatmul.mubr.f32.gmra.mrb[0].mxu0 %v4494
  %v4855 = vpop.f32.mrb[0].mxu0
  %v4856 = vadd.f32 %v4335, %v4855
  %v4857 = vpop.f32.mrb[0].mxu0
  %4858 = vmatprep.mubr.f32.mxu0 0.0
  %4859 = vmatmul.mubr.f32.gmra.mrb[0].mxu0 %v4497
  %v4860 = vpop.f32.mrb[0].mxu0
  %v4861 = vadd.f32 %v4335, %v4860
  %v4862 = vpop.f32.mrb[0].mxu0
  %4863 = vmatprep.mubr.f32.mxu0 0.0
  %4864 = vmatmul.mubr.f32.gmra.mrb[0].mxu0 %v4500
  %v4865 = vpop.f32.mrb[0].mxu0
  %v4866 = vadd.f32 %v4335, %v4865
  %v4867 = vpop.f32.mrb[0].mxu0
  %4868 = vmatprep.mubr.f32.mxu0 0.0
  %4869 = vmatmul.mubr.f32.gmra.mrb[0].mxu0 %v4503
  %v4870 = vpop.f32.mrb[0].mxu0
  %v4871 = vadd.f32 %v4335, %v4870
  %v4872 = vpop.f32.mrb[0].mxu0
  %4873 = vmatprep.mubr.f32.mxu0 0.0
  %4874 = vmatmul.mubr.f32.gmra.mrb[0].mxu0 %v4506
  %v4875 = vpop.f32.mrb[0].mxu0
  %v4876 = vadd.f32 %v4335, %v4875
  %v4877 = vpop.f32.mrb[0].mxu0
  %4878 = vmatprep.mubr.f32.mxu0 0.0
  %4879 = vmatmul.mubr.f32.gmra.mrb[0].mxu0 %v4509
  %v4880 = vpop.f32.mrb[0].mxu0
  %v4881 = vadd.f32 %v4335, %v4880
  %v4882 = vpop.f32.mrb[0].mxu0
  %4883 = vmatprep.mubr.f32.mxu0 0.0
  %4884 = vmatmul.mubr.f32.gmra.mrb[0].mxu0 %v4512
  %v4885 = vpop.f32.mrb[0].mxu0
  %v4886 = vadd.f32 %v4335, %v4885
  %v4887 = vpop.f32.mrb[0].mxu0
  %4888 = vmatprep.mubr.f32.mxu0 0.0
  %4889 = vmatmul.mubr.f32.gmra.mrb[0].mxu0 %v4515
  %v4890 = vpop.f32.mrb[0].mxu0
  %v4891 = vadd.f32 %v4335, %v4890
  %v4892 = vpop.f32.mrb[0].mxu0
  %4893 = vmatprep.mubr.f32.mxu0 0.0
  %4894 = vmatmul.mubr.f32.gmra.mrb[0].mxu0 %v4518
  %v4895 = vpop.f32.mrb[0].mxu0
  %v4896 = vadd.f32 %v4335, %v4895
  %v4897 = vpop.f32.mrb[0].mxu0
  %4898 = vmatprep.mubr.f32.mxu0 0.0
  %4899 = vmatmul.mubr.f32.gmra.mrb[0].mxu0 %v4521
  %v4900 = vpop.f32.mrb[0].mxu0
  %v4901 = vadd.f32 %v4335, %v4900
  %v4902 = vpop.f32.mrb[0].mxu0
  %4903 = vmatprep.mubr.f32.mxu0 0.0
  %4904 = vmatmul.mubr.f32.gmra.mrb[0].mxu0 %v4524
  %v4905 = vpop.f32.mrb[0].mxu0
  %v4906 = vadd.f32 %v4335, %v4905
  %v4907 = vpop.f32.mrb[0].mxu0
  %4908 = vmatprep.mubr.f32.mxu0 0.0
  %4909 = vmatmul.mubr.f32.gmra.mrb[0].mxu0 %v4527
  %v4910 = vpop.f32.mrb[0].mxu0
  %v4911 = vadd.f32 %v4335, %v4910
  %v4912 = vpop.f32.mrb[0].mxu0
  %4913 = vdwg.mxu0
  %vm4914 = vcmask 31744
  %4915 = vst.msk [vmem:[%s9] sm:$0xff] %vm4914, %v4596
  %4916 = vst.msk [vmem:[%s9 + $0x8] sm:$0xff] %vm4914, %v4601
  %4917 = vst.msk [vmem:[%s9 + $0x10] sm:$0xff] %vm4914, %v4606
  %4918 = vst.msk [vmem:[%s9 + $0x18] sm:$0xff] %vm4914, %v4611
  %4919 = vst.msk [vmem:[%s9 + $0x20] sm:$0xff] %vm4914, %v4616
  %4920 = vst.msk [vmem:[%s9 + $0x28] sm:$0xff] %vm4914, %v4621
  %4921 = vst.msk [vmem:[%s9 + $0x30] sm:$0xff] %vm4914, %v4626
  %4922 = vst.msk [vmem:[%s9 + $0x38] sm:$0xff] %vm4914, %v4631
  %4923 = vst.msk [vmem:[%s9 + $0x40] sm:$0xff] %vm4914, %v4636
  %4924 = vst.msk [vmem:[%s9 + $0x48] sm:$0xff] %vm4914, %v4641
  %4925 = vst.msk [vmem:[%s9 + $0x50] sm:$0xff] %vm4914, %v4646
  %4926 = vst.msk [vmem:[%s9 + $0x58] sm:$0xff] %vm4914, %v4651
  %4927 = vst.msk [vmem:[%s9 + $0x60] sm:$0xff] %vm4914, %v4656
  %4928 = vst.msk [vmem:[%s9 + $0x68] sm:$0xff] %vm4914, %v4661
  %4929 = vst.msk [vmem:[%s9 + $0x70] sm:$0xff] %vm4914, %v4666
  %4930 = vst.msk [vmem:[%s9 + $0x78] sm:$0xff] %vm4914, %v4671
  %4931 = vst.msk [vmem:[%s9 + $0x80] sm:$0xff] %vm4914, %v4676
  %4932 = vst.msk [vmem:[%s9 + $0x88] sm:$0xff] %vm4914, %v4681
  %4933 = vst.msk [vmem:[%s9 + $0x90] sm:$0xff] %vm4914, %v4686
  %4934 = vst.msk [vmem:[%s9 + $0x98] sm:$0xff] %vm4914, %v4691
  %4935 = vst.msk [vmem:[%s9 + $0xa0] sm:$0xff] %vm4914, %v4696
  %4936 = vst.msk [vmem:[%s9 + $0xa8] sm:$0xff] %vm4914, %v4701
  %4937 = vst.msk [vmem:[%s9 + $0xb0] sm:$0xff] %vm4914, %v4706
  %4938 = vst.msk [vmem:[%s9 + $0xb8] sm:$0xff] %vm4914, %v4711
  %4939 = vst.msk [vmem:[%s9 + $0xc0] sm:$0xff] %vm4914, %v4716
  %4940 = vst.msk [vmem:[%s9 + $0xc8] sm:$0xff] %vm4914, %v4721
  %4941 = vst.msk [vmem:[%s9 + $0xd0] sm:$0xff] %vm4914, %v4726
  %4942 = vst.msk [vmem:[%s9 + $0xd8] sm:$0xff] %vm4914, %v4731
  %4943 = vst.msk [vmem:[%s9 + $0xe0] sm:$0xff] %vm4914, %v4736
  %4944 = vst.msk [vmem:[%s9 + $0xe8] sm:$0xff] %vm4914, %v4741
  %4945 = vst.msk [vmem:[%s9 + $0xf0] sm:$0xff] %vm4914, %v4746
  %4946 = vst.msk [vmem:[%s9 + $0xf8] sm:$0xff] %vm4914, %v4751
  %4947 = vst.msk [vmem:[%s9 + $0x100] sm:$0xff] %vm4914, %v4756
  %4948 = vst.msk [vmem:[%s9 + $0x108] sm:$0xff] %vm4914, %v4761
  %4949 = vst.msk [vmem:[%s9 + $0x110] sm:$0xff] %vm4914, %v4766
  %4950 = vst.msk [vmem:[%s9 + $0x118] sm:$0xff] %vm4914, %v4771
  %4951 = vst.msk [vmem:[%s9 + $0x120] sm:$0xff] %vm4914, %v4776
  %4952 = vst.msk [vmem:[%s9 + $0x128] sm:$0xff] %vm4914, %v4781
  %4953 = vst.msk [vmem:[%s9 + $0x130] sm:$0xff] %vm4914, %v4786
  %4954 = vst.msk [vmem:[%s9 + $0x138] sm:$0xff] %vm4914, %v4791
  %4955 = vst.msk [vmem:[%s9 + $0x140] sm:$0xff] %vm4914, %v4796
  %4956 = vst.msk [vmem:[%s9 + $0x148] sm:$0xff] %vm4914, %v4801
  %4957 = vst.msk [vmem:[%s9 + $0x150] sm:$0xff] %vm4914, %v4806
  %4958 = vst.msk [vmem:[%s9 + $0x158] sm:$0xff] %vm4914, %v4811
  %4959 = vst.msk [vmem:[%s9 + $0x160] sm:$0xff] %vm4914, %v4816
  %4960 = vst.msk [vmem:[%s9 + $0x168] sm:$0xff] %vm4914, %v4821
  %4961 = vst.msk [vmem:[%s9 + $0x170] sm:$0xff] %vm4914, %v4826
  %4962 = vst.msk [vmem:[%s9 + $0x178] sm:$0xff] %vm4914, %v4831
  %4963 = vst.msk [vmem:[%s9 + $0x180] sm:$0xff] %vm4914, %v4836
  %4964 = vst.msk [vmem:[%s9 + $0x188] sm:$0xff] %vm4914, %v4841
  %4965 = vst.msk [vmem:[%s9 + $0x190] sm:$0xff] %vm4914, %v4846
  %4966 = vst.msk [vmem:[%s9 + $0x198] sm:$0xff] %vm4914, %v4851
  %4967 = vst.msk [vmem:[%s9 + $0x1a0] sm:$0xff] %vm4914, %v4856
  %4968 = vst.msk [vmem:[%s9 + $0x1a8] sm:$0xff] %vm4914, %v4861
  %4969 = vst.msk [vmem:[%s9 + $0x1b0] sm:$0xff] %vm4914, %v4866
  %4970 = vst.msk [vmem:[%s9 + $0x1b8] sm:$0xff] %vm4914, %v4871
  %4971 = vst.msk [vmem:[%s9 + $0x1c0] sm:$0xff] %vm4914, %v4876
  %4972 = vst.msk [vmem:[%s9 + $0x1c8] sm:$0xff] %vm4914, %v4881
  %4973 = vst.msk [vmem:[%s9 + $0x1d0] sm:$0xff] %vm4914, %v4886
  %4974 = vst.msk [vmem:[%s9 + $0x1d8] sm:$0xff] %vm4914, %v4891
  %4975 = vst.msk [vmem:[%s9 + $0x1e0] sm:$0xff] %vm4914, %v4896
  %4976 = vst.msk [vmem:[%s9 + $0x1e8] sm:$0xff] %vm4914, %v4901
  %4977 = vst.msk [vmem:[%s9 + $0x1f0] sm:$0xff] %vm4914, %v4906
  %4978 = vst.msk [vmem:[%s9 + $0x1f8] sm:$0xff] %vm4914, %v4911
  // Predicated region
  $region38: #{tpu_custom_call.1} parent=0 // pred_check
    _
  $region39: #{tpu_custom_call.1} parent=0 // pred_check_branch
    %4980 = sbr.rel (0) target = $region41
  $region40: #{tpu_custom_call.1} parent=0 // pred_region
    _
  $region41: #{tpu_custom_call.1} parent=0 // pred_fallthru
    _
  // Predicated region
  $region42: #{tpu_custom_call.1} parent=0 // pred_check
    _
  $region43: #{tpu_custom_call.1} parent=0 // pred_check_branch
    %4982 = sbr.rel (0) target = $region45
  $region44: #{tpu_custom_call.1} parent=0 // pred_region
    _
  $region45: #{tpu_custom_call.1} parent=0 // pred_fallthru
    _

</llo_original>
